<compile_context>
chip_gen: v7x
topology: tpu7x:2x2x1
jax: 0.10.0
libtpu: 0.0.40
codegen_flags: <defaults>
</compile_context>

<pallas_src>
import functools
import math

import jax
import jax.numpy as jnp
from jax import lax
from jax.experimental import pallas as pl
from jax.experimental.pallas import tpu as pltpu

# ------------------------- config (small shapes) ----------------------------
HIDDEN = 128
NUM_HEAD = 4
HEAD_DIM = HIDDEN // NUM_HEAD
FFN = 4 * HIDDEN
NUM_LAYERS = 2
VOCAB = 20
VOCAB_PAD = 32          # vocab padded for the one-hot matmul
MAX_LEN = 64
SEQ = 16
BATCH = 2
EPS = 1e-5

# rows of the packed (NVEC, HIDDEN) parameter-vector array
_EMB_G, _EMB_B, _BO, _B2, _LN1G, _LN1B, _LN2G, _LN2B, _POOLB = range(9)
NVEC = 9


def _layernorm(x, gamma, beta):
    mean = jnp.mean(x, axis=-1, keepdims=True)
    var = jnp.mean(jnp.square(x - mean), axis=-1, keepdims=True)
    return (x - mean) * lax.rsqrt(var + EPS) * gamma + beta


# --------------------------- fused forward kernel ----------------------------
def bert_kernel(ids_ref, mask_ref, tokemb_ref, posemb_ref, wqkv_ref, bqkv_ref,
                wo_ref, w1_ref, b1_ref, w2_ref, poolw_ref, vec_ref, out_ref,
                *, nb):
    scale = 1.0 / math.sqrt(HEAD_DIM)
    rows = nb * SEQ                                         # sequences folded into rows

    # ----- hoisted packed parameter vectors (loaded once, reused per layer) --
    vecs = vec_ref[...]                                     # (NVEC, H) f32
    emb_g, emb_b = vecs[_EMB_G:_EMB_G + 1], vecs[_EMB_B:_EMB_B + 1]
    bo, b2 = vecs[_BO:_BO + 1], vecs[_B2:_B2 + 1]
    ln1_g, ln1_b = vecs[_LN1G:_LN1G + 1], vecs[_LN1B:_LN1B + 1]
    ln2_g, ln2_b = vecs[_LN2G:_LN2G + 1], vecs[_LN2B:_LN2B + 1]
    pool_b = vecs[_POOLB:_POOLB + 1]

    wqkv = wqkv_ref[...]                                    # (H, 3H)  bf16
    bqkv = bqkv_ref[...]                                    # (1, 3H)  f32
    wo = wo_ref[...]                                        # (H, H)   bf16
    w1 = w1_ref[...]                                        # (H, FFN) bf16
    b1 = b1_ref[...]                                        # (1, FFN) f32
    w2 = w2_ref[...]                                        # (FFN, H) bf16

    # ----- embedding: one-hot MXU gather + positional + LayerNorm ------------
    ids = ids_ref[...]                                      # (rows, 1) int32
    vocab_iota = lax.broadcasted_iota(jnp.int32, (rows, VOCAB_PAD), 1)
    onehot = (ids == vocab_iota).astype(jnp.bfloat16)       # (rows, VOCAB_PAD)
    tok = jnp.dot(onehot, tokemb_ref[...], preferred_element_type=jnp.float32)
    x = tok + posemb_ref[...].astype(jnp.float32)           # (rows, H) f32
    x = _layernorm(x, emb_g, emb_b)
    # Dropout(0.1) -> identity (eval mode).

    # additive attention bias, per sequence
    bias = (mask_ref[...] - 1.0) * 1e9                      # (nb, 1, S) f32

    def encoder(x):                                         # x: (rows, H) f32
        # fused Q/K/V projection: ONE lane-dense (rows,128)@(128,384) matmul
        qkv = jnp.dot(x.astype(jnp.bfloat16), wqkv,
                      preferred_element_type=jnp.float32) + bqkv   # (rows, 3H)
        qkv3 = qkv.reshape(nb, SEQ, 3 * HIDDEN)             # split leading dim only

        head_out = []
        for h in range(NUM_HEAD):                           # static, NUM_HEAD=4
            q = qkv3[:, :, h * HEAD_DIM:(h + 1) * HEAD_DIM].astype(jnp.bfloat16)
            k = qkv3[:, :, HIDDEN + h * HEAD_DIM:
                           HIDDEN + (h + 1) * HEAD_DIM].astype(jnp.bfloat16)
            v = qkv3[:, :, 2 * HIDDEN + h * HEAD_DIM:
                           2 * HIDDEN + (h + 1) * HEAD_DIM].astype(jnp.bfloat16)
            s = jnp.einsum('bqd,bkd->bqk', q, k,
                           preferred_element_type=jnp.float32) * scale + bias
            s = s - jnp.max(s, axis=-1, keepdims=True)
            p = jnp.exp(s)
            p = p * pl.reciprocal(jnp.sum(p, axis=-1, keepdims=True), approx=True)
            head_out.append(jnp.einsum('bqk,bkd->bqd', p.astype(jnp.bfloat16), v,
                                       preferred_element_type=jnp.float32))
        # concat(heads) along lanes -> one full-depth (rows,128)@(128,128) matmul
        o = jnp.concatenate(head_out, axis=-1).reshape(rows, HIDDEN)
        attn = jnp.dot(o.astype(jnp.bfloat16), wo,
                       preferred_element_type=jnp.float32) + bo

        h1 = _layernorm(x + attn, ln1_g, ln1_b)

        f = jnp.dot(h1.astype(jnp.bfloat16), w1,
                    preferred_element_type=jnp.float32) + b1
        # TODO(synk): PyTorch nn.GELU defaults to exact erf; tanh approx used here.
        f = jax.nn.gelu(f, approximate=True)
        f = jnp.dot(f.astype(jnp.bfloat16), w2,
                    preferred_element_type=jnp.float32) + b2
        return _layernorm(h1 + f, ln2_g, ln2_b)

    for _ in range(NUM_LAYERS):                             # shared weights, static unroll
        x = encoder(x)

    # ----- pooler: tanh(Linear(cls)) ------------------------------------------
    cls = x.reshape(nb, SEQ, HIDDEN)[:, 0:1, :]             # (nb, 1, H)
    for b in range(nb):                                     # nb <= 2, static
        pooled = jnp.tanh(jnp.dot(cls[b].astype(jnp.bfloat16), poolw_ref[...],
                                  preferred_element_type=jnp.float32) + pool_b)
        out_ref[b] = pooled                                 # (1, H)


def bert_forward(params, input_ids, attn_mask, *, seqs_per_step=None):
    B, S = input_ids.shape
    assert S == SEQ and B == BATCH
    if seqs_per_step is None:
        # v5e/v6e: single TensorCore -> fold the whole batch into ONE grid step.
        # v7x: two TensorCores -> one sequence per (parallel) grid step.
        try:
            kind = jax.devices()[0].device_kind.lower()
        except Exception:  # pragma: no cover
            kind = ""
        seqs_per_step = 1 if ("v7" in kind or "7x" in kind) else B
    nb = seqs_per_step
    assert B % nb == 0

    ids2 = input_ids.astype(jnp.int32).reshape(B * S, 1)     # (B*S, 1)
    maskf = attn_mask.astype(jnp.float32)[:, None, :]        # (B, 1, S)

    def rep(shape):   # replicated (weight) operand, constant index map
        nd = len(shape)
        return pl.BlockSpec(shape, lambda g: (0,) * nd)

    out = pl.pallas_call(
        functools.partial(bert_kernel, nb=nb),
        out_shape=jax.ShapeDtypeStruct((B, 1, HIDDEN), jnp.float32),
        grid=(B // nb,),
        in_specs=[
            pl.BlockSpec((nb * S, 1), lambda g: (g, 0)),     # token ids (flattened)
            pl.BlockSpec((nb, 1, S), lambda g: (g, 0, 0)),   # attention mask
            rep((VOCAB_PAD, HIDDEN)),                        # tok_emb (padded, bf16)
            pl.BlockSpec((nb * S, HIDDEN), lambda g: (g, 0)),  # pos_emb (host-tiled)
            rep((HIDDEN, 3 * HIDDEN)),                       # fused wqkv (bf16)
            rep((1, 3 * HIDDEN)),                            # fused qkv bias (f32)
            rep((HIDDEN, HIDDEN)),                           # wo (bf16)
            rep((HIDDEN, FFN)),                              # w1 (bf16)
            rep((1, FFN)),                                   # b1 (f32)
            rep((FFN, HIDDEN)),                              # w2 (bf16)
            rep((HIDDEN, HIDDEN)),                           # pool_w (bf16)
            rep((NVEC, HIDDEN)),                             # packed biases / LN params
        ],
        out_specs=pl.BlockSpec((nb, 1, HIDDEN), lambda g: (g, 0, 0)),
        compiler_params=pltpu.CompilerParams(dimension_semantics=("parallel",)),
    )(ids2, maskf, params["tok_emb"], params["pos_emb"], params["wqkv"],
      params["bqkv"], params["wo"], params["w1"], params["b1"], params["w2"],
      params["pool_w"], params["vecs"])
    return out[:, 0, :]                                      # (B, H)


# ------------------------- parameters (host-side prep) -----------------------
def init_params(key):
    ks = jax.random.split(key, 10)

    def init(k, shape):
        return (0.02 * jax.random.normal(k, shape)).astype(jnp.float32)

    tok_emb = init(ks[0], (VOCAB, HIDDEN))
    pos_emb = init(ks[1], (MAX_LEN, HIDDEN))
    wq, wk, wv, wo = (init(ks[i], (HIDDEN, HIDDEN)) for i in range(2, 6))
    w1 = init(ks[6], (HIDDEN, FFN))
    w2 = init(ks[7], (FFN, HIDDEN))
    pool_w = init(ks[8], (HIDDEN, HIDDEN))

    zeros_h = jnp.zeros((HIDDEN,), jnp.float32)
    ones_h = jnp.ones((HIDDEN,), jnp.float32)
    bq = bk = bv = bo = b2 = pool_b = zeros_h
    b1 = jnp.zeros((FFN,), jnp.float32)
    emb_ln_g, emb_ln_b = ones_h, zeros_h
    ln1_g, ln1_b = ones_h, zeros_h
    ln2_g, ln2_b = ones_h, zeros_h

    # fused QKV weight/bias (heads stay contiguous per 128-column block)
    wqkv = jnp.concatenate([wq, wk, wv], axis=1).astype(jnp.bfloat16)   # (H, 3H)
    bqkv = jnp.concatenate([bq, bk, bv]).reshape(1, 3 * HIDDEN).astype(jnp.float32)

    tok_emb_pad = jnp.zeros((VOCAB_PAD, HIDDEN), jnp.float32)
    tok_emb_pad = tok_emb_pad.at[:VOCAB].set(tok_emb).astype(jnp.bfloat16)
    # positional embedding rows [0:S], tiled per sequence on the host
    pos_tiled = jnp.tile(pos_emb[:SEQ], (BATCH, 1)).astype(jnp.bfloat16)  # (B*S, H)

    vecs = jnp.stack([emb_ln_g, emb_ln_b, bo, b2,
                      ln1_g, ln1_b, ln2_g, ln2_b, pool_b], axis=0)  # (NVEC, H) f32

    return {
        "tok_emb": tok_emb_pad,
        "pos_emb": pos_tiled,
        "wqkv": wqkv, "bqkv": bqkv,
        "wo": wo.astype(jnp.bfloat16),
        "w1": w1.astype(jnp.bfloat16), "b1": b1.reshape(1, FFN),
        "w2": w2.astype(jnp.bfloat16),
        "pool_w": pool_w.astype(jnp.bfloat16),
        "vecs": vecs,   # single shared encoder block, applied NUM_LAYERS times
    }


if __name__ == "__main__":
    key = jax.random.PRNGKey(0)
    pkey, ikey = jax.random.split(key)

    params = init_params(pkey)

    input_ids = jax.random.randint(ikey, (BATCH, SEQ), 0, VOCAB, dtype=jnp.int32)
    # attention mask: batch 0 fully attended, batch 1 has last 4 positions padded.
    attn_mask = jnp.ones((BATCH, SEQ), dtype=jnp.int32)
    attn_mask = attn_mask.at[1, SEQ - 4:].set(0)

    out = bert_forward(params, input_ids, attn_mask)
    out = jax.block_until_ready(out)
    assert out.shape == (BATCH, HIDDEN) and bool(jnp.all(jnp.isfinite(out)))
    print("KERNEL_OK")
</pallas_src>

<mosaic_0001>
module attributes {stable_mosaic.version = 11 : i64} {
  func.func @bert_kernel(%arg0: i32, %arg1: memref<32x1xi32, #tpu.memory_space<vmem>>, %arg2: memref<2x1x16xf32, #tpu.memory_space<vmem>>, %arg3: memref<32x128xbf16, #tpu.memory_space<vmem>>, %arg4: memref<32x128xbf16, #tpu.memory_space<vmem>>, %arg5: memref<128x384xbf16, #tpu.memory_space<vmem>>, %arg6: memref<1x384xf32, #tpu.memory_space<vmem>>, %arg7: memref<128x128xbf16, #tpu.memory_space<vmem>>, %arg8: memref<128x512xbf16, #tpu.memory_space<vmem>>, %arg9: memref<1x512xf32, #tpu.memory_space<vmem>>, %arg10: memref<512x128xbf16, #tpu.memory_space<vmem>>, %arg11: memref<128x128xbf16, #tpu.memory_space<vmem>>, %arg12: memref<9x128xf32, #tpu.memory_space<vmem>>, %arg13: memref<2x1x128xf32, #tpu.memory_space<vmem>>) attributes {dimension_semantics = [#tpu.dimension_semantics<parallel>], iteration_bounds = array<i64: 1>, scalar_prefetch = 0 : i64, scratch_operands = 0 : i64, tpu.core_type = #tpu.core_type<tc>, window_params = [{transform_indices = @transform_0, window_bounds = array<i64: 32, 1>}, {transform_indices = @transform_1, window_bounds = array<i64: 2, 1, 16>}, {pipeline_mode = #tpu.pipeline_mode<synchronous>, transform_indices = @transform_2, window_bounds = array<i64: 32, 128>}, {transform_indices = @transform_3, window_bounds = array<i64: 32, 128>}, {pipeline_mode = #tpu.pipeline_mode<synchronous>, transform_indices = @transform_4, window_bounds = array<i64: 128, 384>}, {pipeline_mode = #tpu.pipeline_mode<synchronous>, transform_indices = @transform_5, window_bounds = array<i64: 1, 384>}, {pipeline_mode = #tpu.pipeline_mode<synchronous>, transform_indices = @transform_6, window_bounds = array<i64: 128, 128>}, {pipeline_mode = #tpu.pipeline_mode<synchronous>, transform_indices = @transform_7, window_bounds = array<i64: 128, 512>}, {pipeline_mode = #tpu.pipeline_mode<synchronous>, transform_indices = @transform_8, window_bounds = array<i64: 1, 512>}, {pipeline_mode = #tpu.pipeline_mode<synchronous>, transform_indices = @transform_9, window_bounds = array<i64: 512, 128>}, {pipeline_mode = #tpu.pipeline_mode<synchronous>, transform_indices = @transform_10, window_bounds = array<i64: 128, 128>}, {pipeline_mode = #tpu.pipeline_mode<synchronous>, transform_indices = @transform_11, window_bounds = array<i64: 9, 128>}, {transform_indices = @transform_12, window_bounds = array<i64: 2, 1, 128>}]} {
    %c0 = arith.constant 0 : index
    %c0_0 = arith.constant 0 : index
    %0 = vector.load %arg12[%c0, %c0_0] : memref<9x128xf32, #tpu.memory_space<vmem>>, vector<9x128xf32>
    %1 = vector.extract_strided_slice %0 {offsets = [0, 0], sizes = [1, 128], strides = [1, 1]} : vector<9x128xf32> to vector<1x128xf32>
    %2 = vector.extract_strided_slice %0 {offsets = [1, 0], sizes = [1, 128], strides = [1, 1]} : vector<9x128xf32> to vector<1x128xf32>
    %3 = vector.extract_strided_slice %0 {offsets = [2, 0], sizes = [1, 128], strides = [1, 1]} : vector<9x128xf32> to vector<1x128xf32>
    %4 = vector.extract_strided_slice %0 {offsets = [3, 0], sizes = [1, 128], strides = [1, 1]} : vector<9x128xf32> to vector<1x128xf32>
    %5 = vector.extract_strided_slice %0 {offsets = [4, 0], sizes = [1, 128], strides = [1, 1]} : vector<9x128xf32> to vector<1x128xf32>
    %6 = vector.extract_strided_slice %0 {offsets = [5, 0], sizes = [1, 128], strides = [1, 1]} : vector<9x128xf32> to vector<1x128xf32>
    %7 = vector.extract_strided_slice %0 {offsets = [6, 0], sizes = [1, 128], strides = [1, 1]} : vector<9x128xf32> to vector<1x128xf32>
    %8 = vector.extract_strided_slice %0 {offsets = [7, 0], sizes = [1, 128], strides = [1, 1]} : vector<9x128xf32> to vector<1x128xf32>
    %9 = vector.extract_strided_slice %0 {offsets = [8, 0], sizes = [1, 128], strides = [1, 1]} : vector<9x128xf32> to vector<1x128xf32>
    %c0_1 = arith.constant 0 : index
    %c0_2 = arith.constant 0 : index
    %10 = vector.load %arg5[%c0_1, %c0_2] : memref<128x384xbf16, #tpu.memory_space<vmem>>, vector<128x384xbf16>
    %c0_3 = arith.constant 0 : index
    %c0_4 = arith.constant 0 : index
    %11 = vector.load %arg6[%c0_3, %c0_4] : memref<1x384xf32, #tpu.memory_space<vmem>>, vector<1x384xf32>
    %c0_5 = arith.constant 0 : index
    %c0_6 = arith.constant 0 : index
    %12 = vector.load %arg7[%c0_5, %c0_6] : memref<128x128xbf16, #tpu.memory_space<vmem>>, vector<128x128xbf16>
    %c0_7 = arith.constant 0 : index
    %c0_8 = arith.constant 0 : index
    %13 = vector.load %arg8[%c0_7, %c0_8] : memref<128x512xbf16, #tpu.memory_space<vmem>>, vector<128x512xbf16>
    %c0_9 = arith.constant 0 : index
    %c0_10 = arith.constant 0 : index
    %14 = vector.load %arg9[%c0_9, %c0_10] : memref<1x512xf32, #tpu.memory_space<vmem>>, vector<1x512xf32>
    %c0_11 = arith.constant 0 : index
    %c0_12 = arith.constant 0 : index
    %15 = vector.load %arg10[%c0_11, %c0_12] : memref<512x128xbf16, #tpu.memory_space<vmem>>, vector<512x128xbf16>
    %c0_13 = arith.constant 0 : index
    %c0_14 = arith.constant 0 : index
    %16 = vector.load %arg1[%c0_13, %c0_14] : memref<32x1xi32, #tpu.memory_space<vmem>>, vector<32x1xi32>
    %17 = tpu.iota {dimensions = array<i32: 1>} : vector<32x32xi32>
    %18 = vector.broadcast %16 : vector<32x1xi32> to vector<32x32xi32>
    %19 = arith.cmpi eq, %18, %17 : vector<32x32xi32>
    %20 = arith.extui %19 : vector<32x32xi1> to vector<32x32xi32>
    %21 = arith.sitofp %20 : vector<32x32xi32> to vector<32x32xf32>
    %22 = arith.truncf %21 : vector<32x32xf32> to vector<32x32xbf16>
    %c0_15 = arith.constant 0 : index
    %c0_16 = arith.constant 0 : index
    %23 = vector.load %arg3[%c0_15, %c0_16] : memref<32x128xbf16, #tpu.memory_space<vmem>>, vector<32x128xbf16>
    %cst = arith.constant dense<0.000000e+00> : vector<32x128xf32>
    %24 = tpu.matmul %22, %23, %cst {dimension_numbers = #tpu.dot_dimension_numbers<[1], [0], [0], [1], [0, 0, 1, 1], [], []>} : vector<32x32xbf16>, vector<32x128xbf16>, vector<32x128xf32> -> vector<32x128xf32>
    %c0_17 = arith.constant 0 : index
    %c0_18 = arith.constant 0 : index
    %25 = vector.load %arg4[%c0_17, %c0_18] : memref<32x128xbf16, #tpu.memory_space<vmem>>, vector<32x128xbf16>
    %26 = arith.extf %25 : vector<32x128xbf16> to vector<32x128xf32>
    %27 = arith.addf %24, %26 : vector<32x128xf32>
    %cst_19 = arith.constant dense<0.000000e+00> : vector<32xf32>
    %28 = vector.multi_reduction <add>, %27, %cst_19 [1] : vector<32x128xf32> to vector<32xf32>
    %29 = vector.shape_cast %28 : vector<32xf32> to vector<32x1xf32>
    %cst_20 = arith.constant 1.280000e+02 : f32
    %30 = vector.broadcast %cst_20 : f32 to vector<32x1xf32>
    %31 = arith.divf %29, %30 : vector<32x1xf32>
    %32 = vector.broadcast %31 : vector<32x1xf32> to vector<32x128xf32>
    %33 = arith.subf %27, %32 : vector<32x128xf32>
    %34 = arith.mulf %33, %33 : vector<32x128xf32>
    %cst_21 = arith.constant dense<0.000000e+00> : vector<32xf32>
    %35 = vector.multi_reduction <add>, %34, %cst_21 [1] : vector<32x128xf32> to vector<32xf32>
    %36 = vector.shape_cast %35 : vector<32xf32> to vector<32x1xf32>
    %cst_22 = arith.constant 1.280000e+02 : f32
    %37 = vector.broadcast %cst_22 : f32 to vector<32x1xf32>
    %38 = arith.divf %36, %37 : vector<32x1xf32>
    %39 = vector.broadcast %31 : vector<32x1xf32> to vector<32x128xf32>
    %40 = arith.subf %27, %39 : vector<32x128xf32>
    %cst_23 = arith.constant 9.99999974E-6 : f32
    %41 = vector.broadcast %cst_23 : f32 to vector<32x1xf32>
    %42 = arith.addf %38, %41 : vector<32x1xf32>
    %43 = math.rsqrt %42 : vector<32x1xf32>
    %44 = vector.broadcast %43 : vector<32x1xf32> to vector<32x128xf32>
    %45 = arith.mulf %40, %44 : vector<32x128xf32>
    %46 = vector.broadcast %1 : vector<1x128xf32> to vector<32x128xf32>
    %47 = arith.mulf %45, %46 : vector<32x128xf32>
    %48 = vector.broadcast %2 : vector<1x128xf32> to vector<32x128xf32>
    %49 = arith.addf %47, %48 : vector<32x128xf32>
    %c0_24 = arith.constant 0 : index
    %c0_25 = arith.constant 0 : index
    %c0_26 = arith.constant 0 : index
    %50 = vector.load %arg2[%c0_24, %c0_25, %c0_26] : memref<2x1x16xf32, #tpu.memory_space<vmem>>, vector<2x1x16xf32>
    %cst_27 = arith.constant 1.000000e+00 : f32
    %51 = vector.broadcast %cst_27 : f32 to vector<2x1x16xf32>
    %52 = arith.subf %50, %51 : vector<2x1x16xf32>
    %cst_28 = arith.constant 1.000000e+09 : f32
    %53 = vector.broadcast %cst_28 : f32 to vector<2x1x16xf32>
    %54 = arith.mulf %52, %53 : vector<2x1x16xf32>
    %55 = arith.truncf %49 : vector<32x128xf32> to vector<32x128xbf16>
    %cst_29 = arith.constant dense<0.000000e+00> : vector<32x384xf32>
    %56 = tpu.matmul %55, %10, %cst_29 {dimension_numbers = #tpu.dot_dimension_numbers<[1], [0], [0], [1], [0, 0, 1, 1], [], []>} : vector<32x128xbf16>, vector<128x384xbf16>, vector<32x384xf32> -> vector<32x384xf32>
    %57 = vector.broadcast %11 : vector<1x384xf32> to vector<32x384xf32>
    %58 = arith.addf %56, %57 : vector<32x384xf32>
    %59 = vector.shape_cast %58 : vector<32x384xf32> to vector<2x16x384xf32>
    %60 = vector.extract_strided_slice %59 {offsets = [0, 0, 0], sizes = [2, 16, 32], strides = [1, 1, 1]} : vector<2x16x384xf32> to vector<2x16x32xf32>
    %61 = arith.truncf %60 : vector<2x16x32xf32> to vector<2x16x32xbf16>
    %62 = vector.extract_strided_slice %59 {offsets = [0, 0, 128], sizes = [2, 16, 32], strides = [1, 1, 1]} : vector<2x16x384xf32> to vector<2x16x32xf32>
    %63 = arith.truncf %62 : vector<2x16x32xf32> to vector<2x16x32xbf16>
    %64 = vector.extract_strided_slice %59 {offsets = [0, 0, 256], sizes = [2, 16, 32], strides = [1, 1, 1]} : vector<2x16x384xf32> to vector<2x16x32xf32>
    %65 = arith.truncf %64 : vector<2x16x32xf32> to vector<2x16x32xbf16>
    "tpu.trace_start"() <{level = 10 : i32, message = "bqd,bkd->bqk"}> : () -> ()
    %cst_30 = arith.constant dense<0.000000e+00> : vector<2x16x16xf32>
    %66 = tpu.matmul %61, %63, %cst_30 {dimension_numbers = #tpu.dot_dimension_numbers<[2], [2], [1], [1], [0, 0, 0, 1, 1, 1], [0], [0]>} : vector<2x16x32xbf16>, vector<2x16x32xbf16>, vector<2x16x16xf32> -> vector<2x16x16xf32>
    "tpu.trace_stop"() : () -> ()
    %cst_31 = arith.constant 0.176776692 : f32
    %67 = vector.broadcast %cst_31 : f32 to vector<2x16x16xf32>
    %68 = arith.mulf %66, %67 : vector<2x16x16xf32>
    %69 = vector.broadcast %54 : vector<2x1x16xf32> to vector<2x16x16xf32>
    %70 = arith.addf %68, %69 : vector<2x16x16xf32>
    %cst_32 = arith.constant dense<0xFF800000> : vector<2x16xf32>
    %71 = vector.multi_reduction <maximumf>, %70, %cst_32 [2] : vector<2x16x16xf32> to vector<2x16xf32>
    %72 = vector.shape_cast %71 : vector<2x16xf32> to vector<2x16x1xf32>
    %73 = vector.broadcast %72 : vector<2x16x1xf32> to vector<2x16x16xf32>
    %74 = arith.subf %70, %73 : vector<2x16x16xf32>
    %75 = math.exp %74 : vector<2x16x16xf32>
    %cst_33 = arith.constant dense<0.000000e+00> : vector<2x16xf32>
    %76 = vector.multi_reduction <add>, %75, %cst_33 [2] : vector<2x16x16xf32> to vector<2x16xf32>
    %77 = vector.shape_cast %76 : vector<2x16xf32> to vector<2x16x1xf32>
    %78 = tpu.reciprocal %77 {approx = true} : vector<2x16x1xf32> -> vector<2x16x1xf32>
    %79 = vector.broadcast %78 : vector<2x16x1xf32> to vector<2x16x16xf32>
    %80 = arith.mulf %75, %79 : vector<2x16x16xf32>
    %81 = arith.truncf %80 : vector<2x16x16xf32> to vector<2x16x16xbf16>
    "tpu.trace_start"() <{level = 10 : i32, message = "bqk,bkd->bqd"}> : () -> ()
    %cst_34 = arith.constant dense<0.000000e+00> : vector<2x16x32xf32>
    %82 = tpu.matmul %81, %65, %cst_34 {dimension_numbers = #tpu.dot_dimension_numbers<[2], [1], [1], [2], [0, 0, 0, 1, 1, 2], [0], [0]>} : vector<2x16x16xbf16>, vector<2x16x32xbf16>, vector<2x16x32xf32> -> vector<2x16x32xf32>
    "tpu.trace_stop"() : () -> ()
    %83 = vector.extract_strided_slice %59 {offsets = [0, 0, 32], sizes = [2, 16, 32], strides = [1, 1, 1]} : vector<2x16x384xf32> to vector<2x16x32xf32>
    %84 = arith.truncf %83 : vector<2x16x32xf32> to vector<2x16x32xbf16>
    %85 = vector.extract_strided_slice %59 {offsets = [0, 0, 160], sizes = [2, 16, 32], strides = [1, 1, 1]} : vector<2x16x384xf32> to vector<2x16x32xf32>
    %86 = arith.truncf %85 : vector<2x16x32xf32> to vector<2x16x32xbf16>
    %87 = vector.extract_strided_slice %59 {offsets = [0, 0, 288], sizes = [2, 16, 32], strides = [1, 1, 1]} : vector<2x16x384xf32> to vector<2x16x32xf32>
    %88 = arith.truncf %87 : vector<2x16x32xf32> to vector<2x16x32xbf16>
    "tpu.trace_start"() <{level = 10 : i32, message = "bqd,bkd->bqk"}> : () -> ()
    %cst_35 = arith.constant dense<0.000000e+00> : vector<2x16x16xf32>
    %89 = tpu.matmul %84, %86, %cst_35 {dimension_numbers = #tpu.dot_dimension_numbers<[2], [2], [1], [1], [0, 0, 0, 1, 1, 1], [0], [0]>} : vector<2x16x32xbf16>, vector<2x16x32xbf16>, vector<2x16x16xf32> -> vector<2x16x16xf32>
    "tpu.trace_stop"() : () -> ()
    %cst_36 = arith.constant 0.176776692 : f32
    %90 = vector.broadcast %cst_36 : f32 to vector<2x16x16xf32>
    %91 = arith.mulf %89, %90 : vector<2x16x16xf32>
    %92 = vector.broadcast %54 : vector<2x1x16xf32> to vector<2x16x16xf32>
    %93 = arith.addf %91, %92 : vector<2x16x16xf32>
    %cst_37 = arith.constant dense<0xFF800000> : vector<2x16xf32>
    %94 = vector.multi_reduction <maximumf>, %93, %cst_37 [2] : vector<2x16x16xf32> to vector<2x16xf32>
    %95 = vector.shape_cast %94 : vector<2x16xf32> to vector<2x16x1xf32>
    %96 = vector.broadcast %95 : vector<2x16x1xf32> to vector<2x16x16xf32>
    %97 = arith.subf %93, %96 : vector<2x16x16xf32>
    %98 = math.exp %97 : vector<2x16x16xf32>
    %cst_38 = arith.constant dense<0.000000e+00> : vector<2x16xf32>
    %99 = vector.multi_reduction <add>, %98, %cst_38 [2] : vector<2x16x16xf32> to vector<2x16xf32>
    %100 = vector.shape_cast %99 : vector<2x16xf32> to vector<2x16x1xf32>
    %101 = tpu.reciprocal %100 {approx = true} : vector<2x16x1xf32> -> vector<2x16x1xf32>
    %102 = vector.broadcast %101 : vector<2x16x1xf32> to vector<2x16x16xf32>
    %103 = arith.mulf %98, %102 : vector<2x16x16xf32>
    %104 = arith.truncf %103 : vector<2x16x16xf32> to vector<2x16x16xbf16>
    "tpu.trace_start"() <{level = 10 : i32, message = "bqk,bkd->bqd"}> : () -> ()
    %cst_39 = arith.constant dense<0.000000e+00> : vector<2x16x32xf32>
    %105 = tpu.matmul %104, %88, %cst_39 {dimension_numbers = #tpu.dot_dimension_numbers<[2], [1], [1], [2], [0, 0, 0, 1, 1, 2], [0], [0]>} : vector<2x16x16xbf16>, vector<2x16x32xbf16>, vector<2x16x32xf32> -> vector<2x16x32xf32>
    "tpu.trace_stop"() : () -> ()
    %106 = vector.extract_strided_slice %59 {offsets = [0, 0, 64], sizes = [2, 16, 32], strides = [1, 1, 1]} : vector<2x16x384xf32> to vector<2x16x32xf32>
    %107 = arith.truncf %106 : vector<2x16x32xf32> to vector<2x16x32xbf16>
    %108 = vector.extract_strided_slice %59 {offsets = [0, 0, 192], sizes = [2, 16, 32], strides = [1, 1, 1]} : vector<2x16x384xf32> to vector<2x16x32xf32>
    %109 = arith.truncf %108 : vector<2x16x32xf32> to vector<2x16x32xbf16>
    %110 = vector.extract_strided_slice %59 {offsets = [0, 0, 320], sizes = [2, 16, 32], strides = [1, 1, 1]} : vector<2x16x384xf32> to vector<2x16x32xf32>
    %111 = arith.truncf %110 : vector<2x16x32xf32> to vector<2x16x32xbf16>
    "tpu.trace_start"() <{level = 10 : i32, message = "bqd,bkd->bqk"}> : () -> ()
    %cst_40 = arith.constant dense<0.000000e+00> : vector<2x16x16xf32>
    %112 = tpu.matmul %107, %109, %cst_40 {dimension_numbers = #tpu.dot_dimension_numbers<[2], [2], [1], [1], [0, 0, 0, 1, 1, 1], [0], [0]>} : vector<2x16x32xbf16>, vector<2x16x32xbf16>, vector<2x16x16xf32> -> vector<2x16x16xf32>
    "tpu.trace_stop"() : () -> ()
    %cst_41 = arith.constant 0.176776692 : f32
    %113 = vector.broadcast %cst_41 : f32 to vector<2x16x16xf32>
    %114 = arith.mulf %112, %113 : vector<2x16x16xf32>
    %115 = vector.broadcast %54 : vector<2x1x16xf32> to vector<2x16x16xf32>
    %116 = arith.addf %114, %115 : vector<2x16x16xf32>
    %cst_42 = arith.constant dense<0xFF800000> : vector<2x16xf32>
    %117 = vector.multi_reduction <maximumf>, %116, %cst_42 [2] : vector<2x16x16xf32> to vector<2x16xf32>
    %118 = vector.shape_cast %117 : vector<2x16xf32> to vector<2x16x1xf32>
    %119 = vector.broadcast %118 : vector<2x16x1xf32> to vector<2x16x16xf32>
    %120 = arith.subf %116, %119 : vector<2x16x16xf32>
    %121 = math.exp %120 : vector<2x16x16xf32>
    %cst_43 = arith.constant dense<0.000000e+00> : vector<2x16xf32>
    %122 = vector.multi_reduction <add>, %121, %cst_43 [2] : vector<2x16x16xf32> to vector<2x16xf32>
    %123 = vector.shape_cast %122 : vector<2x16xf32> to vector<2x16x1xf32>
    %124 = tpu.reciprocal %123 {approx = true} : vector<2x16x1xf32> -> vector<2x16x1xf32>
    %125 = vector.broadcast %124 : vector<2x16x1xf32> to vector<2x16x16xf32>
    %126 = arith.mulf %121, %125 : vector<2x16x16xf32>
    %127 = arith.truncf %126 : vector<2x16x16xf32> to vector<2x16x16xbf16>
    "tpu.trace_start"() <{level = 10 : i32, message = "bqk,bkd->bqd"}> : () -> ()
    %cst_44 = arith.constant dense<0.000000e+00> : vector<2x16x32xf32>
    %128 = tpu.matmul %127, %111, %cst_44 {dimension_numbers = #tpu.dot_dimension_numbers<[2], [1], [1], [2], [0, 0, 0, 1, 1, 2], [0], [0]>} : vector<2x16x16xbf16>, vector<2x16x32xbf16>, vector<2x16x32xf32> -> vector<2x16x32xf32>
    "tpu.trace_stop"() : () -> ()
    %129 = vector.extract_strided_slice %59 {offsets = [0, 0, 96], sizes = [2, 16, 32], strides = [1, 1, 1]} : vector<2x16x384xf32> to vector<2x16x32xf32>
    %130 = arith.truncf %129 : vector<2x16x32xf32> to vector<2x16x32xbf16>
    %131 = vector.extract_strided_slice %59 {offsets = [0, 0, 224], sizes = [2, 16, 32], strides = [1, 1, 1]} : vector<2x16x384xf32> to vector<2x16x32xf32>
    %132 = arith.truncf %131 : vector<2x16x32xf32> to vector<2x16x32xbf16>
    %133 = vector.extract_strided_slice %59 {offsets = [0, 0, 352], sizes = [2, 16, 32], strides = [1, 1, 1]} : vector<2x16x384xf32> to vector<2x16x32xf32>
    %134 = arith.truncf %133 : vector<2x16x32xf32> to vector<2x16x32xbf16>
    "tpu.trace_start"() <{level = 10 : i32, message = "bqd,bkd->bqk"}> : () -> ()
    %cst_45 = arith.constant dense<0.000000e+00> : vector<2x16x16xf32>
    %135 = tpu.matmul %130, %132, %cst_45 {dimension_numbers = #tpu.dot_dimension_numbers<[2], [2], [1], [1], [0, 0, 0, 1, 1, 1], [0], [0]>} : vector<2x16x32xbf16>, vector<2x16x32xbf16>, vector<2x16x16xf32> -> vector<2x16x16xf32>
    "tpu.trace_stop"() : () -> ()
    %cst_46 = arith.constant 0.176776692 : f32
    %136 = vector.broadcast %cst_46 : f32 to vector<2x16x16xf32>
    %137 = arith.mulf %135, %136 : vector<2x16x16xf32>
    %138 = vector.broadcast %54 : vector<2x1x16xf32> to vector<2x16x16xf32>
    %139 = arith.addf %137, %138 : vector<2x16x16xf32>
    %cst_47 = arith.constant dense<0xFF800000> : vector<2x16xf32>
    %140 = vector.multi_reduction <maximumf>, %139, %cst_47 [2] : vector<2x16x16xf32> to vector<2x16xf32>
    %141 = vector.shape_cast %140 : vector<2x16xf32> to vector<2x16x1xf32>
    %142 = vector.broadcast %141 : vector<2x16x1xf32> to vector<2x16x16xf32>
    %143 = arith.subf %139, %142 : vector<2x16x16xf32>
    %144 = math.exp %143 : vector<2x16x16xf32>
    %cst_48 = arith.constant dense<0.000000e+00> : vector<2x16xf32>
    %145 = vector.multi_reduction <add>, %144, %cst_48 [2] : vector<2x16x16xf32> to vector<2x16xf32>
    %146 = vector.shape_cast %145 : vector<2x16xf32> to vector<2x16x1xf32>
    %147 = tpu.reciprocal %146 {approx = true} : vector<2x16x1xf32> -> vector<2x16x1xf32>
    %148 = vector.broadcast %147 : vector<2x16x1xf32> to vector<2x16x16xf32>
    %149 = arith.mulf %144, %148 : vector<2x16x16xf32>
    %150 = arith.truncf %149 : vector<2x16x16xf32> to vector<2x16x16xbf16>
    "tpu.trace_start"() <{level = 10 : i32, message = "bqk,bkd->bqd"}> : () -> ()
    %cst_49 = arith.constant dense<0.000000e+00> : vector<2x16x32xf32>
    %151 = tpu.matmul %150, %134, %cst_49 {dimension_numbers = #tpu.dot_dimension_numbers<[2], [1], [1], [2], [0, 0, 0, 1, 1, 2], [0], [0]>} : vector<2x16x16xbf16>, vector<2x16x32xbf16>, vector<2x16x32xf32> -> vector<2x16x32xf32>
    "tpu.trace_stop"() : () -> ()
    %152 = tpu.concatenate %82, %105, %128, %151 in 2 : vector<2x16x32xf32>, vector<2x16x32xf32>, vector<2x16x32xf32>, vector<2x16x32xf32> -> vector<2x16x128xf32>
    %153 = vector.shape_cast %152 : vector<2x16x128xf32> to vector<32x128xf32>
    %154 = arith.truncf %153 : vector<32x128xf32> to vector<32x128xbf16>
    %cst_50 = arith.constant dense<0.000000e+00> : vector<32x128xf32>
    %155 = tpu.matmul %154, %12, %cst_50 {dimension_numbers = #tpu.dot_dimension_numbers<[1], [0], [0], [1], [0, 0, 1, 1], [], []>} : vector<32x128xbf16>, vector<128x128xbf16>, vector<32x128xf32> -> vector<32x128xf32>
    %156 = vector.broadcast %3 : vector<1x128xf32> to vector<32x128xf32>
    %157 = arith.addf %155, %156 : vector<32x128xf32>
    %158 = arith.addf %49, %157 : vector<32x128xf32>
    %cst_51 = arith.constant dense<0.000000e+00> : vector<32xf32>
    %159 = vector.multi_reduction <add>, %158, %cst_51 [1] : vector<32x128xf32> to vector<32xf32>
    %160 = vector.shape_cast %159 : vector<32xf32> to vector<32x1xf32>
    %cst_52 = arith.constant 1.280000e+02 : f32
    %161 = vector.broadcast %cst_52 : f32 to vector<32x1xf32>
    %162 = arith.divf %160, %161 : vector<32x1xf32>
    %163 = vector.broadcast %162 : vector<32x1xf32> to vector<32x128xf32>
    %164 = arith.subf %158, %163 : vector<32x128xf32>
    %165 = arith.mulf %164, %164 : vector<32x128xf32>
    %cst_53 = arith.constant dense<0.000000e+00> : vector<32xf32>
    %166 = vector.multi_reduction <add>, %165, %cst_53 [1] : vector<32x128xf32> to vector<32xf32>
    %167 = vector.shape_cast %166 : vector<32xf32> to vector<32x1xf32>
    %cst_54 = arith.constant 1.280000e+02 : f32
    %168 = vector.broadcast %cst_54 : f32 to vector<32x1xf32>
    %169 = arith.divf %167, %168 : vector<32x1xf32>
    %170 = vector.broadcast %162 : vector<32x1xf32> to vector<32x128xf32>
    %171 = arith.subf %158, %170 : vector<32x128xf32>
    %cst_55 = arith.constant 9.99999974E-6 : f32
    %172 = vector.broadcast %cst_55 : f32 to vector<32x1xf32>
    %173 = arith.addf %169, %172 : vector<32x1xf32>
    %174 = math.rsqrt %173 : vector<32x1xf32>
    %175 = vector.broadcast %174 : vector<32x1xf32> to vector<32x128xf32>
    %176 = arith.mulf %171, %175 : vector<32x128xf32>
    %177 = vector.broadcast %5 : vector<1x128xf32> to vector<32x128xf32>
    %178 = arith.mulf %176, %177 : vector<32x128xf32>
    %179 = vector.broadcast %6 : vector<1x128xf32> to vector<32x128xf32>
    %180 = arith.addf %178, %179 : vector<32x128xf32>
    %181 = arith.truncf %180 : vector<32x128xf32> to vector<32x128xbf16>
    %cst_56 = arith.constant dense<0.000000e+00> : vector<32x512xf32>
    %182 = tpu.matmul %181, %13, %cst_56 {dimension_numbers = #tpu.dot_dimension_numbers<[1], [0], [0], [1], [0, 0, 1, 1], [], []>} : vector<32x128xbf16>, vector<128x512xbf16>, vector<32x512xf32> -> vector<32x512xf32>
    %183 = vector.broadcast %14 : vector<1x512xf32> to vector<32x512xf32>
    %184 = arith.addf %182, %183 : vector<32x512xf32>
    %185 = arith.mulf %184, %184 : vector<32x512xf32>
    %186 = arith.mulf %184, %185 : vector<32x512xf32>
    %cst_57 = arith.constant 4.471500e-02 : f32
    %187 = vector.broadcast %cst_57 : f32 to vector<32x512xf32>
    %188 = arith.mulf %187, %186 : vector<32x512xf32>
    %189 = arith.addf %184, %188 : vector<32x512xf32>
    %cst_58 = arith.constant 0.797884583 : f32
    %190 = vector.broadcast %cst_58 : f32 to vector<32x512xf32>
    %191 = arith.mulf %190, %189 : vector<32x512xf32>
    %192 = math.tanh %191 : vector<32x512xf32>
    %cst_59 = arith.constant 1.000000e+00 : f32
    %193 = vector.broadcast %cst_59 : f32 to vector<32x512xf32>
    %194 = arith.addf %193, %192 : vector<32x512xf32>
    %cst_60 = arith.constant 5.000000e-01 : f32
    %195 = vector.broadcast %cst_60 : f32 to vector<32x512xf32>
    %196 = arith.mulf %195, %194 : vector<32x512xf32>
    %197 = arith.mulf %184, %196 : vector<32x512xf32>
    %198 = arith.truncf %197 : vector<32x512xf32> to vector<32x512xbf16>
    %cst_61 = arith.constant dense<0.000000e+00> : vector<32x128xf32>
    %199 = tpu.matmul %198, %15, %cst_61 {dimension_numbers = #tpu.dot_dimension_numbers<[1], [0], [0], [1], [0, 0, 1, 1], [], []>} : vector<32x512xbf16>, vector<512x128xbf16>, vector<32x128xf32> -> vector<32x128xf32>
    %200 = vector.broadcast %4 : vector<1x128xf32> to vector<32x128xf32>
    %201 = arith.addf %199, %200 : vector<32x128xf32>
    %202 = arith.addf %180, %201 : vector<32x128xf32>
    %cst_62 = arith.constant dense<0.000000e+00> : vector<32xf32>
    %203 = vector.multi_reduction <add>, %202, %cst_62 [1] : vector<32x128xf32> to vector<32xf32>
    %204 = vector.shape_cast %203 : vector<32xf32> to vector<32x1xf32>
    %cst_63 = arith.constant 1.280000e+02 : f32
    %205 = vector.broadcast %cst_63 : f32 to vector<32x1xf32>
    %206 = arith.divf %204, %205 : vector<32x1xf32>
    %207 = vector.broadcast %206 : vector<32x1xf32> to vector<32x128xf32>
    %208 = arith.subf %202, %207 : vector<32x128xf32>
    %209 = arith.mulf %208, %208 : vector<32x128xf32>
    %cst_64 = arith.constant dense<0.000000e+00> : vector<32xf32>
    %210 = vector.multi_reduction <add>, %209, %cst_64 [1] : vector<32x128xf32> to vector<32xf32>
    %211 = vector.shape_cast %210 : vector<32xf32> to vector<32x1xf32>
    %cst_65 = arith.constant 1.280000e+02 : f32
    %212 = vector.broadcast %cst_65 : f32 to vector<32x1xf32>
    %213 = arith.divf %211, %212 : vector<32x1xf32>
    %214 = vector.broadcast %206 : vector<32x1xf32> to vector<32x128xf32>
    %215 = arith.subf %202, %214 : vector<32x128xf32>
    %cst_66 = arith.constant 9.99999974E-6 : f32
    %216 = vector.broadcast %cst_66 : f32 to vector<32x1xf32>
    %217 = arith.addf %213, %216 : vector<32x1xf32>
    %218 = math.rsqrt %217 : vector<32x1xf32>
    %219 = vector.broadcast %218 : vector<32x1xf32> to vector<32x128xf32>
    %220 = arith.mulf %215, %219 : vector<32x128xf32>
    %221 = vector.broadcast %7 : vector<1x128xf32> to vector<32x128xf32>
    %222 = arith.mulf %220, %221 : vector<32x128xf32>
    %223 = vector.broadcast %8 : vector<1x128xf32> to vector<32x128xf32>
    %224 = arith.addf %222, %223 : vector<32x128xf32>
    %225 = arith.truncf %224 : vector<32x128xf32> to vector<32x128xbf16>
    %cst_67 = arith.constant dense<0.000000e+00> : vector<32x384xf32>
    %226 = tpu.matmul %225, %10, %cst_67 {dimension_numbers = #tpu.dot_dimension_numbers<[1], [0], [0], [1], [0, 0, 1, 1], [], []>} : vector<32x128xbf16>, vector<128x384xbf16>, vector<32x384xf32> -> vector<32x384xf32>
    %227 = vector.broadcast %11 : vector<1x384xf32> to vector<32x384xf32>
    %228 = arith.addf %226, %227 : vector<32x384xf32>
    %229 = vector.shape_cast %228 : vector<32x384xf32> to vector<2x16x384xf32>
    %230 = vector.extract_strided_slice %229 {offsets = [0, 0, 0], sizes = [2, 16, 32], strides = [1, 1, 1]} : vector<2x16x384xf32> to vector<2x16x32xf32>
    %231 = arith.truncf %230 : vector<2x16x32xf32> to vector<2x16x32xbf16>
    %232 = vector.extract_strided_slice %229 {offsets = [0, 0, 128], sizes = [2, 16, 32], strides = [1, 1, 1]} : vector<2x16x384xf32> to vector<2x16x32xf32>
    %233 = arith.truncf %232 : vector<2x16x32xf32> to vector<2x16x32xbf16>
    %234 = vector.extract_strided_slice %229 {offsets = [0, 0, 256], sizes = [2, 16, 32], strides = [1, 1, 1]} : vector<2x16x384xf32> to vector<2x16x32xf32>
    %235 = arith.truncf %234 : vector<2x16x32xf32> to vector<2x16x32xbf16>
    "tpu.trace_start"() <{level = 10 : i32, message = "bqd,bkd->bqk"}> : () -> ()
    %cst_68 = arith.constant dense<0.000000e+00> : vector<2x16x16xf32>
    %236 = tpu.matmul %231, %233, %cst_68 {dimension_numbers = #tpu.dot_dimension_numbers<[2], [2], [1], [1], [0, 0, 0, 1, 1, 1], [0], [0]>} : vector<2x16x32xbf16>, vector<2x16x32xbf16>, vector<2x16x16xf32> -> vector<2x16x16xf32>
    "tpu.trace_stop"() : () -> ()
    %cst_69 = arith.constant 0.176776692 : f32
    %237 = vector.broadcast %cst_69 : f32 to vector<2x16x16xf32>
    %238 = arith.mulf %236, %237 : vector<2x16x16xf32>
    %239 = vector.broadcast %54 : vector<2x1x16xf32> to vector<2x16x16xf32>
    %240 = arith.addf %238, %239 : vector<2x16x16xf32>
    %cst_70 = arith.constant dense<0xFF800000> : vector<2x16xf32>
    %241 = vector.multi_reduction <maximumf>, %240, %cst_70 [2] : vector<2x16x16xf32> to vector<2x16xf32>
    %242 = vector.shape_cast %241 : vector<2x16xf32> to vector<2x16x1xf32>
    %243 = vector.broadcast %242 : vector<2x16x1xf32> to vector<2x16x16xf32>
    %244 = arith.subf %240, %243 : vector<2x16x16xf32>
    %245 = math.exp %244 : vector<2x16x16xf32>
    %cst_71 = arith.constant dense<0.000000e+00> : vector<2x16xf32>
    %246 = vector.multi_reduction <add>, %245, %cst_71 [2] : vector<2x16x16xf32> to vector<2x16xf32>
    %247 = vector.shape_cast %246 : vector<2x16xf32> to vector<2x16x1xf32>
    %248 = tpu.reciprocal %247 {approx = true} : vector<2x16x1xf32> -> vector<2x16x1xf32>
    %249 = vector.broadcast %248 : vector<2x16x1xf32> to vector<2x16x16xf32>
    %250 = arith.mulf %245, %249 : vector<2x16x16xf32>
    %251 = arith.truncf %250 : vector<2x16x16xf32> to vector<2x16x16xbf16>
    "tpu.trace_start"() <{level = 10 : i32, message = "bqk,bkd->bqd"}> : () -> ()
    %cst_72 = arith.constant dense<0.000000e+00> : vector<2x16x32xf32>
    %252 = tpu.matmul %251, %235, %cst_72 {dimension_numbers = #tpu.dot_dimension_numbers<[2], [1], [1], [2], [0, 0, 0, 1, 1, 2], [0], [0]>} : vector<2x16x16xbf16>, vector<2x16x32xbf16>, vector<2x16x32xf32> -> vector<2x16x32xf32>
    "tpu.trace_stop"() : () -> ()
    %253 = vector.extract_strided_slice %229 {offsets = [0, 0, 32], sizes = [2, 16, 32], strides = [1, 1, 1]} : vector<2x16x384xf32> to vector<2x16x32xf32>
    %254 = arith.truncf %253 : vector<2x16x32xf32> to vector<2x16x32xbf16>
    %255 = vector.extract_strided_slice %229 {offsets = [0, 0, 160], sizes = [2, 16, 32], strides = [1, 1, 1]} : vector<2x16x384xf32> to vector<2x16x32xf32>
    %256 = arith.truncf %255 : vector<2x16x32xf32> to vector<2x16x32xbf16>
    %257 = vector.extract_strided_slice %229 {offsets = [0, 0, 288], sizes = [2, 16, 32], strides = [1, 1, 1]} : vector<2x16x384xf32> to vector<2x16x32xf32>
    %258 = arith.truncf %257 : vector<2x16x32xf32> to vector<2x16x32xbf16>
    "tpu.trace_start"() <{level = 10 : i32, message = "bqd,bkd->bqk"}> : () -> ()
    %cst_73 = arith.constant dense<0.000000e+00> : vector<2x16x16xf32>
    %259 = tpu.matmul %254, %256, %cst_73 {dimension_numbers = #tpu.dot_dimension_numbers<[2], [2], [1], [1], [0, 0, 0, 1, 1, 1], [0], [0]>} : vector<2x16x32xbf16>, vector<2x16x32xbf16>, vector<2x16x16xf32> -> vector<2x16x16xf32>
    "tpu.trace_stop"() : () -> ()
    %cst_74 = arith.constant 0.176776692 : f32
    %260 = vector.broadcast %cst_74 : f32 to vector<2x16x16xf32>
    %261 = arith.mulf %259, %260 : vector<2x16x16xf32>
    %262 = vector.broadcast %54 : vector<2x1x16xf32> to vector<2x16x16xf32>
    %263 = arith.addf %261, %262 : vector<2x16x16xf32>
    %cst_75 = arith.constant dense<0xFF800000> : vector<2x16xf32>
    %264 = vector.multi_reduction <maximumf>, %263, %cst_75 [2] : vector<2x16x16xf32> to vector<2x16xf32>
    %265 = vector.shape_cast %264 : vector<2x16xf32> to vector<2x16x1xf32>
    %266 = vector.broadcast %265 : vector<2x16x1xf32> to vector<2x16x16xf32>
    %267 = arith.subf %263, %266 : vector<2x16x16xf32>
    %268 = math.exp %267 : vector<2x16x16xf32>
    %cst_76 = arith.constant dense<0.000000e+00> : vector<2x16xf32>
    %269 = vector.multi_reduction <add>, %268, %cst_76 [2] : vector<2x16x16xf32> to vector<2x16xf32>
    %270 = vector.shape_cast %269 : vector<2x16xf32> to vector<2x16x1xf32>
    %271 = tpu.reciprocal %270 {approx = true} : vector<2x16x1xf32> -> vector<2x16x1xf32>
    %272 = vector.broadcast %271 : vector<2x16x1xf32> to vector<2x16x16xf32>
    %273 = arith.mulf %268, %272 : vector<2x16x16xf32>
    %274 = arith.truncf %273 : vector<2x16x16xf32> to vector<2x16x16xbf16>
    "tpu.trace_start"() <{level = 10 : i32, message = "bqk,bkd->bqd"}> : () -> ()
    %cst_77 = arith.constant dense<0.000000e+00> : vector<2x16x32xf32>
    %275 = tpu.matmul %274, %258, %cst_77 {dimension_numbers = #tpu.dot_dimension_numbers<[2], [1], [1], [2], [0, 0, 0, 1, 1, 2], [0], [0]>} : vector<2x16x16xbf16>, vector<2x16x32xbf16>, vector<2x16x32xf32> -> vector<2x16x32xf32>
    "tpu.trace_stop"() : () -> ()
    %276 = vector.extract_strided_slice %229 {offsets = [0, 0, 64], sizes = [2, 16, 32], strides = [1, 1, 1]} : vector<2x16x384xf32> to vector<2x16x32xf32>
    %277 = arith.truncf %276 : vector<2x16x32xf32> to vector<2x16x32xbf16>
    %278 = vector.extract_strided_slice %229 {offsets = [0, 0, 192], sizes = [2, 16, 32], strides = [1, 1, 1]} : vector<2x16x384xf32> to vector<2x16x32xf32>
    %279 = arith.truncf %278 : vector<2x16x32xf32> to vector<2x16x32xbf16>
    %280 = vector.extract_strided_slice %229 {offsets = [0, 0, 320], sizes = [2, 16, 32], strides = [1, 1, 1]} : vector<2x16x384xf32> to vector<2x16x32xf32>
    %281 = arith.truncf %280 : vector<2x16x32xf32> to vector<2x16x32xbf16>
    "tpu.trace_start"() <{level = 10 : i32, message = "bqd,bkd->bqk"}> : () -> ()
    %cst_78 = arith.constant dense<0.000000e+00> : vector<2x16x16xf32>
    %282 = tpu.matmul %277, %279, %cst_78 {dimension_numbers = #tpu.dot_dimension_numbers<[2], [2], [1], [1], [0, 0, 0, 1, 1, 1], [0], [0]>} : vector<2x16x32xbf16>, vector<2x16x32xbf16>, vector<2x16x16xf32> -> vector<2x16x16xf32>
    "tpu.trace_stop"() : () -> ()
    %cst_79 = arith.constant 0.176776692 : f32
    %283 = vector.broadcast %cst_79 : f32 to vector<2x16x16xf32>
    %284 = arith.mulf %282, %283 : vector<2x16x16xf32>
    %285 = vector.broadcast %54 : vector<2x1x16xf32> to vector<2x16x16xf32>
    %286 = arith.addf %284, %285 : vector<2x16x16xf32>
    %cst_80 = arith.constant dense<0xFF800000> : vector<2x16xf32>
    %287 = vector.multi_reduction <maximumf>, %286, %cst_80 [2] : vector<2x16x16xf32> to vector<2x16xf32>
    %288 = vector.shape_cast %287 : vector<2x16xf32> to vector<2x16x1xf32>
    %289 = vector.broadcast %288 : vector<2x16x1xf32> to vector<2x16x16xf32>
    %290 = arith.subf %286, %289 : vector<2x16x16xf32>
    %291 = math.exp %290 : vector<2x16x16xf32>
    %cst_81 = arith.constant dense<0.000000e+00> : vector<2x16xf32>
    %292 = vector.multi_reduction <add>, %291, %cst_81 [2] : vector<2x16x16xf32> to vector<2x16xf32>
    %293 = vector.shape_cast %292 : vector<2x16xf32> to vector<2x16x1xf32>
    %294 = tpu.reciprocal %293 {approx = true} : vector<2x16x1xf32> -> vector<2x16x1xf32>
    %295 = vector.broadcast %294 : vector<2x16x1xf32> to vector<2x16x16xf32>
    %296 = arith.mulf %291, %295 : vector<2x16x16xf32>
    %297 = arith.truncf %296 : vector<2x16x16xf32> to vector<2x16x16xbf16>
    "tpu.trace_start"() <{level = 10 : i32, message = "bqk,bkd->bqd"}> : () -> ()
    %cst_82 = arith.constant dense<0.000000e+00> : vector<2x16x32xf32>
    %298 = tpu.matmul %297, %281, %cst_82 {dimension_numbers = #tpu.dot_dimension_numbers<[2], [1], [1], [2], [0, 0, 0, 1, 1, 2], [0], [0]>} : vector<2x16x16xbf16>, vector<2x16x32xbf16>, vector<2x16x32xf32> -> vector<2x16x32xf32>
    "tpu.trace_stop"() : () -> ()
    %299 = vector.extract_strided_slice %229 {offsets = [0, 0, 96], sizes = [2, 16, 32], strides = [1, 1, 1]} : vector<2x16x384xf32> to vector<2x16x32xf32>
    %300 = arith.truncf %299 : vector<2x16x32xf32> to vector<2x16x32xbf16>
    %301 = vector.extract_strided_slice %229 {offsets = [0, 0, 224], sizes = [2, 16, 32], strides = [1, 1, 1]} : vector<2x16x384xf32> to vector<2x16x32xf32>
    %302 = arith.truncf %301 : vector<2x16x32xf32> to vector<2x16x32xbf16>
    %303 = vector.extract_strided_slice %229 {offsets = [0, 0, 352], sizes = [2, 16, 32], strides = [1, 1, 1]} : vector<2x16x384xf32> to vector<2x16x32xf32>
    %304 = arith.truncf %303 : vector<2x16x32xf32> to vector<2x16x32xbf16>
    "tpu.trace_start"() <{level = 10 : i32, message = "bqd,bkd->bqk"}> : () -> ()
    %cst_83 = arith.constant dense<0.000000e+00> : vector<2x16x16xf32>
    %305 = tpu.matmul %300, %302, %cst_83 {dimension_numbers = #tpu.dot_dimension_numbers<[2], [2], [1], [1], [0, 0, 0, 1, 1, 1], [0], [0]>} : vector<2x16x32xbf16>, vector<2x16x32xbf16>, vector<2x16x16xf32> -> vector<2x16x16xf32>
    "tpu.trace_stop"() : () -> ()
    %cst_84 = arith.constant 0.176776692 : f32
    %306 = vector.broadcast %cst_84 : f32 to vector<2x16x16xf32>
    %307 = arith.mulf %305, %306 : vector<2x16x16xf32>
    %308 = vector.broadcast %54 : vector<2x1x16xf32> to vector<2x16x16xf32>
    %309 = arith.addf %307, %308 : vector<2x16x16xf32>
    %cst_85 = arith.constant dense<0xFF800000> : vector<2x16xf32>
    %310 = vector.multi_reduction <maximumf>, %309, %cst_85 [2] : vector<2x16x16xf32> to vector<2x16xf32>
    %311 = vector.shape_cast %310 : vector<2x16xf32> to vector<2x16x1xf32>
    %312 = vector.broadcast %311 : vector<2x16x1xf32> to vector<2x16x16xf32>
    %313 = arith.subf %309, %312 : vector<2x16x16xf32>
    %314 = math.exp %313 : vector<2x16x16xf32>
    %cst_86 = arith.constant dense<0.000000e+00> : vector<2x16xf32>
    %315 = vector.multi_reduction <add>, %314, %cst_86 [2] : vector<2x16x16xf32> to vector<2x16xf32>
    %316 = vector.shape_cast %315 : vector<2x16xf32> to vector<2x16x1xf32>
    %317 = tpu.reciprocal %316 {approx = true} : vector<2x16x1xf32> -> vector<2x16x1xf32>
    %318 = vector.broadcast %317 : vector<2x16x1xf32> to vector<2x16x16xf32>
    %319 = arith.mulf %314, %318 : vector<2x16x16xf32>
    %320 = arith.truncf %319 : vector<2x16x16xf32> to vector<2x16x16xbf16>
    "tpu.trace_start"() <{level = 10 : i32, message = "bqk,bkd->bqd"}> : () -> ()
    %cst_87 = arith.constant dense<0.000000e+00> : vector<2x16x32xf32>
    %321 = tpu.matmul %320, %304, %cst_87 {dimension_numbers = #tpu.dot_dimension_numbers<[2], [1], [1], [2], [0, 0, 0, 1, 1, 2], [0], [0]>} : vector<2x16x16xbf16>, vector<2x16x32xbf16>, vector<2x16x32xf32> -> vector<2x16x32xf32>
    "tpu.trace_stop"() : () -> ()
    %322 = tpu.concatenate %252, %275, %298, %321 in 2 : vector<2x16x32xf32>, vector<2x16x32xf32>, vector<2x16x32xf32>, vector<2x16x32xf32> -> vector<2x16x128xf32>
    %323 = vector.shape_cast %322 : vector<2x16x128xf32> to vector<32x128xf32>
    %324 = arith.truncf %323 : vector<32x128xf32> to vector<32x128xbf16>
    %cst_88 = arith.constant dense<0.000000e+00> : vector<32x128xf32>
    %325 = tpu.matmul %324, %12, %cst_88 {dimension_numbers = #tpu.dot_dimension_numbers<[1], [0], [0], [1], [0, 0, 1, 1], [], []>} : vector<32x128xbf16>, vector<128x128xbf16>, vector<32x128xf32> -> vector<32x128xf32>
    %326 = vector.broadcast %3 : vector<1x128xf32> to vector<32x128xf32>
    %327 = arith.addf %325, %326 : vector<32x128xf32>
    %328 = arith.addf %224, %327 : vector<32x128xf32>
    %cst_89 = arith.constant dense<0.000000e+00> : vector<32xf32>
    %329 = vector.multi_reduction <add>, %328, %cst_89 [1] : vector<32x128xf32> to vector<32xf32>
    %330 = vector.shape_cast %329 : vector<32xf32> to vector<32x1xf32>
    %cst_90 = arith.constant 1.280000e+02 : f32
    %331 = vector.broadcast %cst_90 : f32 to vector<32x1xf32>
    %332 = arith.divf %330, %331 : vector<32x1xf32>
    %333 = vector.broadcast %332 : vector<32x1xf32> to vector<32x128xf32>
    %334 = arith.subf %328, %333 : vector<32x128xf32>
    %335 = arith.mulf %334, %334 : vector<32x128xf32>
    %cst_91 = arith.constant dense<0.000000e+00> : vector<32xf32>
    %336 = vector.multi_reduction <add>, %335, %cst_91 [1] : vector<32x128xf32> to vector<32xf32>
    %337 = vector.shape_cast %336 : vector<32xf32> to vector<32x1xf32>
    %cst_92 = arith.constant 1.280000e+02 : f32
    %338 = vector.broadcast %cst_92 : f32 to vector<32x1xf32>
    %339 = arith.divf %337, %338 : vector<32x1xf32>
    %340 = vector.broadcast %332 : vector<32x1xf32> to vector<32x128xf32>
    %341 = arith.subf %328, %340 : vector<32x128xf32>
    %cst_93 = arith.constant 9.99999974E-6 : f32
    %342 = vector.broadcast %cst_93 : f32 to vector<32x1xf32>
    %343 = arith.addf %339, %342 : vector<32x1xf32>
    %344 = math.rsqrt %343 : vector<32x1xf32>
    %345 = vector.broadcast %344 : vector<32x1xf32> to vector<32x128xf32>
    %346 = arith.mulf %341, %345 : vector<32x128xf32>
    %347 = vector.broadcast %5 : vector<1x128xf32> to vector<32x128xf32>
    %348 = arith.mulf %346, %347 : vector<32x128xf32>
    %349 = vector.broadcast %6 : vector<1x128xf32> to vector<32x128xf32>
    %350 = arith.addf %348, %349 : vector<32x128xf32>
    %351 = arith.truncf %350 : vector<32x128xf32> to vector<32x128xbf16>
    %cst_94 = arith.constant dense<0.000000e+00> : vector<32x512xf32>
    %352 = tpu.matmul %351, %13, %cst_94 {dimension_numbers = #tpu.dot_dimension_numbers<[1], [0], [0], [1], [0, 0, 1, 1], [], []>} : vector<32x128xbf16>, vector<128x512xbf16>, vector<32x512xf32> -> vector<32x512xf32>
    %353 = vector.broadcast %14 : vector<1x512xf32> to vector<32x512xf32>
    %354 = arith.addf %352, %353 : vector<32x512xf32>
    %355 = arith.mulf %354, %354 : vector<32x512xf32>
    %356 = arith.mulf %354, %355 : vector<32x512xf32>
    %cst_95 = arith.constant 4.471500e-02 : f32
    %357 = vector.broadcast %cst_95 : f32 to vector<32x512xf32>
    %358 = arith.mulf %357, %356 : vector<32x512xf32>
    %359 = arith.addf %354, %358 : vector<32x512xf32>
    %cst_96 = arith.constant 0.797884583 : f32
    %360 = vector.broadcast %cst_96 : f32 to vector<32x512xf32>
    %361 = arith.mulf %360, %359 : vector<32x512xf32>
    %362 = math.tanh %361 : vector<32x512xf32>
    %cst_97 = arith.constant 1.000000e+00 : f32
    %363 = vector.broadcast %cst_97 : f32 to vector<32x512xf32>
    %364 = arith.addf %363, %362 : vector<32x512xf32>
    %cst_98 = arith.constant 5.000000e-01 : f32
    %365 = vector.broadcast %cst_98 : f32 to vector<32x512xf32>
    %366 = arith.mulf %365, %364 : vector<32x512xf32>
    %367 = arith.mulf %354, %366 : vector<32x512xf32>
    %368 = arith.truncf %367 : vector<32x512xf32> to vector<32x512xbf16>
    %cst_99 = arith.constant dense<0.000000e+00> : vector<32x128xf32>
    %369 = tpu.matmul %368, %15, %cst_99 {dimension_numbers = #tpu.dot_dimension_numbers<[1], [0], [0], [1], [0, 0, 1, 1], [], []>} : vector<32x512xbf16>, vector<512x128xbf16>, vector<32x128xf32> -> vector<32x128xf32>
    %370 = vector.broadcast %4 : vector<1x128xf32> to vector<32x128xf32>
    %371 = arith.addf %369, %370 : vector<32x128xf32>
    %372 = arith.addf %350, %371 : vector<32x128xf32>
    %cst_100 = arith.constant dense<0.000000e+00> : vector<32xf32>
    %373 = vector.multi_reduction <add>, %372, %cst_100 [1] : vector<32x128xf32> to vector<32xf32>
    %374 = vector.shape_cast %373 : vector<32xf32> to vector<32x1xf32>
    %cst_101 = arith.constant 1.280000e+02 : f32
    %375 = vector.broadcast %cst_101 : f32 to vector<32x1xf32>
    %376 = arith.divf %374, %375 : vector<32x1xf32>
    %377 = vector.broadcast %376 : vector<32x1xf32> to vector<32x128xf32>
    %378 = arith.subf %372, %377 : vector<32x128xf32>
    %379 = arith.mulf %378, %378 : vector<32x128xf32>
    %cst_102 = arith.constant dense<0.000000e+00> : vector<32xf32>
    %380 = vector.multi_reduction <add>, %379, %cst_102 [1] : vector<32x128xf32> to vector<32xf32>
    %381 = vector.shape_cast %380 : vector<32xf32> to vector<32x1xf32>
    %cst_103 = arith.constant 1.280000e+02 : f32
    %382 = vector.broadcast %cst_103 : f32 to vector<32x1xf32>
    %383 = arith.divf %381, %382 : vector<32x1xf32>
    %384 = vector.broadcast %376 : vector<32x1xf32> to vector<32x128xf32>
    %385 = arith.subf %372, %384 : vector<32x128xf32>
    %cst_104 = arith.constant 9.99999974E-6 : f32
    %386 = vector.broadcast %cst_104 : f32 to vector<32x1xf32>
    %387 = arith.addf %383, %386 : vector<32x1xf32>
    %388 = math.rsqrt %387 : vector<32x1xf32>
    %389 = vector.broadcast %388 : vector<32x1xf32> to vector<32x128xf32>
    %390 = arith.mulf %385, %389 : vector<32x128xf32>
    %391 = vector.broadcast %7 : vector<1x128xf32> to vector<32x128xf32>
    %392 = arith.mulf %390, %391 : vector<32x128xf32>
    %393 = vector.broadcast %8 : vector<1x128xf32> to vector<32x128xf32>
    %394 = arith.addf %392, %393 : vector<32x128xf32>
    %395 = vector.shape_cast %394 : vector<32x128xf32> to vector<2x16x128xf32>
    %396 = vector.extract_strided_slice %395 {offsets = [0, 0, 0], sizes = [2, 1, 128], strides = [1, 1, 1]} : vector<2x16x128xf32> to vector<2x1x128xf32>
    %397 = vector.extract_strided_slice %396 {offsets = [0, 0, 0], sizes = [1, 1, 128], strides = [1, 1, 1]} : vector<2x1x128xf32> to vector<1x1x128xf32>
    %398 = vector.shape_cast %397 : vector<1x1x128xf32> to vector<1x128xf32>
    %399 = arith.truncf %398 : vector<1x128xf32> to vector<1x128xbf16>
    %c0_105 = arith.constant 0 : index
    %c0_106 = arith.constant 0 : index
    %400 = vector.load %arg11[%c0_105, %c0_106] : memref<128x128xbf16, #tpu.memory_space<vmem>>, vector<128x128xbf16>
    %cst_107 = arith.constant dense<0.000000e+00> : vector<1x128xf32>
    %401 = tpu.matmul %399, %400, %cst_107 {dimension_numbers = #tpu.dot_dimension_numbers<[1], [0], [0], [1], [0, 0, 1, 1], [], []>} : vector<1x128xbf16>, vector<128x128xbf16>, vector<1x128xf32> -> vector<1x128xf32>
    %402 = arith.addf %401, %9 : vector<1x128xf32>
    %403 = math.tanh %402 : vector<1x128xf32>
    %c0_108 = arith.constant 0 : index
    %c0_109 = arith.constant 0 : index
    %c0_110 = arith.constant 0 : index
    %404 = vector.load %arg13[%c0_108, %c0_109, %c0_110] : memref<2x1x128xf32, #tpu.memory_space<vmem>>, vector<1x1x128xf32>
    %405 = vector.shape_cast %404 : vector<1x1x128xf32> to vector<1x128xf32>
    %406 = vector.shape_cast %403 : vector<1x128xf32> to vector<1x1x128xf32>
    tpu.vector_store %arg13[%c0_108, %c0_109, %c0_110], %406 {strides = array<i32>} : memref<2x1x128xf32, #tpu.memory_space<vmem>>, vector<1x1x128xf32>,
    %407 = vector.extract_strided_slice %396 {offsets = [1, 0, 0], sizes = [1, 1, 128], strides = [1, 1, 1]} : vector<2x1x128xf32> to vector<1x1x128xf32>
    %408 = vector.shape_cast %407 : vector<1x1x128xf32> to vector<1x128xf32>
    %409 = arith.truncf %408 : vector<1x128xf32> to vector<1x128xbf16>
    %c0_111 = arith.constant 0 : index
    %c0_112 = arith.constant 0 : index
    %410 = vector.load %arg11[%c0_111, %c0_112] : memref<128x128xbf16, #tpu.memory_space<vmem>>, vector<128x128xbf16>
    %cst_113 = arith.constant dense<0.000000e+00> : vector<1x128xf32>
    %411 = tpu.matmul %409, %410, %cst_113 {dimension_numbers = #tpu.dot_dimension_numbers<[1], [0], [0], [1], [0, 0, 1, 1], [], []>} : vector<1x128xbf16>, vector<128x128xbf16>, vector<1x128xf32> -> vector<1x128xf32>
    %412 = arith.addf %411, %9 : vector<1x128xf32>
    %413 = math.tanh %412 : vector<1x128xf32>
    %c1 = arith.constant 1 : index
    %c0_114 = arith.constant 0 : index
    %c0_115 = arith.constant 0 : index
    %414 = vector.load %arg13[%c1, %c0_114, %c0_115] : memref<2x1x128xf32, #tpu.memory_space<vmem>>, vector<1x1x128xf32>
    %415 = vector.shape_cast %414 : vector<1x1x128xf32> to vector<1x128xf32>
    %416 = vector.shape_cast %413 : vector<1x128xf32> to vector<1x1x128xf32>
    tpu.vector_store %arg13[%c1, %c0_114, %c0_115], %416 {strides = array<i32>} : memref<2x1x128xf32, #tpu.memory_space<vmem>>, vector<1x1x128xf32>,
    return
  }
  func.func @transform_0(%arg0: i32) -> (i32, i32) {
    %c0_i32 = arith.constant 0 : i32
    %c0_i32_0 = arith.constant 0 : i32
    return %arg0, %c0_i32 : i32, i32
  }
  func.func @transform_1(%arg0: i32) -> (i32, i32, i32) {
    %c0_i32 = arith.constant 0 : i32
    %c0_i32_0 = arith.constant 0 : i32
    %c0_i32_1 = arith.constant 0 : i32
    return %arg0, %c0_i32, %c0_i32_0 : i32, i32, i32
  }
  func.func @transform_2(%arg0: i32) -> (i32, i32) {
    %c0_i32 = arith.constant 0 : i32
    %c0_i32_0 = arith.constant 0 : i32
    %c0_i32_1 = arith.constant 0 : i32
    return %c0_i32, %c0_i32_0 : i32, i32
  }
  func.func @transform_3(%arg0: i32) -> (i32, i32) {
    %c0_i32 = arith.constant 0 : i32
    %c0_i32_0 = arith.constant 0 : i32
    return %arg0, %c0_i32 : i32, i32
  }
  func.func @transform_4(%arg0: i32) -> (i32, i32) {
    %c0_i32 = arith.constant 0 : i32
    %c0_i32_0 = arith.constant 0 : i32
    %c0_i32_1 = arith.constant 0 : i32
    return %c0_i32, %c0_i32_0 : i32, i32
  }
  func.func @transform_5(%arg0: i32) -> (i32, i32) {
    %c0_i32 = arith.constant 0 : i32
    %c0_i32_0 = arith.constant 0 : i32
    %c0_i32_1 = arith.constant 0 : i32
    return %c0_i32, %c0_i32_0 : i32, i32
  }
  func.func @transform_6(%arg0: i32) -> (i32, i32) {
    %c0_i32 = arith.constant 0 : i32
    %c0_i32_0 = arith.constant 0 : i32
    %c0_i32_1 = arith.constant 0 : i32
    return %c0_i32, %c0_i32_0 : i32, i32
  }
  func.func @transform_7(%arg0: i32) -> (i32, i32) {
    %c0_i32 = arith.constant 0 : i32
    %c0_i32_0 = arith.constant 0 : i32
    %c0_i32_1 = arith.constant 0 : i32
    return %c0_i32, %c0_i32_0 : i32, i32
  }
  func.func @transform_8(%arg0: i32) -> (i32, i32) {
    %c0_i32 = arith.constant 0 : i32
    %c0_i32_0 = arith.constant 0 : i32
    %c0_i32_1 = arith.constant 0 : i32
    return %c0_i32, %c0_i32_0 : i32, i32
  }
  func.func @transform_9(%arg0: i32) -> (i32, i32) {
    %c0_i32 = arith.constant 0 : i32
    %c0_i32_0 = arith.constant 0 : i32
    %c0_i32_1 = arith.constant 0 : i32
    return %c0_i32, %c0_i32_0 : i32, i32
  }
  func.func @transform_10(%arg0: i32) -> (i32, i32) {
    %c0_i32 = arith.constant 0 : i32
    %c0_i32_0 = arith.constant 0 : i32
    %c0_i32_1 = arith.constant 0 : i32
    return %c0_i32, %c0_i32_0 : i32, i32
  }
  func.func @transform_11(%arg0: i32) -> (i32, i32) {
    %c0_i32 = arith.constant 0 : i32
    %c0_i32_0 = arith.constant 0 : i32
    %c0_i32_1 = arith.constant 0 : i32
    return %c0_i32, %c0_i32_0 : i32, i32
  }
  func.func @transform_12(%arg0: i32) -> (i32, i32, i32) {
    %c0_i32 = arith.constant 0 : i32
    %c0_i32_0 = arith.constant 0 : i32
    %c0_i32_1 = arith.constant 0 : i32
    return %arg0, %c0_i32, %c0_i32_0 : i32, i32, i32
  }
}

</mosaic_0001>

<llo_original>
// kernel: tpu_custom_call.1
$region0: #{tpu_custom_call.1}
  #allocation0 [shape = 'u32[]', space=smem, size = 0x4, offset = 0x4, fixed_abs, tag = 'smem constant byte address 0x4 - core index']
  #allocation1 [shape = 'u32[144,128]{1,0:T(1,128)}', space=vmem, size = 0x12000, scoped, tag = 'internal scratch']
  %s0 = inlined_call_operand.vmem [shape: s32[32,1], index: 0, kind: input, shape index: {}]
  %s1 = inlined_call_operand.vmem [shape: f32[2,1,16], index: 1, kind: input, shape index: {}]
  %s2 = inlined_call_operand.hbm [shape: bf16[32,128], index: 2, kind: input, shape index: {}]
  %s3 = inlined_call_operand.hbm [shape: bf16[32,128], index: 3, kind: input, shape index: {}]
  %s4 = inlined_call_operand.hbm [shape: bf16[128,384], index: 4, kind: input, shape index: {}]
  %s5 = inlined_call_operand.hbm [shape: f32[1,384], index: 5, kind: input, shape index: {}]
  %s6 = inlined_call_operand.hbm [shape: bf16[128,128], index: 6, kind: input, shape index: {}]
  %s7 = inlined_call_operand.hbm [shape: bf16[128,512], index: 7, kind: input, shape index: {}]
  %s8 = inlined_call_operand.vmem [shape: f32[1,512], index: 8, kind: input, shape index: {}]
  %s9 = inlined_call_operand.hbm [shape: bf16[512,128], index: 9, kind: input, shape index: {}]
  %s10 = inlined_call_operand.vmem [shape: bf16[128,128], index: 10, kind: input, shape index: {}]
  %s11 = inlined_call_operand.hbm [shape: f32[9,128], index: 11, kind: input, shape index: {}]
  %s12 = inlined_call_operand.hbm [shape: f32[2,1,128], index: 12, kind: output, shape index: {}]
  %s13 = sld [smem:[#allocation0]]
  $region90: #{tpu_custom_call.1} parent=0
    _
  %s15 = ssub.s32 1, %s13
  %s16 = scalar_select 0, %s15, %s13
  $region1: #{tpu_custom_call.1} parent=0
    #allocation2 [shape = 'u8[8192]{0}', space=vmem, size = 0x2000, scoped, tag = 'input window, operand 2, single buffered']
    #allocation3 [shape = 's32[1]{0}', space=sflag, size = 0x4, scoped, tag = 'scoped memory for tpu_custom_call.1']
    #allocation4 [shape = 's32[1]{0}', space=sflag, size = 0x4, scoped, tag = 'scoped memory for tpu_custom_call.1']
    #allocation5 [shape = 'u8[8192]{0}', space=vmem, size = 0x2000, scoped, tag = 'input window, operand 3, single buffered']
    #allocation6 [shape = 's32[1]{0}', space=sflag, size = 0x4, scoped, tag = 'scoped memory for tpu_custom_call.1']
    #allocation7 [shape = 'u8[98304]{0}', space=vmem, size = 0x18000, scoped, tag = 'input window, operand 4, single buffered']
    #allocation8 [shape = 'u8[1536]{0}', space=vmem, size = 0x800, scoped, tag = 'input window, operand 5, single buffered']
    #allocation9 [shape = 's32[1]{0}', space=sflag, size = 0x4, scoped, tag = 'scoped memory for tpu_custom_call.1']
    #allocation10 [shape = 'u8[32768]{0}', space=vmem, size = 0x8000, scoped, tag = 'input window, operand 6, single buffered']
    #allocation11 [shape = 'u8[131072]{0}', space=vmem, size = 0x20000, scoped, tag = 'input window, operand 7, single buffered']
    #allocation12 [shape = 's32[1]{0}', space=sflag, size = 0x4, scoped, tag = 'scoped memory for tpu_custom_call.1']
    #allocation13 [shape = 'u8[131072]{0}', space=vmem, size = 0x20000, scoped, tag = 'input window, operand 9, single buffered']
    #allocation14 [shape = 'u8[8192]{0}', space=vmem, size = 0x2000, scoped, tag = 'input window, operand 11, single buffered']
    #allocation15 [shape = 's32[1]{0}', space=sflag, size = 0x4, scoped, tag = 'scoped memory for tpu_custom_call.1']
    #allocation16 [shape = 'u8[1024]{0}', space=vmem, size = 0x400, scoped, tag = 'output window, operand 0, single buffered']
    %17 = vsyncpa [#allocation3], 0
    %18 = vsyncpa [#allocation6], 0
    %19 = vsyncpa [#allocation9], 0
    %20 = vsyncpa [#allocation12], 0
    %21 = vsyncpa [#allocation15], 0
    %22 = vsyncpa [#allocation4], 0
    // Predicated region
    $region2: #{tpu_custom_call.1} parent=1 // pred_check
      _
    $region3: #{tpu_custom_call.1} parent=1 // pred_check_branch
      %24 = sbr.rel (0) target = $region5
    $region4: #{tpu_custom_call.1} parent=1 // pred_region
      _
    $region5: #{tpu_custom_call.1} parent=1 // pred_fallthru
      _
    // Predicated region
    $region6: #{tpu_custom_call.1} parent=1 // pred_check
      _
    $region7: #{tpu_custom_call.1} parent=1 // pred_check_branch
      %26 = sbr.rel (0) target = $region9
    $region8: #{tpu_custom_call.1} parent=1 // pred_region
      _
    $region9: #{tpu_custom_call.1} parent=1 // pred_fallthru
      _
    // Predicated region
    $region10: #{tpu_custom_call.1} parent=1 // pred_check
      _
    $region11: #{tpu_custom_call.1} parent=1 // pred_check_branch
      %28 = sbr.rel (0) target = $region13
    $region12: #{tpu_custom_call.1} parent=1 // pred_region
      %s30 = ssub.s32 256, 256
      %31 = vsyncadd [#allocation3], %s30
      %s32 = sshll.u32 [#allocation2], 4
      %s33 = int_to_ptr.vmem [resolvable:$true] %s32
      %38 = dma.hbm_to_vmem [thread:$0]  %s2, 256, %s33, [#allocation3], 64, 64, 4
    $region13: #{tpu_custom_call.1} parent=1 // pred_fallthru
      _
    // Predicated region
    $region14: #{tpu_custom_call.1} parent=1 // pred_check
      _
    $region15: #{tpu_custom_call.1} parent=1 // pred_check_branch
      %40 = sbr.rel (0) target = $region17
    $region16: #{tpu_custom_call.1} parent=1 // pred_region
      %s42 = ssub.s32 256, 256
      %43 = vsyncadd [#allocation6], %s42
      %s44 = sshll.u32 [#allocation5], 4
      %s45 = int_to_ptr.vmem [resolvable:$true] %s44
      %50 = dma.hbm_to_vmem [thread:$0]  %s3, 256, %s45, [#allocation6], 64, 64, 4
    $region17: #{tpu_custom_call.1} parent=1 // pred_fallthru
      _
    // Predicated region
    $region18: #{tpu_custom_call.1} parent=1 // pred_check
      _
    $region19: #{tpu_custom_call.1} parent=1 // pred_check_branch
      %52 = sbr.rel (0) target = $region21
    $region20: #{tpu_custom_call.1} parent=1 // pred_region
      %s54 = ssub.s32 3072, 3072
      %55 = vsyncadd [#allocation6], %s54
      %s56 = sshll.u32 [#allocation7], 4
      %s57 = int_to_ptr.vmem [resolvable:$true] %s56
      %62 = dma.hbm_to_vmem [thread:$0]  %s4, 3072, %s57, [#allocation6], 192, 192, 12
    $region21: #{tpu_custom_call.1} parent=1 // pred_fallthru
      _
    // Predicated region
    $region22: #{tpu_custom_call.1} parent=1 // pred_check
      _
    $region23: #{tpu_custom_call.1} parent=1 // pred_check_branch
      %64 = sbr.rel (0) target = $region25
    $region24: #{tpu_custom_call.1} parent=1 // pred_region
      %s66 = ssub.s32 48, 48
      %67 = vsyncadd [#allocation9], %s66
      %s69 = sshll.u32 [#allocation8], 4
      %s70 = int_to_ptr.vmem [resolvable:$true] %s69
      %72 = dma.hbm_to_vmem [thread:$0]  %s5, 48, %s70, [#allocation9]
    $region25: #{tpu_custom_call.1} parent=1 // pred_fallthru
      _
    // Predicated region
    $region26: #{tpu_custom_call.1} parent=1 // pred_check
      _
    $region27: #{tpu_custom_call.1} parent=1 // pred_check_branch
      %74 = sbr.rel (0) target = $region29
    $region28: #{tpu_custom_call.1} parent=1 // pred_region
      %s76 = ssub.s32 1024, 1024
      %77 = vsyncadd [#allocation9], %s76
      %s78 = sshll.u32 [#allocation10], 4
      %s79 = int_to_ptr.vmem [resolvable:$true] %s78
      %84 = dma.hbm_to_vmem [thread:$0]  %s6, 1024, %s79, [#allocation9], 64, 64, 4
    $region29: #{tpu_custom_call.1} parent=1 // pred_fallthru
      _
    // Predicated region
    $region30: #{tpu_custom_call.1} parent=1 // pred_check
      _
    $region31: #{tpu_custom_call.1} parent=1 // pred_check_branch
      %86 = sbr.rel (0) target = $region33
    $region32: #{tpu_custom_call.1} parent=1 // pred_region
      %s88 = ssub.s32 4096, 4096
      %89 = vsyncadd [#allocation12], %s88
      %s90 = sshll.u32 [#allocation11], 4
      %s91 = int_to_ptr.vmem [resolvable:$true] %s90
      %96 = dma.hbm_to_vmem [thread:$0]  %s7, 4096, %s91, [#allocation12], 256, 256, 16
    $region33: #{tpu_custom_call.1} parent=1 // pred_fallthru
      _
    // Predicated region
    $region34: #{tpu_custom_call.1} parent=1 // pred_check
      _
    $region35: #{tpu_custom_call.1} parent=1 // pred_check_branch
      %98 = sbr.rel (0) target = $region37
    $region36: #{tpu_custom_call.1} parent=1 // pred_region
      _
    $region37: #{tpu_custom_call.1} parent=1 // pred_fallthru
      _
    // Predicated region
    $region38: #{tpu_custom_call.1} parent=1 // pred_check
      _
    $region39: #{tpu_custom_call.1} parent=1 // pred_check_branch
      %100 = sbr.rel (0) target = $region41
    $region40: #{tpu_custom_call.1} parent=1 // pred_region
      %s102 = ssub.s32 4096, 4096
      %103 = vsyncadd [#allocation12], %s102
      %s104 = sshll.u32 [#allocation13], 4
      %s105 = int_to_ptr.vmem [resolvable:$true] %s104
      %110 = dma.hbm_to_vmem [thread:$0]  %s9, 4096, %s105, [#allocation12], 64, 64, 4
    $region41: #{tpu_custom_call.1} parent=1 // pred_fallthru
      _
    // Predicated region
    $region42: #{tpu_custom_call.1} parent=1 // pred_check
      _
    $region43: #{tpu_custom_call.1} parent=1 // pred_check_branch
      %112 = sbr.rel (0) target = $region45
    $region44: #{tpu_custom_call.1} parent=1 // pred_region
      _
    $region45: #{tpu_custom_call.1} parent=1 // pred_fallthru
      _
    // Predicated region
    $region46: #{tpu_custom_call.1} parent=1 // pred_check
      _
    $region47: #{tpu_custom_call.1} parent=1 // pred_check_branch
      %114 = sbr.rel (0) target = $region49
    $region48: #{tpu_custom_call.1} parent=1 // pred_region
      %s116 = ssub.s32 256, 256
      %117 = vsyncadd [#allocation15], %s116
      %s118 = sshll.u32 [#allocation14], 4
      %s119 = int_to_ptr.vmem [resolvable:$true] %s118
      %124 = dma.hbm_to_vmem [thread:$0]  %s11, 256, %s119, [#allocation15], 128, 128, 8
    $region49: #{tpu_custom_call.1} parent=1 // pred_fallthru
      _
    // Predicated region
    $region50: #{tpu_custom_call.1} parent=1 // pred_check
      _
    $region51: #{tpu_custom_call.1} parent=1 // pred_check_branch
      %126 = sbr.rel (0) target = $region53
    $region52: #{tpu_custom_call.1} parent=1 // pred_region
      %127 = dma.done [#allocation3], 256
    $region53: #{tpu_custom_call.1} parent=1 // pred_fallthru
      _
    // Predicated region
    $region54: #{tpu_custom_call.1} parent=1 // pred_check
      _
    $region55: #{tpu_custom_call.1} parent=1 // pred_check_branch
      %129 = sbr.rel (0) target = $region57
    $region56: #{tpu_custom_call.1} parent=1 // pred_region
      %130 = dma.done [#allocation6], 256
    $region57: #{tpu_custom_call.1} parent=1 // pred_fallthru
      _
    // Predicated region
    $region58: #{tpu_custom_call.1} parent=1 // pred_check
      _
    $region59: #{tpu_custom_call.1} parent=1 // pred_check_branch
      %132 = sbr.rel (0) target = $region61
    $region60: #{tpu_custom_call.1} parent=1 // pred_region
      %133 = dma.done [#allocation6], 3072
    $region61: #{tpu_custom_call.1} parent=1 // pred_fallthru
      _
    // Predicated region
    $region62: #{tpu_custom_call.1} parent=1 // pred_check
      _
    $region63: #{tpu_custom_call.1} parent=1 // pred_check_branch
      %135 = sbr.rel (0) target = $region65
    $region64: #{tpu_custom_call.1} parent=1 // pred_region
      %136 = dma.done [#allocation9], 48
    $region65: #{tpu_custom_call.1} parent=1 // pred_fallthru
      _
    // Predicated region
    $region66: #{tpu_custom_call.1} parent=1 // pred_check
      _
    $region67: #{tpu_custom_call.1} parent=1 // pred_check_branch
      %138 = sbr.rel (0) target = $region69
    $region68: #{tpu_custom_call.1} parent=1 // pred_region
      %139 = dma.done [#allocation9], 1024
    $region69: #{tpu_custom_call.1} parent=1 // pred_fallthru
      _
    // Predicated region
    $region70: #{tpu_custom_call.1} parent=1 // pred_check
      _
    $region71: #{tpu_custom_call.1} parent=1 // pred_check_branch
      %141 = sbr.rel (0) target = $region73
    $region72: #{tpu_custom_call.1} parent=1 // pred_region
      %142 = dma.done [#allocation12], 4096
    $region73: #{tpu_custom_call.1} parent=1 // pred_fallthru
      _
    // Predicated region
    $region74: #{tpu_custom_call.1} parent=1 // pred_check
      _
    $region75: #{tpu_custom_call.1} parent=1 // pred_check_branch
      %144 = sbr.rel (0) target = $region77
    $region76: #{tpu_custom_call.1} parent=1 // pred_region
      %145 = dma.done [#allocation12], 4096
    $region77: #{tpu_custom_call.1} parent=1 // pred_fallthru
      _
    // Predicated region
    $region78: #{tpu_custom_call.1} parent=1 // pred_check
      _
    $region79: #{tpu_custom_call.1} parent=1 // pred_check_branch
      %147 = sbr.rel (0) target = $region81
    $region80: #{tpu_custom_call.1} parent=1 // pred_region
      %148 = dma.done [#allocation15], 256
    $region81: #{tpu_custom_call.1} parent=1 // pred_fallthru
      _
    %v150 = vld [vmem:[#allocation14] sm:$0xff]
    %v151 = vld [vmem:[#allocation14 + $0x8] sm:$0x1]
    %v152 = vld [vmem:[#allocation7] sm:$0xff]
    %v153 = vld [vmem:[#allocation7 + $0x8] sm:$0xf]
    %v154 = vld [vmem:[#allocation7 + $0xc] sm:$0xff]
    %v155 = vld [vmem:[#allocation7 + $0x14] sm:$0xf]
    %v156 = vld [vmem:[#allocation7 + $0x18] sm:$0xff]
    %v157 = vld [vmem:[#allocation7 + $0x20] sm:$0xf]
    %v158 = vld [vmem:[#allocation7 + $0x24] sm:$0xff]
    %v159 = vld [vmem:[#allocation7 + $0x2c] sm:$0xf]
    %v160 = vld [vmem:[#allocation7 + $0x30] sm:$0xff]
    %v161 = vld [vmem:[#allocation7 + $0x38] sm:$0xf]
    %v162 = vld [vmem:[#allocation7 + $0x3c] sm:$0xff]
    %v163 = vld [vmem:[#allocation7 + $0x44] sm:$0xf]
    %v164 = vld [vmem:[#allocation7 + $0x48] sm:$0xff]
    %v165 = vld [vmem:[#allocation7 + $0x50] sm:$0xf]
    %v166 = vld [vmem:[#allocation7 + $0x54] sm:$0xff]
    %v167 = vld [vmem:[#allocation7 + $0x5c] sm:$0xf]
    %v168 = vld [vmem:[#allocation7 + $0x60] sm:$0xff]
    %v169 = vld [vmem:[#allocation7 + $0x68] sm:$0xf]
    %v170 = vld [vmem:[#allocation7 + $0x6c] sm:$0xff]
    %v171 = vld [vmem:[#allocation7 + $0x74] sm:$0xf]
    %v172 = vld [vmem:[#allocation7 + $0x78] sm:$0xff]
    %v173 = vld [vmem:[#allocation7 + $0x80] sm:$0xf]
    %v174 = vld [vmem:[#allocation7 + $0x84] sm:$0xff]
    %v175 = vld [vmem:[#allocation7 + $0x8c] sm:$0xf]
    %v176 = vld [vmem:[#allocation7 + $0x90] sm:$0xff]
    %v177 = vld [vmem:[#allocation7 + $0x98] sm:$0xf]
    %v178 = vld [vmem:[#allocation7 + $0x9c] sm:$0xff]
    %v179 = vld [vmem:[#allocation7 + $0xa4] sm:$0xf]
    %v180 = vld [vmem:[#allocation7 + $0xa8] sm:$0xff]
    %v181 = vld [vmem:[#allocation7 + $0xb0] sm:$0xf]
    %v182 = vld [vmem:[#allocation7 + $0xb4] sm:$0xff]
    %v183 = vld [vmem:[#allocation7 + $0xbc] sm:$0xf]
    %v184 = vld [vmem:[#allocation8] sm:$0x7]
    %v185 = vld [vmem:[#allocation10] sm:$0xf]
    %v186 = vld [vmem:[#allocation10 + $0x4] sm:$0xf]
    %v187 = vld [vmem:[#allocation10 + $0x8] sm:$0xf]
    %v188 = vld [vmem:[#allocation10 + $0xc] sm:$0xf]
    %v189 = vld [vmem:[#allocation10 + $0x10] sm:$0xf]
    %v190 = vld [vmem:[#allocation10 + $0x14] sm:$0xf]
    %v191 = vld [vmem:[#allocation10 + $0x18] sm:$0xf]
    %v192 = vld [vmem:[#allocation10 + $0x1c] sm:$0xf]
    %v193 = vld [vmem:[#allocation10 + $0x20] sm:$0xf]
    %v194 = vld [vmem:[#allocation10 + $0x24] sm:$0xf]
    %v195 = vld [vmem:[#allocation10 + $0x28] sm:$0xf]
    %v196 = vld [vmem:[#allocation10 + $0x2c] sm:$0xf]
    %v197 = vld [vmem:[#allocation10 + $0x30] sm:$0xf]
    %v198 = vld [vmem:[#allocation10 + $0x34] sm:$0xf]
    %v199 = vld [vmem:[#allocation10 + $0x38] sm:$0xf]
    %v200 = vld [vmem:[#allocation10 + $0x3c] sm:$0xf]
    %v201 = vld [vmem:[#allocation11] sm:$0xff]
    %v202 = vld [vmem:[#allocation11 + $0x8] sm:$0xff]
    %v203 = vld [vmem:[#allocation11 + $0x10] sm:$0xff]
    %v204 = vld [vmem:[#allocation11 + $0x18] sm:$0xff]
    %v205 = vld [vmem:[#allocation11 + $0x20] sm:$0xff]
    %v206 = vld [vmem:[#allocation11 + $0x28] sm:$0xff]
    %v207 = vld [vmem:[#allocation11 + $0x30] sm:$0xff]
    %v208 = vld [vmem:[#allocation11 + $0x38] sm:$0xff]
    %v209 = vld [vmem:[#allocation11 + $0x40] sm:$0xff]
    %v210 = vld [vmem:[#allocation11 + $0x48] sm:$0xff]
    %v211 = vld [vmem:[#allocation11 + $0x50] sm:$0xff]
    %v212 = vld [vmem:[#allocation11 + $0x58] sm:$0xff]
    %v213 = vld [vmem:[#allocation11 + $0x60] sm:$0xff]
    %v214 = vld [vmem:[#allocation11 + $0x68] sm:$0xff]
    %v215 = vld [vmem:[#allocation11 + $0x70] sm:$0xff]
    %v216 = vld [vmem:[#allocation11 + $0x78] sm:$0xff]
    %v217 = vld [vmem:[#allocation11 + $0x80] sm:$0xff]
    %v218 = vld [vmem:[#allocation11 + $0x88] sm:$0xff]
    %v219 = vld [vmem:[#allocation11 + $0x90] sm:$0xff]
    %v220 = vld [vmem:[#allocation11 + $0x98] sm:$0xff]
    %v221 = vld [vmem:[#allocation11 + $0xa0] sm:$0xff]
    %v222 = vld [vmem:[#allocation11 + $0xa8] sm:$0xff]
    %v223 = vld [vmem:[#allocation11 + $0xb0] sm:$0xff]
    %v224 = vld [vmem:[#allocation11 + $0xb8] sm:$0xff]
    %v225 = vld [vmem:[#allocation11 + $0xc0] sm:$0xff]
    %v226 = vld [vmem:[#allocation11 + $0xc8] sm:$0xff]
    %v227 = vld [vmem:[#allocation11 + $0xd0] sm:$0xff]
    %v228 = vld [vmem:[#allocation11 + $0xd8] sm:$0xff]
    %v229 = vld [vmem:[#allocation11 + $0xe0] sm:$0xff]
    %v230 = vld [vmem:[#allocation11 + $0xe8] sm:$0xff]
    %v231 = vld [vmem:[#allocation11 + $0xf0] sm:$0xff]
    %v232 = vld [vmem:[#allocation11 + $0xf8] sm:$0xff]
    %v233 = vld [vmem:[%s8] sm:$0xf]
    %v234 = vld [vmem:[#allocation13] sm:$0xf]
    %v235 = vld [vmem:[#allocation13 + $0x4] sm:$0xf]
    %v236 = vld [vmem:[#allocation13 + $0x8] sm:$0xf]
    %v237 = vld [vmem:[#allocation13 + $0xc] sm:$0xf]
    %v238 = vld [vmem:[#allocation13 + $0x10] sm:$0xf]
    %v239 = vld [vmem:[#allocation13 + $0x14] sm:$0xf]
    %v240 = vld [vmem:[#allocation13 + $0x18] sm:$0xf]
    %v241 = vld [vmem:[#allocation13 + $0x1c] sm:$0xf]
    %v242 = vld [vmem:[#allocation13 + $0x20] sm:$0xf]
    %v243 = vld [vmem:[#allocation13 + $0x24] sm:$0xf]
    %v244 = vld [vmem:[#allocation13 + $0x28] sm:$0xf]
    %v245 = vld [vmem:[#allocation13 + $0x2c] sm:$0xf]
    %v246 = vld [vmem:[#allocation13 + $0x30] sm:$0xf]
    %v247 = vld [vmem:[#allocation13 + $0x34] sm:$0xf]
    %v248 = vld [vmem:[#allocation13 + $0x38] sm:$0xf]
    %v249 = vld [vmem:[#allocation13 + $0x3c] sm:$0xf]
    %v250 = vld [vmem:[#allocation13 + $0x40] sm:$0xf]
    %v251 = vld [vmem:[#allocation13 + $0x44] sm:$0xf]
    %v252 = vld [vmem:[#allocation13 + $0x48] sm:$0xf]
    %v253 = vld [vmem:[#allocation13 + $0x4c] sm:$0xf]
    %v254 = vld [vmem:[#allocation13 + $0x50] sm:$0xf]
    %v255 = vld [vmem:[#allocation13 + $0x54] sm:$0xf]
    %v256 = vld [vmem:[#allocation13 + $0x58] sm:$0xf]
    %v257 = vld [vmem:[#allocation13 + $0x5c] sm:$0xf]
    %v258 = vld [vmem:[#allocation13 + $0x60] sm:$0xf]
    %v259 = vld [vmem:[#allocation13 + $0x64] sm:$0xf]
    %v260 = vld [vmem:[#allocation13 + $0x68] sm:$0xf]
    %v261 = vld [vmem:[#allocation13 + $0x6c] sm:$0xf]
    %v262 = vld [vmem:[#allocation13 + $0x70] sm:$0xf]
    %v263 = vld [vmem:[#allocation13 + $0x74] sm:$0xf]
    %v264 = vld [vmem:[#allocation13 + $0x78] sm:$0xf]
    %v265 = vld [vmem:[#allocation13 + $0x7c] sm:$0xf]
    %v266 = vld [vmem:[#allocation13 + $0x80] sm:$0xf]
    %v267 = vld [vmem:[#allocation13 + $0x84] sm:$0xf]
    %v268 = vld [vmem:[#allocation13 + $0x88] sm:$0xf]
    %v269 = vld [vmem:[#allocation13 + $0x8c] sm:$0xf]
    %v270 = vld [vmem:[#allocation13 + $0x90] sm:$0xf]
    %v271 = vld [vmem:[#allocation13 + $0x94] sm:$0xf]
    %v272 = vld [vmem:[#allocation13 + $0x98] sm:$0xf]
    %v273 = vld [vmem:[#allocation13 + $0x9c] sm:$0xf]
    %v274 = vld [vmem:[#allocation13 + $0xa0] sm:$0xf]
    %v275 = vld [vmem:[#allocation13 + $0xa4] sm:$0xf]
    %v276 = vld [vmem:[#allocation13 + $0xa8] sm:$0xf]
    %v277 = vld [vmem:[#allocation13 + $0xac] sm:$0xf]
    %v278 = vld [vmem:[#allocation13 + $0xb0] sm:$0xf]
    %v279 = vld [vmem:[#allocation13 + $0xb4] sm:$0xf]
    %v280 = vld [vmem:[#allocation13 + $0xb8] sm:$0xf]
    %v281 = vld [vmem:[#allocation13 + $0xbc] sm:$0xf]
    %v282 = vld [vmem:[#allocation13 + $0xc0] sm:$0xf]
    %v283 = vld [vmem:[#allocation13 + $0xc4] sm:$0xf]
    %v284 = vld [vmem:[#allocation13 + $0xc8] sm:$0xf]
    %v285 = vld [vmem:[#allocation13 + $0xcc] sm:$0xf]
    %v286 = vld [vmem:[#allocation13 + $0xd0] sm:$0xf]
    %v287 = vld [vmem:[#allocation13 + $0xd4] sm:$0xf]
    %v288 = vld [vmem:[#allocation13 + $0xd8] sm:$0xf]
    %v289 = vld [vmem:[#allocation13 + $0xdc] sm:$0xf]
    %v290 = vld [vmem:[#allocation13 + $0xe0] sm:$0xf]
    %v291 = vld [vmem:[#allocation13 + $0xe4] sm:$0xf]
    %v292 = vld [vmem:[#allocation13 + $0xe8] sm:$0xf]
    %v293 = vld [vmem:[#allocation13 + $0xec] sm:$0xf]
    %v294 = vld [vmem:[#allocation13 + $0xf0] sm:$0xf]
    %v295 = vld [vmem:[#allocation13 + $0xf4] sm:$0xf]
    %v296 = vld [vmem:[#allocation13 + $0xf8] sm:$0xf]
    %v297 = vld [vmem:[#allocation13 + $0xfc] sm:$0xf]
    %v298 = vld [vmem:[%s0] sm:$0xff]
    %v299 = vld [vmem:[%s0 + $0x8] sm:$0xff]
    %v300 = vld [vmem:[%s0 + $0x10] sm:$0xff]
    %v301 = vld [vmem:[%s0 + $0x18] sm:$0xff]
    %v302 = vlaneseq
    %v303 = vand.u32 %v302, 127
    %304 = vset.pattern.permute.xlu0 0
    %305 = vperm.xlu0 %304, %v298
    %v306 = vpop.permute.xlu0 %305
    %307 = vset.pattern.permute.xlu0 0
    %308 = vperm.xlu0 %307, %v299
    %v309 = vpop.permute.xlu0 %308
    %310 = vset.pattern.permute.xlu0 0
    %311 = vperm.xlu0 %310, %v300
    %v312 = vpop.permute.xlu0 %311
    %313 = vset.pattern.permute.xlu0 0
    %314 = vperm.xlu0 %313, %v301
    %v315 = vpop.permute.xlu0 %314
    %vm316 = vcmp.eq.s32.totalorder %v306, %v303
    %vm317 = vcmp.eq.s32.totalorder %v309, %v303
    %vm318 = vcmp.eq.s32.totalorder %v312, %v303
    %vm319 = vcmp.eq.s32.totalorder %v315, %v303
    %v320 = vsel %vm316, 1, 0
    %v321 = vsel %vm317, 1, 0
    %v322 = vsel %vm318, 1, 0
    %v323 = vsel %vm319, 1, 0
    %v324 = vcvt.s32.f32 %v320
    %v325 = vcvt.s32.f32 %v321
    %v326 = vcvt.s32.f32 %v322
    %v327 = vcvt.s32.f32 %v323
    %v328 = vpack.c.bf16 %v325, %v324
    %v329 = vpack.c.bf16 %v327, %v326
    %v330 = vld [vmem:[#allocation2] sm:$0xf]
    %v331 = vld [vmem:[#allocation2 + $0x4] sm:$0xf]
    %v332 = vld [vmem:[#allocation2 + $0x8] sm:$0xf]
    %v333 = vld [vmem:[#allocation2 + $0xc] sm:$0xf]
    %v334 = vld [vmem:[#allocation5] sm:$0xf]
    %v335 = vld [vmem:[#allocation5 + $0x4] sm:$0xf]
    %v336 = vld [vmem:[#allocation5 + $0x8] sm:$0xf]
    %v337 = vld [vmem:[#allocation5 + $0xc] sm:$0xf]
    %v338 = vunpack.c.l.bf16 %v334
    %v339 = vunpack.c.l.bf16 %v335
    %v340 = vunpack.c.l.bf16 %v336
    %v341 = vunpack.c.l.bf16 %v337
    %v346 = vunpack.c.l.b16 %v330
    %v347 = vunpack.c.l.b16 %v331
    %v348 = vunpack.c.l.b16 %v332
    %v349 = vunpack.c.l.b16 %v333
    %v350 = vpack.c.b16 %v347, %v346
    %v351 = vpack.c.b16 %v349, %v348
    %vm354 = vcmask 261120
    %v356 = vsel %vm354, %v328, 0
    %v359 = vsel %vm354, %v329, 0
    %361 = vmatprep.subr.bf16.mxu0 0
    %362 = vmatpush1.bf16.msra.mxu0 %v350
    %363 = vmatprep.subr.bf16.mxu0 0
    %364 = vmatpush1.bf16.msra.mxu0 %v351
    %365 = vmatprep.subr.bf16.mxu0 0
    %366 = vmatpush1.bf16.msra.mxu0 0
    %367 = vmatprep.subr.bf16.mxu0 0
    %368 = vmatpush1.bf16.msra.mxu0 0
    %369 = vmatprep.subr.bf16.mxu0 0
    %370 = vmatpush1.bf16.msra.mxu0 0
    %371 = vmatprep.subr.bf16.mxu0 0
    %372 = vmatpush1.bf16.msra.mxu0 0
    %373 = vmatprep.subr.bf16.mxu0 0
    %374 = vmatpush1.bf16.msra.mxu0 0
    %375 = vmatprep.subr.bf16.mxu0 0
    %376 = vmatpush1.bf16.msra.mxu0 0
    %377 = vmatprep.subr.bf16.mxu0 0
    %378 = vmatpush1.bf16.msra.mxu0 0
    %379 = vmatprep.subr.bf16.mxu0 0
    %380 = vmatpush1.bf16.msra.mxu0 0
    %381 = vmatprep.subr.bf16.mxu0 0
    %382 = vmatpush1.bf16.msra.mxu0 0
    %383 = vmatprep.subr.bf16.mxu0 0
    %384 = vmatpush1.bf16.msra.mxu0 0
    %385 = vmatprep.subr.bf16.mxu0 0
    %386 = vmatpush1.bf16.msra.mxu0 0
    %387 = vmatprep.subr.bf16.mxu0 0
    %388 = vmatpush1.bf16.msra.mxu0 0
    %389 = vmatprep.subr.bf16.mxu0 0
    %390 = vmatpush1.bf16.msra.mxu0 0
    %391 = vmatprep.subr.bf16.mxu0 0
    %392 = vmatpush1.bf16.msra.mxu0 0
    %393 = vmatprep.mubr.bf16.mxu0 0
    %394 = vmatmul.mubr.bf16.gmra.mrb[0].mxu0 %v356
    %v395 = vpop.f32.mrb[0].mxu0
    %v396 = vadd.f32 %v338, %v395
    %v397 = vpop.f32.mrb[0].mxu0
    %v398 = vpop.f32.mrb[0].mxu0
    %v399 = vadd.f32 %v339, %v398
    %v400 = vpop.f32.mrb[0].mxu0
    %401 = vmatprep.mubr.bf16.mxu0 0
    %402 = vmatmul.mubr.bf16.gmra.mrb[0].mxu0 %v359
    %v403 = vpop.f32.mrb[0].mxu0
    %v404 = vadd.f32 %v340, %v403
    %v405 = vpop.f32.mrb[0].mxu0
    %v406 = vpop.f32.mrb[0].mxu0
    %v407 = vadd.f32 %v341, %v406
    %v408 = vpop.f32.mrb[0].mxu0
    %409 = vdwg.mxu0
    %410 = vadd.xlane.f32.xlu0 %v396
    %v411 = vpop.xlane.xlu0 %410
    %412 = vadd.xlane.f32.xlu0 %v399
    %v413 = vpop.xlane.xlu0 %412
    %414 = vadd.xlane.f32.xlu0 %v404
    %v415 = vpop.xlane.xlu0 %414
    %416 = vadd.xlane.f32.xlu0 %v407
    %v417 = vpop.xlane.xlu0 %416
    %v418 = vrcp.pop 128.0
    %v419 = vmul.f32 %v411, %v418
    %v420 = vmul.f32 %v413, %v418
    %v421 = vmul.f32 %v415, %v418
    %v422 = vmul.f32 %v417, %v418
    %v423 = vsub.f32 %v396, %v419
    %v424 = vsub.f32 %v399, %v420
    %v425 = vsub.f32 %v404, %v421
    %v426 = vsub.f32 %v407, %v422
    %v427 = vmul.f32 %v423, %v423
    %v428 = vmul.f32 %v424, %v424
    %v429 = vmul.f32 %v425, %v425
    %v430 = vmul.f32 %v426, %v426
    %431 = vadd.xlane.f32.xlu0 %v427
    %v432 = vpop.xlane.xlu0 %431
    %433 = vadd.xlane.f32.xlu0 %v428
    %v434 = vpop.xlane.xlu0 %433
    %435 = vadd.xlane.f32.xlu0 %v429
    %v436 = vpop.xlane.xlu0 %435
    %437 = vadd.xlane.f32.xlu0 %v430
    %v438 = vpop.xlane.xlu0 %437
    %v439 = vmul.f32 %v432, %v418
    %v440 = vmul.f32 %v434, %v418
    %v441 = vmul.f32 %v436, %v418
    %v442 = vmul.f32 %v438, %v418
    %v443 = vadd.f32 %v439, 1e-05
    %v444 = vadd.f32 %v440, 1e-05
    %v445 = vadd.f32 %v441, 1e-05
    %v446 = vadd.f32 %v442, 1e-05
    %v447 = vrsqrt.pop %v443
    %v448 = vrsqrt.pop %v444
    %v449 = vrsqrt.pop %v445
    %v450 = vrsqrt.pop %v446
    %v451 = vmul.f32 %v423, %v447
    %v452 = vmul.f32 %v424, %v448
    %v453 = vmul.f32 %v425, %v449
    %v454 = vmul.f32 %v426, %v450
    %v455 = vlaneseq
    %v456 = vshrl.u32 %v455, 7
    %v457 = vsub.s32 0, %v456
    %v458 = vrot.slane %v150, %v457
    %v459 = vmul.f32 %v451, %v458
    %v460 = vmul.f32 %v452, %v458
    %v461 = vmul.f32 %v453, %v458
    %v462 = vmul.f32 %v454, %v458
    %v463 = vlaneseq
    %v464 = vshrl.u32 %v463, 7
    %v465 = vsub.s32 1, %v464
    %v466 = vrot.slane %v150, %v465
    %v467 = vadd.f32 %v459, %v466
    %v468 = vadd.f32 %v460, %v466
    %v469 = vadd.f32 %v461, %v466
    %v470 = vadd.f32 %v462, %v466
    %v471 = vld [vmem:[%s1] sm:$0x1]
    %v472 = vld [vmem:[%s1 + $0x1] sm:$0x1]
    %v473 = vsub.f32 %v471, 1.0
    %v474 = vsub.f32 %v472, 1.0
    %v475 = vmul.f32 %v473, 1e+09
    %v476 = vmul.f32 %v474, 1e+09
    %v477 = vpack.c.bf16 %v468, %v467
    %v478 = vpack.c.bf16 %v470, %v469
    %v480 = vlaneseq
    %v481 = vshrl.u32 %v480, 7
    %v482 = vsub.s32 0, %v481
    %v483 = vrot.slane %v184, %v482
    %v484 = vlaneseq
    %v485 = vshrl.u32 %v484, 7
    %v486 = vsub.s32 1, %v485
    %v487 = vrot.slane %v184, %v486
    %v488 = vlaneseq
    %v489 = vshrl.u32 %v488, 7
    %v490 = vsub.s32 2, %v489
    %v491 = vrot.slane %v184, %v490
    %v527 = vunpack.c.l.b16 %v152
    %v528 = vunpack.c.h.b16 %v152
    %v529 = vunpack.c.l.b16 %v153
    %v530 = vunpack.c.l.b16 %v154
    %v531 = vunpack.c.h.b16 %v154
    %v532 = vunpack.c.l.b16 %v155
    %v533 = vunpack.c.l.b16 %v156
    %v534 = vunpack.c.h.b16 %v156
    %v535 = vunpack.c.l.b16 %v157
    %v536 = vunpack.c.l.b16 %v158
    %v537 = vunpack.c.h.b16 %v158
    %v538 = vunpack.c.l.b16 %v159
    %v539 = vunpack.c.l.b16 %v160
    %v540 = vunpack.c.h.b16 %v160
    %v541 = vunpack.c.l.b16 %v161
    %v542 = vunpack.c.l.b16 %v162
    %v543 = vunpack.c.h.b16 %v162
    %v544 = vunpack.c.l.b16 %v163
    %v545 = vunpack.c.l.b16 %v164
    %v546 = vunpack.c.h.b16 %v164
    %v547 = vunpack.c.l.b16 %v165
    %v548 = vunpack.c.l.b16 %v166
    %v549 = vunpack.c.h.b16 %v166
    %v550 = vunpack.c.l.b16 %v167
    %v551 = vunpack.c.l.b16 %v168
    %v552 = vunpack.c.h.b16 %v168
    %v553 = vunpack.c.l.b16 %v169
    %v554 = vunpack.c.l.b16 %v170
    %v555 = vunpack.c.h.b16 %v170
    %v556 = vunpack.c.l.b16 %v171
    %v557 = vunpack.c.l.b16 %v172
    %v558 = vunpack.c.h.b16 %v172
    %v559 = vunpack.c.l.b16 %v173
    %v560 = vunpack.c.l.b16 %v174
    %v561 = vunpack.c.h.b16 %v174
    %v562 = vunpack.c.l.b16 %v175
    %v563 = vunpack.c.l.b16 %v176
    %v564 = vunpack.c.h.b16 %v176
    %v565 = vunpack.c.l.b16 %v177
    %v566 = vunpack.c.l.b16 %v178
    %v567 = vunpack.c.h.b16 %v178
    %v568 = vunpack.c.l.b16 %v179
    %v569 = vunpack.c.l.b16 %v180
    %v570 = vunpack.c.h.b16 %v180
    %v571 = vunpack.c.l.b16 %v181
    %v572 = vunpack.c.l.b16 %v182
    %v573 = vunpack.c.h.b16 %v182
    %v574 = vunpack.c.l.b16 %v183
    %v575 = vpack.c.b16 %v530, %v527
    %v576 = vpack.c.b16 %v531, %v528
    %v577 = vpack.c.b16 %v532, %v529
    %v578 = vpack.c.b16 %v536, %v533
    %v579 = vpack.c.b16 %v537, %v534
    %v580 = vpack.c.b16 %v538, %v535
    %v581 = vpack.c.b16 %v542, %v539
    %v582 = vpack.c.b16 %v543, %v540
    %v583 = vpack.c.b16 %v544, %v541
    %v584 = vpack.c.b16 %v548, %v545
    %v585 = vpack.c.b16 %v549, %v546
    %v586 = vpack.c.b16 %v550, %v547
    %v587 = vpack.c.b16 %v554, %v551
    %v588 = vpack.c.b16 %v555, %v552
    %v589 = vpack.c.b16 %v556, %v553
    %v590 = vpack.c.b16 %v560, %v557
    %v591 = vpack.c.b16 %v561, %v558
    %v592 = vpack.c.b16 %v562, %v559
    %v593 = vpack.c.b16 %v566, %v563
    %v594 = vpack.c.b16 %v567, %v564
    %v595 = vpack.c.b16 %v568, %v565
    %v596 = vpack.c.b16 %v572, %v569
    %v597 = vpack.c.b16 %v573, %v570
    %v598 = vpack.c.b16 %v574, %v571
    %623 = vmatprep.subr.bf16.mxu0 %v576
    %624 = vmatpush1.bf16.msra.mxu0 %v575
    %625 = vmatprep.subr.bf16.mxu0 %v579
    %626 = vmatpush1.bf16.msra.mxu0 %v578
    %627 = vmatprep.subr.bf16.mxu0 %v582
    %628 = vmatpush1.bf16.msra.mxu0 %v581
    %629 = vmatprep.subr.bf16.mxu0 %v585
    %630 = vmatpush1.bf16.msra.mxu0 %v584
    %631 = vmatprep.subr.bf16.mxu0 %v588
    %632 = vmatpush1.bf16.msra.mxu0 %v587
    %633 = vmatprep.subr.bf16.mxu0 %v591
    %634 = vmatpush1.bf16.msra.mxu0 %v590
    %635 = vmatprep.subr.bf16.mxu0 %v594
    %636 = vmatpush1.bf16.msra.mxu0 %v593
    %637 = vmatprep.subr.bf16.mxu0 %v597
    %638 = vmatpush1.bf16.msra.mxu0 %v596
    %639 = vmatprep.subr.bf16.mxu0 0
    %640 = vmatpush1.bf16.msra.mxu0 0
    %641 = vmatprep.subr.bf16.mxu0 0
    %642 = vmatpush1.bf16.msra.mxu0 0
    %643 = vmatprep.subr.bf16.mxu0 0
    %644 = vmatpush1.bf16.msra.mxu0 0
    %645 = vmatprep.subr.bf16.mxu0 0
    %646 = vmatpush1.bf16.msra.mxu0 0
    %647 = vmatprep.subr.bf16.mxu0 0
    %648 = vmatpush1.bf16.msra.mxu0 0
    %649 = vmatprep.subr.bf16.mxu0 0
    %650 = vmatpush1.bf16.msra.mxu0 0
    %651 = vmatprep.subr.bf16.mxu0 0
    %652 = vmatpush1.bf16.msra.mxu0 0
    %653 = vmatprep.subr.bf16.mxu0 0
    %654 = vmatpush1.bf16.msra.mxu0 0
    %655 = vmatprep.mubr.bf16.mxu0 0
    %656 = vmatmul.mubr.bf16.gmra.mrb[0].mxu0 %v477
    %v657 = vpop.f32.mrb[0].mxu0
    %v658 = vadd.f32 %v483, %v657
    %v659 = vpop.f32.mrb[0].mxu0
    %v660 = vadd.f32 %v487, %v659
    %v661 = vpop.f32.mrb[0].mxu0
    %v662 = vadd.f32 %v483, %v661
    %v663 = vpop.f32.mrb[0].mxu0
    %v664 = vadd.f32 %v487, %v663
    %665 = vmatprep.mubr.bf16.mxu0 0
    %666 = vmatmul.mubr.bf16.gmra.mrb[0].mxu0 %v478
    %v667 = vpop.f32.mrb[0].mxu0
    %v668 = vadd.f32 %v483, %v667
    %v669 = vpop.f32.mrb[0].mxu0
    %v670 = vadd.f32 %v487, %v669
    %v671 = vpop.f32.mrb[0].mxu0
    %v672 = vadd.f32 %v483, %v671
    %v673 = vpop.f32.mrb[0].mxu0
    %v674 = vadd.f32 %v487, %v673
    %675 = vdwg.mxu0
    %676 = vmatprep.subr.bf16.mxu0 0
    %677 = vmatpush1.bf16.msra.mxu0 %v577
    %678 = vmatprep.subr.bf16.mxu0 0
    %679 = vmatpush1.bf16.msra.mxu0 %v580
    %680 = vmatprep.subr.bf16.mxu0 0
    %681 = vmatpush1.bf16.msra.mxu0 %v583
    %682 = vmatprep.subr.bf16.mxu0 0
    %683 = vmatpush1.bf16.msra.mxu0 %v586
    %684 = vmatprep.subr.bf16.mxu0 0
    %685 = vmatpush1.bf16.msra.mxu0 %v589
    %686 = vmatprep.subr.bf16.mxu0 0
    %687 = vmatpush1.bf16.msra.mxu0 %v592
    %688 = vmatprep.subr.bf16.mxu0 0
    %689 = vmatpush1.bf16.msra.mxu0 %v595
    %690 = vmatprep.subr.bf16.mxu0 0
    %691 = vmatpush1.bf16.msra.mxu0 %v598
    %692 = vmatprep.subr.bf16.mxu0 0
    %693 = vmatpush1.bf16.msra.mxu0 0
    %694 = vmatprep.subr.bf16.mxu0 0
    %695 = vmatpush1.bf16.msra.mxu0 0
    %696 = vmatprep.subr.bf16.mxu0 0
    %697 = vmatpush1.bf16.msra.mxu0 0
    %698 = vmatprep.subr.bf16.mxu0 0
    %699 = vmatpush1.bf16.msra.mxu0 0
    %700 = vmatprep.subr.bf16.mxu0 0
    %701 = vmatpush1.bf16.msra.mxu0 0
    %702 = vmatprep.subr.bf16.mxu0 0
    %703 = vmatpush1.bf16.msra.mxu0 0
    %704 = vmatprep.subr.bf16.mxu0 0
    %705 = vmatpush1.bf16.msra.mxu0 0
    %706 = vmatprep.subr.bf16.mxu0 0
    %707 = vmatpush1.bf16.msra.mxu0 0
    %708 = vmatprep.mubr.bf16.mxu0 0
    %709 = vmatmul.mubr.bf16.gmra.mrb[0].mxu0 %v477
    %v710 = vpop.f32.mrb[0].mxu0
    %v711 = vadd.f32 %v491, %v710
    %v712 = vpop.f32.mrb[0].mxu0
    %v713 = vpop.f32.mrb[0].mxu0
    %v714 = vadd.f32 %v491, %v713
    %v715 = vpop.f32.mrb[0].mxu0
    %716 = vmatprep.mubr.bf16.mxu0 0
    %717 = vmatmul.mubr.bf16.gmra.mrb[0].mxu0 %v478
    %v718 = vpop.f32.mrb[0].mxu0
    %v719 = vadd.f32 %v491, %v718
    %v720 = vpop.f32.mrb[0].mxu0
    %v721 = vpop.f32.mrb[0].mxu0
    %v722 = vadd.f32 %v491, %v721
    %v723 = vpop.f32.mrb[0].mxu0
    %724 = vdwg.mxu0
    %v725 = vpack.c.bf16 %v662, %v658
    %v726 = vpack.c.bf16 %v672, %v668
    %v727 = vpack.c.bf16 %v664, %v660
    %v728 = vpack.c.bf16 %v674, %v670
    %v729 = vpack.c.bf16 %v714, %v711
    %v730 = vpack.c.bf16 %v722, %v719
    %v732 = vsel %vm354, %v725, 0
    %v735 = vsel %vm354, %v727, 0
    %737 = vmatprep.subr.bf16.mxu0 0
    %738 = vmatpush1.bf16.xpose.msra.mxu0 %v735
    %739 = vmatprep.subr.bf16.mxu0 0
    %740 = vmatpush1.bf16.xpose.msra.mxu0 0
    %741 = vmatprep.subr.bf16.mxu0 0
    %742 = vmatpush1.bf16.xpose.msra.mxu0 0
    %743 = vmatprep.subr.bf16.mxu0 0
    %744 = vmatpush1.bf16.xpose.msra.mxu0 0
    %745 = vmatprep.subr.bf16.mxu0 0
    %746 = vmatpush1.bf16.xpose.msra.mxu0 0
    %747 = vmatprep.subr.bf16.mxu0 0
    %748 = vmatpush1.bf16.xpose.msra.mxu0 0
    %749 = vmatprep.subr.bf16.mxu0 0
    %750 = vmatpush1.bf16.xpose.msra.mxu0 0
    %751 = vmatprep.subr.bf16.mxu0 0
    %752 = vmatpush1.bf16.xpose.msra.mxu0 0
    %753 = vmatprep.subr.bf16.mxu0 0
    %754 = vmatpush1.bf16.xpose.msra.mxu0 0
    %755 = vmatprep.subr.bf16.mxu0 0
    %756 = vmatpush1.bf16.xpose.msra.mxu0 0
    %757 = vmatprep.subr.bf16.mxu0 0
    %758 = vmatpush1.bf16.xpose.msra.mxu0 0
    %759 = vmatprep.subr.bf16.mxu0 0
    %760 = vmatpush1.bf16.xpose.msra.mxu0 0
    %761 = vmatprep.subr.bf16.mxu0 0
    %762 = vmatpush1.bf16.xpose.msra.mxu0 0
    %763 = vmatprep.subr.bf16.mxu0 0
    %764 = vmatpush1.bf16.xpose.msra.mxu0 0
    %765 = vmatprep.subr.bf16.mxu0 0
    %766 = vmatpush1.bf16.xpose.msra.mxu0 0
    %767 = vmatprep.subr.bf16.mxu0 0
    %768 = vmatpush1.bf16.xpose.msra.mxu0 0
    %769 = vmatprep.mubr.bf16.mxu0 0
    %770 = vmatmul.mubr.bf16.gmra.mrb[0].mxu0 %v732
    %v771 = vpop.f32.mrb[0].mxu0
    %v772 = vadd.f32 0.0, %v771
    %v773 = vpop.f32.mrb[0].mxu0
    %v774 = vpop.f32.mrb[0].mxu0
    %v775 = vadd.f32 0.0, %v774
    %v776 = vpop.f32.mrb[0].mxu0
    %777 = vdwg.mxu0
    %v779 = vsel %vm354, %v726, 0
    %v782 = vsel %vm354, %v728, 0
    %784 = vmatprep.subr.bf16.mxu0 0
    %785 = vmatpush1.bf16.xpose.msra.mxu0 %v782
    %786 = vmatprep.subr.bf16.mxu0 0
    %787 = vmatpush1.bf16.xpose.msra.mxu0 0
    %788 = vmatprep.subr.bf16.mxu0 0
    %789 = vmatpush1.bf16.xpose.msra.mxu0 0
    %790 = vmatprep.subr.bf16.mxu0 0
    %791 = vmatpush1.bf16.xpose.msra.mxu0 0
    %792 = vmatprep.subr.bf16.mxu0 0
    %793 = vmatpush1.bf16.xpose.msra.mxu0 0
    %794 = vmatprep.subr.bf16.mxu0 0
    %795 = vmatpush1.bf16.xpose.msra.mxu0 0
    %796 = vmatprep.subr.bf16.mxu0 0
    %797 = vmatpush1.bf16.xpose.msra.mxu0 0
    %798 = vmatprep.subr.bf16.mxu0 0
    %799 = vmatpush1.bf16.xpose.msra.mxu0 0
    %800 = vmatprep.subr.bf16.mxu0 0
    %801 = vmatpush1.bf16.xpose.msra.mxu0 0
    %802 = vmatprep.subr.bf16.mxu0 0
    %803 = vmatpush1.bf16.xpose.msra.mxu0 0
    %804 = vmatprep.subr.bf16.mxu0 0
    %805 = vmatpush1.bf16.xpose.msra.mxu0 0
    %806 = vmatprep.subr.bf16.mxu0 0
    %807 = vmatpush1.bf16.xpose.msra.mxu0 0
    %808 = vmatprep.subr.bf16.mxu0 0
    %809 = vmatpush1.bf16.xpose.msra.mxu0 0
    %810 = vmatprep.subr.bf16.mxu0 0
    %811 = vmatpush1.bf16.xpose.msra.mxu0 0
    %812 = vmatprep.subr.bf16.mxu0 0
    %813 = vmatpush1.bf16.xpose.msra.mxu0 0
    %814 = vmatprep.subr.bf16.mxu0 0
    %815 = vmatpush1.bf16.xpose.msra.mxu0 0
    %816 = vmatprep.mubr.bf16.mxu0 0
    %817 = vmatmul.mubr.bf16.gmra.mrb[0].mxu0 %v779
    %v818 = vpop.f32.mrb[0].mxu0
    %v819 = vadd.f32 0.0, %v818
    %v820 = vpop.f32.mrb[0].mxu0
    %v821 = vpop.f32.mrb[0].mxu0
    %v822 = vadd.f32 0.0, %v821
    %v823 = vpop.f32.mrb[0].mxu0
    %824 = vdwg.mxu0
    %v825 = vmul.f32 %v772, 0.17677669
    %v826 = vmul.f32 %v775, 0.17677669
    %v827 = vmul.f32 %v819, 0.17677669
    %v828 = vmul.f32 %v822, 0.17677669
    %v831 = vlaneseq
    %v832 = vshrl.u32 %v831, 7
    %v833 = vsub.s32 0, %v832
    %v834 = vrot.slane %v475, %v833
    %v835 = vlaneseq
    %v836 = vshrl.u32 %v835, 7
    %v837 = vsub.s32 0, %v836
    %v838 = vrot.slane %v476, %v837
    %v841 = vadd.f32 %v825, %v834
    %v842 = vadd.f32 %v826, %v834
    %v843 = vadd.f32 %v827, %v838
    %v844 = vadd.f32 %v828, %v838
    %vm845 = vcmask 130048
    %v846 = vsel %vm845, %v841, -inf
    %847 = vmax.xlane.f32.xlu0 %v846
    %v848 = vpop.xlane.xlu0 %847
    %v849 = vsel %vm845, %v842, -inf
    %850 = vmax.xlane.f32.xlu0 %v849
    %v851 = vpop.xlane.xlu0 %850
    %v852 = vsel %vm845, %v843, -inf
    %853 = vmax.xlane.f32.xlu0 %v852
    %v854 = vpop.xlane.xlu0 %853
    %v855 = vsel %vm845, %v844, -inf
    %856 = vmax.xlane.f32.xlu0 %v855
    %v857 = vpop.xlane.xlu0 %856
    %v858 = vsub.f32 %v841, %v848
    %v859 = vsub.f32 %v842, %v851
    %v860 = vsub.f32 %v843, %v854
    %v861 = vsub.f32 %v844, %v857
    %v862 = vmul.f32 %v858, 1.442695
    %v863 = vpow.pop %v862
    %v864 = vmul.f32 %v859, 1.442695
    %v865 = vpow.pop %v864
    %v866 = vmul.f32 %v860, 1.442695
    %v867 = vpow.pop %v866
    %v868 = vmul.f32 %v861, 1.442695
    %v869 = vpow.pop %v868
    %v870 = vsel %vm845, %v863, 0.0
    %871 = vadd.xlane.f32.xlu0 %v870
    %v872 = vpop.xlane.xlu0 %871
    %v873 = vsel %vm845, %v865, 0.0
    %874 = vadd.xlane.f32.xlu0 %v873
    %v875 = vpop.xlane.xlu0 %874
    %v876 = vsel %vm845, %v867, 0.0
    %877 = vadd.xlane.f32.xlu0 %v876
    %v878 = vpop.xlane.xlu0 %877
    %v879 = vsel %vm845, %v869, 0.0
    %880 = vadd.xlane.f32.xlu0 %v879
    %v881 = vpop.xlane.xlu0 %880
    %v882 = vrcp.pop %v872
    %v883 = vrcp.pop %v875
    %v884 = vrcp.pop %v878
    %v885 = vrcp.pop %v881
    %v886 = vmul.f32 %v863, %v882
    %v887 = vmul.f32 %v865, %v883
    %v888 = vmul.f32 %v867, %v884
    %v889 = vmul.f32 %v869, %v885
    %v890 = vpack.c.bf16 %v887, %v886
    %v891 = vpack.c.bf16 %v889, %v888
    %v893 = vsel %vm845, %v890, 0
    %895 = vmatprep.subr.bf16.mxu0 0
    %896 = vmatpush1.bf16.msra.mxu0 %v729
    %897 = vmatprep.subr.bf16.mxu0 0
    %898 = vmatpush1.bf16.msra.mxu0 0
    %899 = vmatprep.subr.bf16.mxu0 0
    %900 = vmatpush1.bf16.msra.mxu0 0
    %901 = vmatprep.subr.bf16.mxu0 0
    %902 = vmatpush1.bf16.msra.mxu0 0
    %903 = vmatprep.subr.bf16.mxu0 0
    %904 = vmatpush1.bf16.msra.mxu0 0
    %905 = vmatprep.subr.bf16.mxu0 0
    %906 = vmatpush1.bf16.msra.mxu0 0
    %907 = vmatprep.subr.bf16.mxu0 0
    %908 = vmatpush1.bf16.msra.mxu0 0
    %909 = vmatprep.subr.bf16.mxu0 0
    %910 = vmatpush1.bf16.msra.mxu0 0
    %911 = vmatprep.subr.bf16.mxu0 0
    %912 = vmatpush1.bf16.msra.mxu0 0
    %913 = vmatprep.subr.bf16.mxu0 0
    %914 = vmatpush1.bf16.msra.mxu0 0
    %915 = vmatprep.subr.bf16.mxu0 0
    %916 = vmatpush1.bf16.msra.mxu0 0
    %917 = vmatprep.subr.bf16.mxu0 0
    %918 = vmatpush1.bf16.msra.mxu0 0
    %919 = vmatprep.subr.bf16.mxu0 0
    %920 = vmatpush1.bf16.msra.mxu0 0
    %921 = vmatprep.subr.bf16.mxu0 0
    %922 = vmatpush1.bf16.msra.mxu0 0
    %923 = vmatprep.subr.bf16.mxu0 0
    %924 = vmatpush1.bf16.msra.mxu0 0
    %925 = vmatprep.subr.bf16.mxu0 0
    %926 = vmatpush1.bf16.msra.mxu0 0
    %927 = vmatprep.mubr.bf16.mxu0 0
    %928 = vmatmul.mubr.bf16.gmra.mrb[0].mxu0 %v893
    %v929 = vpop.f32.mrb[0].mxu0
    %v930 = vadd.f32 0.0, %v929
    %v931 = vpop.f32.mrb[0].mxu0
    %v932 = vpop.f32.mrb[0].mxu0
    %v933 = vadd.f32 0.0, %v932
    %v934 = vpop.f32.mrb[0].mxu0
    %935 = vdwg.mxu0
    %v937 = vsel %vm845, %v891, 0
    %939 = vmatprep.subr.bf16.mxu0 0
    %940 = vmatpush1.bf16.msra.mxu0 %v730
    %941 = vmatprep.subr.bf16.mxu0 0
    %942 = vmatpush1.bf16.msra.mxu0 0
    %943 = vmatprep.subr.bf16.mxu0 0
    %944 = vmatpush1.bf16.msra.mxu0 0
    %945 = vmatprep.subr.bf16.mxu0 0
    %946 = vmatpush1.bf16.msra.mxu0 0
    %947 = vmatprep.subr.bf16.mxu0 0
    %948 = vmatpush1.bf16.msra.mxu0 0
    %949 = vmatprep.subr.bf16.mxu0 0
    %950 = vmatpush1.bf16.msra.mxu0 0
    %951 = vmatprep.subr.bf16.mxu0 0
    %952 = vmatpush1.bf16.msra.mxu0 0
    %953 = vmatprep.subr.bf16.mxu0 0
    %954 = vmatpush1.bf16.msra.mxu0 0
    %955 = vmatprep.subr.bf16.mxu0 0
    %956 = vmatpush1.bf16.msra.mxu0 0
    %957 = vmatprep.subr.bf16.mxu0 0
    %958 = vmatpush1.bf16.msra.mxu0 0
    %959 = vmatprep.subr.bf16.mxu0 0
    %960 = vmatpush1.bf16.msra.mxu0 0
    %961 = vmatprep.subr.bf16.mxu0 0
    %962 = vmatpush1.bf16.msra.mxu0 0
    %963 = vmatprep.subr.bf16.mxu0 0
    %964 = vmatpush1.bf16.msra.mxu0 0
    %965 = vmatprep.subr.bf16.mxu0 0
    %966 = vmatpush1.bf16.msra.mxu0 0
    %967 = vmatprep.subr.bf16.mxu0 0
    %968 = vmatpush1.bf16.msra.mxu0 0
    %969 = vmatprep.subr.bf16.mxu0 0
    %970 = vmatpush1.bf16.msra.mxu0 0
    %971 = vmatprep.mubr.bf16.mxu0 0
    %972 = vmatmul.mubr.bf16.gmra.mrb[0].mxu0 %v937
    %v973 = vpop.f32.mrb[0].mxu0
    %v974 = vadd.f32 0.0, %v973
    %v975 = vpop.f32.mrb[0].mxu0
    %v976 = vpop.f32.mrb[0].mxu0
    %v977 = vadd.f32 0.0, %v976
    %v978 = vpop.f32.mrb[0].mxu0
    %979 = vdwg.mxu0
    %981 = vrot.lane.b32.xlu0 %v725, 96
    %v982 = vpop.permute.xlu0 %981
    %984 = vrot.lane.b32.xlu0 %v727, 96
    %v985 = vpop.permute.xlu0 %984
    %v987 = vsel %vm354, %v982, 0
    %v990 = vsel %vm354, %v985, 0
    %992 = vmatprep.subr.bf16.mxu0 0
    %993 = vmatpush1.bf16.xpose.msra.mxu0 %v990
    %994 = vmatprep.subr.bf16.mxu0 0
    %995 = vmatpush1.bf16.xpose.msra.mxu0 0
    %996 = vmatprep.subr.bf16.mxu0 0
    %997 = vmatpush1.bf16.xpose.msra.mxu0 0
    %998 = vmatprep.subr.bf16.mxu0 0
    %999 = vmatpush1.bf16.xpose.msra.mxu0 0
    %1000 = vmatprep.subr.bf16.mxu0 0
    %1001 = vmatpush1.bf16.xpose.msra.mxu0 0
    %1002 = vmatprep.subr.bf16.mxu0 0
    %1003 = vmatpush1.bf16.xpose.msra.mxu0 0
    %1004 = vmatprep.subr.bf16.mxu0 0
    %1005 = vmatpush1.bf16.xpose.msra.mxu0 0
    %1006 = vmatprep.subr.bf16.mxu0 0
    %1007 = vmatpush1.bf16.xpose.msra.mxu0 0
    %1008 = vmatprep.subr.bf16.mxu0 0
    %1009 = vmatpush1.bf16.xpose.msra.mxu0 0
    %1010 = vmatprep.subr.bf16.mxu0 0
    %1011 = vmatpush1.bf16.xpose.msra.mxu0 0
    %1012 = vmatprep.subr.bf16.mxu0 0
    %1013 = vmatpush1.bf16.xpose.msra.mxu0 0
    %1014 = vmatprep.subr.bf16.mxu0 0
    %1015 = vmatpush1.bf16.xpose.msra.mxu0 0
    %1016 = vmatprep.subr.bf16.mxu0 0
    %1017 = vmatpush1.bf16.xpose.msra.mxu0 0
    %1018 = vmatprep.subr.bf16.mxu0 0
    %1019 = vmatpush1.bf16.xpose.msra.mxu0 0
    %1020 = vmatprep.subr.bf16.mxu0 0
    %1021 = vmatpush1.bf16.xpose.msra.mxu0 0
    %1022 = vmatprep.subr.bf16.mxu0 0
    %1023 = vmatpush1.bf16.xpose.msra.mxu0 0
    %1024 = vmatprep.mubr.bf16.mxu0 0
    %1025 = vmatmul.mubr.bf16.gmra.mrb[0].mxu0 %v987
    %v1026 = vpop.f32.mrb[0].mxu0
    %v1027 = vadd.f32 0.0, %v1026
    %v1028 = vpop.f32.mrb[0].mxu0
    %v1029 = vpop.f32.mrb[0].mxu0
    %v1030 = vadd.f32 0.0, %v1029
    %v1031 = vpop.f32.mrb[0].mxu0
    %1032 = vdwg.mxu0
    %1034 = vrot.lane.b32.xlu0 %v726, 96
    %v1035 = vpop.permute.xlu0 %1034
    %1037 = vrot.lane.b32.xlu0 %v728, 96
    %v1038 = vpop.permute.xlu0 %1037
    %v1040 = vsel %vm354, %v1035, 0
    %v1043 = vsel %vm354, %v1038, 0
    %1045 = vmatprep.subr.bf16.mxu0 0
    %1046 = vmatpush1.bf16.xpose.msra.mxu0 %v1043
    %1047 = vmatprep.subr.bf16.mxu0 0
    %1048 = vmatpush1.bf16.xpose.msra.mxu0 0
    %1049 = vmatprep.subr.bf16.mxu0 0
    %1050 = vmatpush1.bf16.xpose.msra.mxu0 0
    %1051 = vmatprep.subr.bf16.mxu0 0
    %1052 = vmatpush1.bf16.xpose.msra.mxu0 0
    %1053 = vmatprep.subr.bf16.mxu0 0
    %1054 = vmatpush1.bf16.xpose.msra.mxu0 0
    %1055 = vmatprep.subr.bf16.mxu0 0
    %1056 = vmatpush1.bf16.xpose.msra.mxu0 0
    %1057 = vmatprep.subr.bf16.mxu0 0
    %1058 = vmatpush1.bf16.xpose.msra.mxu0 0
    %1059 = vmatprep.subr.bf16.mxu0 0
    %1060 = vmatpush1.bf16.xpose.msra.mxu0 0
    %1061 = vmatprep.subr.bf16.mxu0 0
    %1062 = vmatpush1.bf16.xpose.msra.mxu0 0
    %1063 = vmatprep.subr.bf16.mxu0 0
    %1064 = vmatpush1.bf16.xpose.msra.mxu0 0
    %1065 = vmatprep.subr.bf16.mxu0 0
    %1066 = vmatpush1.bf16.xpose.msra.mxu0 0
    %1067 = vmatprep.subr.bf16.mxu0 0
    %1068 = vmatpush1.bf16.xpose.msra.mxu0 0
    %1069 = vmatprep.subr.bf16.mxu0 0
    %1070 = vmatpush1.bf16.xpose.msra.mxu0 0
    %1071 = vmatprep.subr.bf16.mxu0 0
    %1072 = vmatpush1.bf16.xpose.msra.mxu0 0
    %1073 = vmatprep.subr.bf16.mxu0 0
    %1074 = vmatpush1.bf16.xpose.msra.mxu0 0
    %1075 = vmatprep.subr.bf16.mxu0 0
    %1076 = vmatpush1.bf16.xpose.msra.mxu0 0
    %1077 = vmatprep.mubr.bf16.mxu0 0
    %1078 = vmatmul.mubr.bf16.gmra.mrb[0].mxu0 %v1040
    %v1079 = vpop.f32.mrb[0].mxu0
    %v1080 = vadd.f32 0.0, %v1079
    %v1081 = vpop.f32.mrb[0].mxu0
    %v1082 = vpop.f32.mrb[0].mxu0
    %v1083 = vadd.f32 0.0, %v1082
    %v1084 = vpop.f32.mrb[0].mxu0
    %1085 = vdwg.mxu0
    %v1086 = vmul.f32 %v1027, 0.17677669
    %v1087 = vmul.f32 %v1030, 0.17677669
    %v1088 = vmul.f32 %v1080, 0.17677669
    %v1089 = vmul.f32 %v1083, 0.17677669
    %v1090 = vadd.f32 %v1086, %v834
    %v1091 = vadd.f32 %v1087, %v834
    %v1092 = vadd.f32 %v1088, %v838
    %v1093 = vadd.f32 %v1089, %v838
    %v1094 = vsel %vm845, %v1090, -inf
    %1095 = vmax.xlane.f32.xlu0 %v1094
    %v1096 = vpop.xlane.xlu0 %1095
    %v1097 = vsel %vm845, %v1091, -inf
    %1098 = vmax.xlane.f32.xlu0 %v1097
    %v1099 = vpop.xlane.xlu0 %1098
    %v1100 = vsel %vm845, %v1092, -inf
    %1101 = vmax.xlane.f32.xlu0 %v1100
    %v1102 = vpop.xlane.xlu0 %1101
    %v1103 = vsel %vm845, %v1093, -inf
    %1104 = vmax.xlane.f32.xlu0 %v1103
    %v1105 = vpop.xlane.xlu0 %1104
    %v1106 = vsub.f32 %v1090, %v1096
    %v1107 = vsub.f32 %v1091, %v1099
    %v1108 = vsub.f32 %v1092, %v1102
    %v1109 = vsub.f32 %v1093, %v1105
    %v1110 = vmul.f32 %v1106, 1.442695
    %v1111 = vpow.pop %v1110
    %v1112 = vmul.f32 %v1107, 1.442695
    %v1113 = vpow.pop %v1112
    %v1114 = vmul.f32 %v1108, 1.442695
    %v1115 = vpow.pop %v1114
    %v1116 = vmul.f32 %v1109, 1.442695
    %v1117 = vpow.pop %v1116
    %v1118 = vsel %vm845, %v1111, 0.0
    %1119 = vadd.xlane.f32.xlu0 %v1118
    %v1120 = vpop.xlane.xlu0 %1119
    %v1121 = vsel %vm845, %v1113, 0.0
    %1122 = vadd.xlane.f32.xlu0 %v1121
    %v1123 = vpop.xlane.xlu0 %1122
    %v1124 = vsel %vm845, %v1115, 0.0
    %1125 = vadd.xlane.f32.xlu0 %v1124
    %v1126 = vpop.xlane.xlu0 %1125
    %v1127 = vsel %vm845, %v1117, 0.0
    %1128 = vadd.xlane.f32.xlu0 %v1127
    %v1129 = vpop.xlane.xlu0 %1128
    %v1130 = vrcp.pop %v1120
    %v1131 = vrcp.pop %v1123
    %v1132 = vrcp.pop %v1126
    %v1133 = vrcp.pop %v1129
    %v1134 = vmul.f32 %v1111, %v1130
    %v1135 = vmul.f32 %v1113, %v1131
    %v1136 = vmul.f32 %v1115, %v1132
    %v1137 = vmul.f32 %v1117, %v1133
    %v1138 = vpack.c.bf16 %v1135, %v1134
    %v1139 = vpack.c.bf16 %v1137, %v1136
    %1141 = vrot.lane.b32.xlu0 %v729, 96
    %v1142 = vpop.permute.xlu0 %1141
    %v1145 = vsel %vm845, %v1138, 0
    %1147 = vmatprep.subr.bf16.mxu0 0
    %1148 = vmatpush1.bf16.msra.mxu0 %v1142
    %1149 = vmatprep.subr.bf16.mxu0 0
    %1150 = vmatpush1.bf16.msra.mxu0 0
    %1151 = vmatprep.subr.bf16.mxu0 0
    %1152 = vmatpush1.bf16.msra.mxu0 0
    %1153 = vmatprep.subr.bf16.mxu0 0
    %1154 = vmatpush1.bf16.msra.mxu0 0
    %1155 = vmatprep.subr.bf16.mxu0 0
    %1156 = vmatpush1.bf16.msra.mxu0 0
    %1157 = vmatprep.subr.bf16.mxu0 0
    %1158 = vmatpush1.bf16.msra.mxu0 0
    %1159 = vmatprep.subr.bf16.mxu0 0
    %1160 = vmatpush1.bf16.msra.mxu0 0
    %1161 = vmatprep.subr.bf16.mxu0 0
    %1162 = vmatpush1.bf16.msra.mxu0 0
    %1163 = vmatprep.subr.bf16.mxu0 0
    %1164 = vmatpush1.bf16.msra.mxu0 0
    %1165 = vmatprep.subr.bf16.mxu0 0
    %1166 = vmatpush1.bf16.msra.mxu0 0
    %1167 = vmatprep.subr.bf16.mxu0 0
    %1168 = vmatpush1.bf16.msra.mxu0 0
    %1169 = vmatprep.subr.bf16.mxu0 0
    %1170 = vmatpush1.bf16.msra.mxu0 0
    %1171 = vmatprep.subr.bf16.mxu0 0
    %1172 = vmatpush1.bf16.msra.mxu0 0
    %1173 = vmatprep.subr.bf16.mxu0 0
    %1174 = vmatpush1.bf16.msra.mxu0 0
    %1175 = vmatprep.subr.bf16.mxu0 0
    %1176 = vmatpush1.bf16.msra.mxu0 0
    %1177 = vmatprep.subr.bf16.mxu0 0
    %1178 = vmatpush1.bf16.msra.mxu0 0
    %1179 = vmatprep.mubr.bf16.mxu0 0
    %1180 = vmatmul.mubr.bf16.gmra.mrb[0].mxu0 %v1145
    %v1181 = vpop.f32.mrb[0].mxu0
    %v1182 = vadd.f32 0.0, %v1181
    %v1183 = vpop.f32.mrb[0].mxu0
    %v1184 = vpop.f32.mrb[0].mxu0
    %v1185 = vadd.f32 0.0, %v1184
    %v1186 = vpop.f32.mrb[0].mxu0
    %1187 = vdwg.mxu0
    %1189 = vrot.lane.b32.xlu0 %v730, 96
    %v1190 = vpop.permute.xlu0 %1189
    %v1193 = vsel %vm845, %v1139, 0
    %1195 = vmatprep.subr.bf16.mxu0 0
    %1196 = vmatpush1.bf16.msra.mxu0 %v1190
    %1197 = vmatprep.subr.bf16.mxu0 0
    %1198 = vmatpush1.bf16.msra.mxu0 0
    %1199 = vmatprep.subr.bf16.mxu0 0
    %1200 = vmatpush1.bf16.msra.mxu0 0
    %1201 = vmatprep.subr.bf16.mxu0 0
    %1202 = vmatpush1.bf16.msra.mxu0 0
    %1203 = vmatprep.subr.bf16.mxu0 0
    %1204 = vmatpush1.bf16.msra.mxu0 0
    %1205 = vmatprep.subr.bf16.mxu0 0
    %1206 = vmatpush1.bf16.msra.mxu0 0
    %1207 = vmatprep.subr.bf16.mxu0 0
    %1208 = vmatpush1.bf16.msra.mxu0 0
    %1209 = vmatprep.subr.bf16.mxu0 0
    %1210 = vmatpush1.bf16.msra.mxu0 0
    %1211 = vmatprep.subr.bf16.mxu0 0
    %1212 = vmatpush1.bf16.msra.mxu0 0
    %1213 = vmatprep.subr.bf16.mxu0 0
    %1214 = vmatpush1.bf16.msra.mxu0 0
    %1215 = vmatprep.subr.bf16.mxu0 0
    %1216 = vmatpush1.bf16.msra.mxu0 0
    %1217 = vmatprep.subr.bf16.mxu0 0
    %1218 = vmatpush1.bf16.msra.mxu0 0
    %1219 = vmatprep.subr.bf16.mxu0 0
    %1220 = vmatpush1.bf16.msra.mxu0 0
    %1221 = vmatprep.subr.bf16.mxu0 0
    %1222 = vmatpush1.bf16.msra.mxu0 0
    %1223 = vmatprep.subr.bf16.mxu0 0
    %1224 = vmatpush1.bf16.msra.mxu0 0
    %1225 = vmatprep.subr.bf16.mxu0 0
    %1226 = vmatpush1.bf16.msra.mxu0 0
    %1227 = vmatprep.mubr.bf16.mxu0 0
    %1228 = vmatmul.mubr.bf16.gmra.mrb[0].mxu0 %v1193
    %v1229 = vpop.f32.mrb[0].mxu0
    %v1230 = vadd.f32 0.0, %v1229
    %v1231 = vpop.f32.mrb[0].mxu0
    %v1232 = vpop.f32.mrb[0].mxu0
    %v1233 = vadd.f32 0.0, %v1232
    %v1234 = vpop.f32.mrb[0].mxu0
    %1235 = vdwg.mxu0
    %1236 = vrot.lane.b32.xlu0 %v725, 64
    %v1237 = vpop.permute.xlu0 %1236
    %1238 = vrot.lane.b32.xlu0 %v727, 64
    %v1239 = vpop.permute.xlu0 %1238
    %v1241 = vsel %vm354, %v1237, 0
    %v1244 = vsel %vm354, %v1239, 0
    %1246 = vmatprep.subr.bf16.mxu0 0
    %1247 = vmatpush1.bf16.xpose.msra.mxu0 %v1244
    %1248 = vmatprep.subr.bf16.mxu0 0
    %1249 = vmatpush1.bf16.xpose.msra.mxu0 0
    %1250 = vmatprep.subr.bf16.mxu0 0
    %1251 = vmatpush1.bf16.xpose.msra.mxu0 0
    %1252 = vmatprep.subr.bf16.mxu0 0
    %1253 = vmatpush1.bf16.xpose.msra.mxu0 0
    %1254 = vmatprep.subr.bf16.mxu0 0
    %1255 = vmatpush1.bf16.xpose.msra.mxu0 0
    %1256 = vmatprep.subr.bf16.mxu0 0
    %1257 = vmatpush1.bf16.xpose.msra.mxu0 0
    %1258 = vmatprep.subr.bf16.mxu0 0
    %1259 = vmatpush1.bf16.xpose.msra.mxu0 0
    %1260 = vmatprep.subr.bf16.mxu0 0
    %1261 = vmatpush1.bf16.xpose.msra.mxu0 0
    %1262 = vmatprep.subr.bf16.mxu0 0
    %1263 = vmatpush1.bf16.xpose.msra.mxu0 0
    %1264 = vmatprep.subr.bf16.mxu0 0
    %1265 = vmatpush1.bf16.xpose.msra.mxu0 0
    %1266 = vmatprep.subr.bf16.mxu0 0
    %1267 = vmatpush1.bf16.xpose.msra.mxu0 0
    %1268 = vmatprep.subr.bf16.mxu0 0
    %1269 = vmatpush1.bf16.xpose.msra.mxu0 0
    %1270 = vmatprep.subr.bf16.mxu0 0
    %1271 = vmatpush1.bf16.xpose.msra.mxu0 0
    %1272 = vmatprep.subr.bf16.mxu0 0
    %1273 = vmatpush1.bf16.xpose.msra.mxu0 0
    %1274 = vmatprep.subr.bf16.mxu0 0
    %1275 = vmatpush1.bf16.xpose.msra.mxu0 0
    %1276 = vmatprep.subr.bf16.mxu0 0
    %1277 = vmatpush1.bf16.xpose.msra.mxu0 0
    %1278 = vmatprep.mubr.bf16.mxu0 0
    %1279 = vmatmul.mubr.bf16.gmra.mrb[0].mxu0 %v1241
    %v1280 = vpop.f32.mrb[0].mxu0
    %v1281 = vadd.f32 0.0, %v1280
    %v1282 = vpop.f32.mrb[0].mxu0
    %v1283 = vpop.f32.mrb[0].mxu0
    %v1284 = vadd.f32 0.0, %v1283
    %v1285 = vpop.f32.mrb[0].mxu0
    %1286 = vdwg.mxu0
    %1287 = vrot.lane.b32.xlu0 %v726, 64
    %v1288 = vpop.permute.xlu0 %1287
    %1289 = vrot.lane.b32.xlu0 %v728, 64
    %v1290 = vpop.permute.xlu0 %1289
    %v1292 = vsel %vm354, %v1288, 0
    %v1295 = vsel %vm354, %v1290, 0
    %1297 = vmatprep.subr.bf16.mxu0 0
    %1298 = vmatpush1.bf16.xpose.msra.mxu0 %v1295
    %1299 = vmatprep.subr.bf16.mxu0 0
    %1300 = vmatpush1.bf16.xpose.msra.mxu0 0
    %1301 = vmatprep.subr.bf16.mxu0 0
    %1302 = vmatpush1.bf16.xpose.msra.mxu0 0
    %1303 = vmatprep.subr.bf16.mxu0 0
    %1304 = vmatpush1.bf16.xpose.msra.mxu0 0
    %1305 = vmatprep.subr.bf16.mxu0 0
    %1306 = vmatpush1.bf16.xpose.msra.mxu0 0
    %1307 = vmatprep.subr.bf16.mxu0 0
    %1308 = vmatpush1.bf16.xpose.msra.mxu0 0
    %1309 = vmatprep.subr.bf16.mxu0 0
    %1310 = vmatpush1.bf16.xpose.msra.mxu0 0
    %1311 = vmatprep.subr.bf16.mxu0 0
    %1312 = vmatpush1.bf16.xpose.msra.mxu0 0
    %1313 = vmatprep.subr.bf16.mxu0 0
    %1314 = vmatpush1.bf16.xpose.msra.mxu0 0
    %1315 = vmatprep.subr.bf16.mxu0 0
    %1316 = vmatpush1.bf16.xpose.msra.mxu0 0
    %1317 = vmatprep.subr.bf16.mxu0 0
    %1318 = vmatpush1.bf16.xpose.msra.mxu0 0
    %1319 = vmatprep.subr.bf16.mxu0 0
    %1320 = vmatpush1.bf16.xpose.msra.mxu0 0
    %1321 = vmatprep.subr.bf16.mxu0 0
    %1322 = vmatpush1.bf16.xpose.msra.mxu0 0
    %1323 = vmatprep.subr.bf16.mxu0 0
    %1324 = vmatpush1.bf16.xpose.msra.mxu0 0
    %1325 = vmatprep.subr.bf16.mxu0 0
    %1326 = vmatpush1.bf16.xpose.msra.mxu0 0
    %1327 = vmatprep.subr.bf16.mxu0 0
    %1328 = vmatpush1.bf16.xpose.msra.mxu0 0
    %1329 = vmatprep.mubr.bf16.mxu0 0
    %1330 = vmatmul.mubr.bf16.gmra.mrb[0].mxu0 %v1292
    %v1331 = vpop.f32.mrb[0].mxu0
    %v1332 = vadd.f32 0.0, %v1331
    %v1333 = vpop.f32.mrb[0].mxu0
    %v1334 = vpop.f32.mrb[0].mxu0
    %v1335 = vadd.f32 0.0, %v1334
    %v1336 = vpop.f32.mrb[0].mxu0
    %1337 = vdwg.mxu0
    %v1338 = vmul.f32 %v1281, 0.17677669
    %v1339 = vmul.f32 %v1284, 0.17677669
    %v1340 = vmul.f32 %v1332, 0.17677669
    %v1341 = vmul.f32 %v1335, 0.17677669
    %v1342 = vadd.f32 %v1338, %v834
    %v1343 = vadd.f32 %v1339, %v834
    %v1344 = vadd.f32 %v1340, %v838
    %v1345 = vadd.f32 %v1341, %v838
    %v1346 = vsel %vm845, %v1342, -inf
    %1347 = vmax.xlane.f32.xlu0 %v1346
    %v1348 = vpop.xlane.xlu0 %1347
    %v1349 = vsel %vm845, %v1343, -inf
    %1350 = vmax.xlane.f32.xlu0 %v1349
    %v1351 = vpop.xlane.xlu0 %1350
    %v1352 = vsel %vm845, %v1344, -inf
    %1353 = vmax.xlane.f32.xlu0 %v1352
    %v1354 = vpop.xlane.xlu0 %1353
    %v1355 = vsel %vm845, %v1345, -inf
    %1356 = vmax.xlane.f32.xlu0 %v1355
    %v1357 = vpop.xlane.xlu0 %1356
    %v1358 = vsub.f32 %v1342, %v1348
    %v1359 = vsub.f32 %v1343, %v1351
    %v1360 = vsub.f32 %v1344, %v1354
    %v1361 = vsub.f32 %v1345, %v1357
    %v1362 = vmul.f32 %v1358, 1.442695
    %v1363 = vpow.pop %v1362
    %v1364 = vmul.f32 %v1359, 1.442695
    %v1365 = vpow.pop %v1364
    %v1366 = vmul.f32 %v1360, 1.442695
    %v1367 = vpow.pop %v1366
    %v1368 = vmul.f32 %v1361, 1.442695
    %v1369 = vpow.pop %v1368
    %v1370 = vsel %vm845, %v1363, 0.0
    %1371 = vadd.xlane.f32.xlu0 %v1370
    %v1372 = vpop.xlane.xlu0 %1371
    %v1373 = vsel %vm845, %v1365, 0.0
    %1374 = vadd.xlane.f32.xlu0 %v1373
    %v1375 = vpop.xlane.xlu0 %1374
    %v1376 = vsel %vm845, %v1367, 0.0
    %1377 = vadd.xlane.f32.xlu0 %v1376
    %v1378 = vpop.xlane.xlu0 %1377
    %v1379 = vsel %vm845, %v1369, 0.0
    %1380 = vadd.xlane.f32.xlu0 %v1379
    %v1381 = vpop.xlane.xlu0 %1380
    %v1382 = vrcp.pop %v1372
    %v1383 = vrcp.pop %v1375
    %v1384 = vrcp.pop %v1378
    %v1385 = vrcp.pop %v1381
    %v1386 = vmul.f32 %v1363, %v1382
    %v1387 = vmul.f32 %v1365, %v1383
    %v1388 = vmul.f32 %v1367, %v1384
    %v1389 = vmul.f32 %v1369, %v1385
    %v1390 = vpack.c.bf16 %v1387, %v1386
    %v1391 = vpack.c.bf16 %v1389, %v1388
    %1392 = vrot.lane.b32.xlu0 %v729, 64
    %v1393 = vpop.permute.xlu0 %1392
    %v1396 = vsel %vm845, %v1390, 0
    %1398 = vmatprep.subr.bf16.mxu0 0
    %1399 = vmatpush1.bf16.msra.mxu0 %v1393
    %1400 = vmatprep.subr.bf16.mxu0 0
    %1401 = vmatpush1.bf16.msra.mxu0 0
    %1402 = vmatprep.subr.bf16.mxu0 0
    %1403 = vmatpush1.bf16.msra.mxu0 0
    %1404 = vmatprep.subr.bf16.mxu0 0
    %1405 = vmatpush1.bf16.msra.mxu0 0
    %1406 = vmatprep.subr.bf16.mxu0 0
    %1407 = vmatpush1.bf16.msra.mxu0 0
    %1408 = vmatprep.subr.bf16.mxu0 0
    %1409 = vmatpush1.bf16.msra.mxu0 0
    %1410 = vmatprep.subr.bf16.mxu0 0
    %1411 = vmatpush1.bf16.msra.mxu0 0
    %1412 = vmatprep.subr.bf16.mxu0 0
    %1413 = vmatpush1.bf16.msra.mxu0 0
    %1414 = vmatprep.subr.bf16.mxu0 0
    %1415 = vmatpush1.bf16.msra.mxu0 0
    %1416 = vmatprep.subr.bf16.mxu0 0
    %1417 = vmatpush1.bf16.msra.mxu0 0
    %1418 = vmatprep.subr.bf16.mxu0 0
    %1419 = vmatpush1.bf16.msra.mxu0 0
    %1420 = vmatprep.subr.bf16.mxu0 0
    %1421 = vmatpush1.bf16.msra.mxu0 0
    %1422 = vmatprep.subr.bf16.mxu0 0
    %1423 = vmatpush1.bf16.msra.mxu0 0
    %1424 = vmatprep.subr.bf16.mxu0 0
    %1425 = vmatpush1.bf16.msra.mxu0 0
    %1426 = vmatprep.subr.bf16.mxu0 0
    %1427 = vmatpush1.bf16.msra.mxu0 0
    %1428 = vmatprep.subr.bf16.mxu0 0
    %1429 = vmatpush1.bf16.msra.mxu0 0
    %1430 = vmatprep.mubr.bf16.mxu0 0
    %1431 = vmatmul.mubr.bf16.gmra.mrb[0].mxu0 %v1396
    %v1432 = vpop.f32.mrb[0].mxu0
    %v1433 = vadd.f32 0.0, %v1432
    %v1434 = vpop.f32.mrb[0].mxu0
    %v1435 = vpop.f32.mrb[0].mxu0
    %v1436 = vadd.f32 0.0, %v1435
    %v1437 = vpop.f32.mrb[0].mxu0
    %1438 = vdwg.mxu0
    %1439 = vrot.lane.b32.xlu0 %v730, 64
    %v1440 = vpop.permute.xlu0 %1439
    %v1443 = vsel %vm845, %v1391, 0
    %1445 = vmatprep.subr.bf16.mxu0 0
    %1446 = vmatpush1.bf16.msra.mxu0 %v1440
    %1447 = vmatprep.subr.bf16.mxu0 0
    %1448 = vmatpush1.bf16.msra.mxu0 0
    %1449 = vmatprep.subr.bf16.mxu0 0
    %1450 = vmatpush1.bf16.msra.mxu0 0
    %1451 = vmatprep.subr.bf16.mxu0 0
    %1452 = vmatpush1.bf16.msra.mxu0 0
    %1453 = vmatprep.subr.bf16.mxu0 0
    %1454 = vmatpush1.bf16.msra.mxu0 0
    %1455 = vmatprep.subr.bf16.mxu0 0
    %1456 = vmatpush1.bf16.msra.mxu0 0
    %1457 = vmatprep.subr.bf16.mxu0 0
    %1458 = vmatpush1.bf16.msra.mxu0 0
    %1459 = vmatprep.subr.bf16.mxu0 0
    %1460 = vmatpush1.bf16.msra.mxu0 0
    %1461 = vmatprep.subr.bf16.mxu0 0
    %1462 = vmatpush1.bf16.msra.mxu0 0
    %1463 = vmatprep.subr.bf16.mxu0 0
    %1464 = vmatpush1.bf16.msra.mxu0 0
    %1465 = vmatprep.subr.bf16.mxu0 0
    %1466 = vmatpush1.bf16.msra.mxu0 0
    %1467 = vmatprep.subr.bf16.mxu0 0
    %1468 = vmatpush1.bf16.msra.mxu0 0
    %1469 = vmatprep.subr.bf16.mxu0 0
    %1470 = vmatpush1.bf16.msra.mxu0 0
    %1471 = vmatprep.subr.bf16.mxu0 0
    %1472 = vmatpush1.bf16.msra.mxu0 0
    %1473 = vmatprep.subr.bf16.mxu0 0
    %1474 = vmatpush1.bf16.msra.mxu0 0
    %1475 = vmatprep.subr.bf16.mxu0 0
    %1476 = vmatpush1.bf16.msra.mxu0 0
    %1477 = vmatprep.mubr.bf16.mxu0 0
    %1478 = vmatmul.mubr.bf16.gmra.mrb[0].mxu0 %v1443
    %v1479 = vpop.f32.mrb[0].mxu0
    %v1480 = vadd.f32 0.0, %v1479
    %v1481 = vpop.f32.mrb[0].mxu0
    %v1482 = vpop.f32.mrb[0].mxu0
    %v1483 = vadd.f32 0.0, %v1482
    %v1484 = vpop.f32.mrb[0].mxu0
    %1485 = vdwg.mxu0
    %1486 = vrot.lane.b32.xlu0 %v725, 32
    %v1487 = vpop.permute.xlu0 %1486
    %1488 = vrot.lane.b32.xlu0 %v727, 32
    %v1489 = vpop.permute.xlu0 %1488
    %v1491 = vsel %vm354, %v1487, 0
    %v1494 = vsel %vm354, %v1489, 0
    %1496 = vmatprep.subr.bf16.mxu0 0
    %1497 = vmatpush1.bf16.xpose.msra.mxu0 %v1494
    %1498 = vmatprep.subr.bf16.mxu0 0
    %1499 = vmatpush1.bf16.xpose.msra.mxu0 0
    %1500 = vmatprep.subr.bf16.mxu0 0
    %1501 = vmatpush1.bf16.xpose.msra.mxu0 0
    %1502 = vmatprep.subr.bf16.mxu0 0
    %1503 = vmatpush1.bf16.xpose.msra.mxu0 0
    %1504 = vmatprep.subr.bf16.mxu0 0
    %1505 = vmatpush1.bf16.xpose.msra.mxu0 0
    %1506 = vmatprep.subr.bf16.mxu0 0
    %1507 = vmatpush1.bf16.xpose.msra.mxu0 0
    %1508 = vmatprep.subr.bf16.mxu0 0
    %1509 = vmatpush1.bf16.xpose.msra.mxu0 0
    %1510 = vmatprep.subr.bf16.mxu0 0
    %1511 = vmatpush1.bf16.xpose.msra.mxu0 0
    %1512 = vmatprep.subr.bf16.mxu0 0
    %1513 = vmatpush1.bf16.xpose.msra.mxu0 0
    %1514 = vmatprep.subr.bf16.mxu0 0
    %1515 = vmatpush1.bf16.xpose.msra.mxu0 0
    %1516 = vmatprep.subr.bf16.mxu0 0
    %1517 = vmatpush1.bf16.xpose.msra.mxu0 0
    %1518 = vmatprep.subr.bf16.mxu0 0
    %1519 = vmatpush1.bf16.xpose.msra.mxu0 0
    %1520 = vmatprep.subr.bf16.mxu0 0
    %1521 = vmatpush1.bf16.xpose.msra.mxu0 0
    %1522 = vmatprep.subr.bf16.mxu0 0
    %1523 = vmatpush1.bf16.xpose.msra.mxu0 0
    %1524 = vmatprep.subr.bf16.mxu0 0
    %1525 = vmatpush1.bf16.xpose.msra.mxu0 0
    %1526 = vmatprep.subr.bf16.mxu0 0
    %1527 = vmatpush1.bf16.xpose.msra.mxu0 0
    %1528 = vmatprep.mubr.bf16.mxu0 0
    %1529 = vmatmul.mubr.bf16.gmra.mrb[0].mxu0 %v1491
    %v1530 = vpop.f32.mrb[0].mxu0
    %v1531 = vadd.f32 0.0, %v1530
    %v1532 = vpop.f32.mrb[0].mxu0
    %v1533 = vpop.f32.mrb[0].mxu0
    %v1534 = vadd.f32 0.0, %v1533
    %v1535 = vpop.f32.mrb[0].mxu0
    %1536 = vdwg.mxu0
    %1537 = vrot.lane.b32.xlu0 %v726, 32
    %v1538 = vpop.permute.xlu0 %1537
    %1539 = vrot.lane.b32.xlu0 %v728, 32
    %v1540 = vpop.permute.xlu0 %1539
    %v1542 = vsel %vm354, %v1538, 0
    %v1545 = vsel %vm354, %v1540, 0
    %1547 = vmatprep.subr.bf16.mxu0 0
    %1548 = vmatpush1.bf16.xpose.msra.mxu0 %v1545
    %1549 = vmatprep.subr.bf16.mxu0 0
    %1550 = vmatpush1.bf16.xpose.msra.mxu0 0
    %1551 = vmatprep.subr.bf16.mxu0 0
    %1552 = vmatpush1.bf16.xpose.msra.mxu0 0
    %1553 = vmatprep.subr.bf16.mxu0 0
    %1554 = vmatpush1.bf16.xpose.msra.mxu0 0
    %1555 = vmatprep.subr.bf16.mxu0 0
    %1556 = vmatpush1.bf16.xpose.msra.mxu0 0
    %1557 = vmatprep.subr.bf16.mxu0 0
    %1558 = vmatpush1.bf16.xpose.msra.mxu0 0
    %1559 = vmatprep.subr.bf16.mxu0 0
    %1560 = vmatpush1.bf16.xpose.msra.mxu0 0
    %1561 = vmatprep.subr.bf16.mxu0 0
    %1562 = vmatpush1.bf16.xpose.msra.mxu0 0
    %1563 = vmatprep.subr.bf16.mxu0 0
    %1564 = vmatpush1.bf16.xpose.msra.mxu0 0
    %1565 = vmatprep.subr.bf16.mxu0 0
    %1566 = vmatpush1.bf16.xpose.msra.mxu0 0
    %1567 = vmatprep.subr.bf16.mxu0 0
    %1568 = vmatpush1.bf16.xpose.msra.mxu0 0
    %1569 = vmatprep.subr.bf16.mxu0 0
    %1570 = vmatpush1.bf16.xpose.msra.mxu0 0
    %1571 = vmatprep.subr.bf16.mxu0 0
    %1572 = vmatpush1.bf16.xpose.msra.mxu0 0
    %1573 = vmatprep.subr.bf16.mxu0 0
    %1574 = vmatpush1.bf16.xpose.msra.mxu0 0
    %1575 = vmatprep.subr.bf16.mxu0 0
    %1576 = vmatpush1.bf16.xpose.msra.mxu0 0
    %1577 = vmatprep.subr.bf16.mxu0 0
    %1578 = vmatpush1.bf16.xpose.msra.mxu0 0
    %1579 = vmatprep.mubr.bf16.mxu0 0
    %1580 = vmatmul.mubr.bf16.gmra.mrb[0].mxu0 %v1542
    %v1581 = vpop.f32.mrb[0].mxu0
    %v1582 = vadd.f32 0.0, %v1581
    %v1583 = vpop.f32.mrb[0].mxu0
    %v1584 = vpop.f32.mrb[0].mxu0
    %v1585 = vadd.f32 0.0, %v1584
    %v1586 = vpop.f32.mrb[0].mxu0
    %1587 = vdwg.mxu0
    %v1588 = vmul.f32 %v1531, 0.17677669
    %v1589 = vmul.f32 %v1534, 0.17677669
    %v1590 = vmul.f32 %v1582, 0.17677669
    %v1591 = vmul.f32 %v1585, 0.17677669
    %v1592 = vadd.f32 %v1588, %v834
    %v1593 = vadd.f32 %v1589, %v834
    %v1594 = vadd.f32 %v1590, %v838
    %v1595 = vadd.f32 %v1591, %v838
    %v1596 = vsel %vm845, %v1592, -inf
    %1597 = vmax.xlane.f32.xlu0 %v1596
    %v1598 = vpop.xlane.xlu0 %1597
    %v1599 = vsel %vm845, %v1593, -inf
    %1600 = vmax.xlane.f32.xlu0 %v1599
    %v1601 = vpop.xlane.xlu0 %1600
    %v1602 = vsel %vm845, %v1594, -inf
    %1603 = vmax.xlane.f32.xlu0 %v1602
    %v1604 = vpop.xlane.xlu0 %1603
    %v1605 = vsel %vm845, %v1595, -inf
    %1606 = vmax.xlane.f32.xlu0 %v1605
    %v1607 = vpop.xlane.xlu0 %1606
    %v1608 = vsub.f32 %v1592, %v1598
    %v1609 = vsub.f32 %v1593, %v1601
    %v1610 = vsub.f32 %v1594, %v1604
    %v1611 = vsub.f32 %v1595, %v1607
    %v1612 = vmul.f32 %v1608, 1.442695
    %v1613 = vpow.pop %v1612
    %v1614 = vmul.f32 %v1609, 1.442695
    %v1615 = vpow.pop %v1614
    %v1616 = vmul.f32 %v1610, 1.442695
    %v1617 = vpow.pop %v1616
    %v1618 = vmul.f32 %v1611, 1.442695
    %v1619 = vpow.pop %v1618
    %v1620 = vsel %vm845, %v1613, 0.0
    %1621 = vadd.xlane.f32.xlu0 %v1620
    %v1622 = vpop.xlane.xlu0 %1621
    %v1623 = vsel %vm845, %v1615, 0.0
    %1624 = vadd.xlane.f32.xlu0 %v1623
    %v1625 = vpop.xlane.xlu0 %1624
    %v1626 = vsel %vm845, %v1617, 0.0
    %1627 = vadd.xlane.f32.xlu0 %v1626
    %v1628 = vpop.xlane.xlu0 %1627
    %v1629 = vsel %vm845, %v1619, 0.0
    %1630 = vadd.xlane.f32.xlu0 %v1629
    %v1631 = vpop.xlane.xlu0 %1630
    %v1632 = vrcp.pop %v1622
    %v1633 = vrcp.pop %v1625
    %v1634 = vrcp.pop %v1628
    %v1635 = vrcp.pop %v1631
    %v1636 = vmul.f32 %v1613, %v1632
    %v1637 = vmul.f32 %v1615, %v1633
    %v1638 = vmul.f32 %v1617, %v1634
    %v1639 = vmul.f32 %v1619, %v1635
    %v1640 = vpack.c.bf16 %v1637, %v1636
    %v1641 = vpack.c.bf16 %v1639, %v1638
    %1642 = vrot.lane.b32.xlu0 %v729, 32
    %v1643 = vpop.permute.xlu0 %1642
    %v1646 = vsel %vm845, %v1640, 0
    %1648 = vmatprep.subr.bf16.mxu0 0
    %1649 = vmatpush1.bf16.msra.mxu0 %v1643
    %1650 = vmatprep.subr.bf16.mxu0 0
    %1651 = vmatpush1.bf16.msra.mxu0 0
    %1652 = vmatprep.subr.bf16.mxu0 0
    %1653 = vmatpush1.bf16.msra.mxu0 0
    %1654 = vmatprep.subr.bf16.mxu0 0
    %1655 = vmatpush1.bf16.msra.mxu0 0
    %1656 = vmatprep.subr.bf16.mxu0 0
    %1657 = vmatpush1.bf16.msra.mxu0 0
    %1658 = vmatprep.subr.bf16.mxu0 0
    %1659 = vmatpush1.bf16.msra.mxu0 0
    %1660 = vmatprep.subr.bf16.mxu0 0
    %1661 = vmatpush1.bf16.msra.mxu0 0
    %1662 = vmatprep.subr.bf16.mxu0 0
    %1663 = vmatpush1.bf16.msra.mxu0 0
    %1664 = vmatprep.subr.bf16.mxu0 0
    %1665 = vmatpush1.bf16.msra.mxu0 0
    %1666 = vmatprep.subr.bf16.mxu0 0
    %1667 = vmatpush1.bf16.msra.mxu0 0
    %1668 = vmatprep.subr.bf16.mxu0 0
    %1669 = vmatpush1.bf16.msra.mxu0 0
    %1670 = vmatprep.subr.bf16.mxu0 0
    %1671 = vmatpush1.bf16.msra.mxu0 0
    %1672 = vmatprep.subr.bf16.mxu0 0
    %1673 = vmatpush1.bf16.msra.mxu0 0
    %1674 = vmatprep.subr.bf16.mxu0 0
    %1675 = vmatpush1.bf16.msra.mxu0 0
    %1676 = vmatprep.subr.bf16.mxu0 0
    %1677 = vmatpush1.bf16.msra.mxu0 0
    %1678 = vmatprep.subr.bf16.mxu0 0
    %1679 = vmatpush1.bf16.msra.mxu0 0
    %1680 = vmatprep.mubr.bf16.mxu0 0
    %1681 = vmatmul.mubr.bf16.gmra.mrb[0].mxu0 %v1646
    %v1682 = vpop.f32.mrb[0].mxu0
    %v1683 = vadd.f32 0.0, %v1682
    %v1684 = vpop.f32.mrb[0].mxu0
    %v1685 = vpop.f32.mrb[0].mxu0
    %v1686 = vadd.f32 0.0, %v1685
    %v1687 = vpop.f32.mrb[0].mxu0
    %1688 = vdwg.mxu0
    %1689 = vrot.lane.b32.xlu0 %v730, 32
    %v1690 = vpop.permute.xlu0 %1689
    %v1693 = vsel %vm845, %v1641, 0
    %1695 = vmatprep.subr.bf16.mxu0 0
    %1696 = vmatpush1.bf16.msra.mxu0 %v1690
    %1697 = vmatprep.subr.bf16.mxu0 0
    %1698 = vmatpush1.bf16.msra.mxu0 0
    %1699 = vmatprep.subr.bf16.mxu0 0
    %1700 = vmatpush1.bf16.msra.mxu0 0
    %1701 = vmatprep.subr.bf16.mxu0 0
    %1702 = vmatpush1.bf16.msra.mxu0 0
    %1703 = vmatprep.subr.bf16.mxu0 0
    %1704 = vmatpush1.bf16.msra.mxu0 0
    %1705 = vmatprep.subr.bf16.mxu0 0
    %1706 = vmatpush1.bf16.msra.mxu0 0
    %1707 = vmatprep.subr.bf16.mxu0 0
    %1708 = vmatpush1.bf16.msra.mxu0 0
    %1709 = vmatprep.subr.bf16.mxu0 0
    %1710 = vmatpush1.bf16.msra.mxu0 0
    %1711 = vmatprep.subr.bf16.mxu0 0
    %1712 = vmatpush1.bf16.msra.mxu0 0
    %1713 = vmatprep.subr.bf16.mxu0 0
    %1714 = vmatpush1.bf16.msra.mxu0 0
    %1715 = vmatprep.subr.bf16.mxu0 0
    %1716 = vmatpush1.bf16.msra.mxu0 0
    %1717 = vmatprep.subr.bf16.mxu0 0
    %1718 = vmatpush1.bf16.msra.mxu0 0
    %1719 = vmatprep.subr.bf16.mxu0 0
    %1720 = vmatpush1.bf16.msra.mxu0 0
    %1721 = vmatprep.subr.bf16.mxu0 0
    %1722 = vmatpush1.bf16.msra.mxu0 0
    %1723 = vmatprep.subr.bf16.mxu0 0
    %1724 = vmatpush1.bf16.msra.mxu0 0
    %1725 = vmatprep.subr.bf16.mxu0 0
    %1726 = vmatpush1.bf16.msra.mxu0 0
    %1727 = vmatprep.mubr.bf16.mxu0 0
    %1728 = vmatmul.mubr.bf16.gmra.mrb[0].mxu0 %v1693
    %v1729 = vpop.f32.mrb[0].mxu0
    %v1730 = vadd.f32 0.0, %v1729
    %v1731 = vpop.f32.mrb[0].mxu0
    %v1732 = vpop.f32.mrb[0].mxu0
    %v1733 = vadd.f32 0.0, %v1732
    %v1734 = vpop.f32.mrb[0].mxu0
    %1735 = vdwg.mxu0
    %1740 = vrot.lane.b32.xlu0 %v1182, 32
    %v1741 = vpop.permute.xlu0 %1740
    %1742 = vrot.lane.b32.xlu0 %v1185, 32
    %v1743 = vpop.permute.xlu0 %1742
    %1744 = vrot.lane.b32.xlu0 %v1230, 32
    %v1745 = vpop.permute.xlu0 %1744
    %1746 = vrot.lane.b32.xlu0 %v1233, 32
    %v1747 = vpop.permute.xlu0 %1746
    %1756 = vrot.lane.b32.xlu0 %v1433, 64
    %v1757 = vpop.permute.xlu0 %1756
    %1758 = vrot.lane.b32.xlu0 %v1436, 64
    %v1759 = vpop.permute.xlu0 %1758
    %1760 = vrot.lane.b32.xlu0 %v1480, 64
    %v1761 = vpop.permute.xlu0 %1760
    %1762 = vrot.lane.b32.xlu0 %v1483, 64
    %v1763 = vpop.permute.xlu0 %1762
    %1772 = vrot.lane.b32.xlu0 %v1683, 96
    %v1773 = vpop.permute.xlu0 %1772
    %1774 = vrot.lane.b32.xlu0 %v1686, 96
    %v1775 = vpop.permute.xlu0 %1774
    %1776 = vrot.lane.b32.xlu0 %v1730, 96
    %v1777 = vpop.permute.xlu0 %1776
    %1778 = vrot.lane.b32.xlu0 %v1733, 96
    %v1779 = vpop.permute.xlu0 %1778
    %v1784 = vsel %vm354, %v930, %v1741
    %v1785 = vsel %vm354, %v933, %v1743
    %v1786 = vsel %vm354, %v974, %v1745
    %v1787 = vsel %vm354, %v977, %v1747
    %vm1788 = vcmask 523264
    %v1789 = vsel %vm1788, %v1784, %v1757
    %v1790 = vsel %vm1788, %v1785, %v1759
    %v1791 = vsel %vm1788, %v1786, %v1761
    %v1792 = vsel %vm1788, %v1787, %v1763
    %vm1793 = vcmask 785408
    %v1794 = vsel %vm1793, %v1789, %v1773
    %v1795 = vsel %vm1793, %v1790, %v1775
    %v1796 = vsel %vm1793, %v1791, %v1777
    %v1797 = vsel %vm1793, %v1792, %v1779
    %v1798 = vpack.c.bf16 %v1795, %v1794
    %v1799 = vpack.c.bf16 %v1797, %v1796
    %v1800 = vlaneseq
    %v1801 = vshrl.u32 %v1800, 7
    %v1802 = vsub.s32 2, %v1801
    %v1803 = vrot.slane %v150, %v1802
    %v1820 = vunpack.c.l.b16 %v185
    %v1821 = vunpack.c.l.b16 %v186
    %v1822 = vunpack.c.l.b16 %v187
    %v1823 = vunpack.c.l.b16 %v188
    %v1824 = vunpack.c.l.b16 %v189
    %v1825 = vunpack.c.l.b16 %v190
    %v1826 = vunpack.c.l.b16 %v191
    %v1827 = vunpack.c.l.b16 %v192
    %v1828 = vunpack.c.l.b16 %v193
    %v1829 = vunpack.c.l.b16 %v194
    %v1830 = vunpack.c.l.b16 %v195
    %v1831 = vunpack.c.l.b16 %v196
    %v1832 = vunpack.c.l.b16 %v197
    %v1833 = vunpack.c.l.b16 %v198
    %v1834 = vunpack.c.l.b16 %v199
    %v1835 = vunpack.c.l.b16 %v200
    %v1836 = vpack.c.b16 %v1821, %v1820
    %v1837 = vpack.c.b16 %v1823, %v1822
    %v1838 = vpack.c.b16 %v1825, %v1824
    %v1839 = vpack.c.b16 %v1827, %v1826
    %v1840 = vpack.c.b16 %v1829, %v1828
    %v1841 = vpack.c.b16 %v1831, %v1830
    %v1842 = vpack.c.b16 %v1833, %v1832
    %v1843 = vpack.c.b16 %v1835, %v1834
    %1852 = vmatprep.subr.bf16.mxu0 0
    %1853 = vmatpush1.bf16.msra.mxu0 %v1836
    %1854 = vmatprep.subr.bf16.mxu0 0
    %1855 = vmatpush1.bf16.msra.mxu0 %v1837
    %1856 = vmatprep.subr.bf16.mxu0 0
    %1857 = vmatpush1.bf16.msra.mxu0 %v1838
    %1858 = vmatprep.subr.bf16.mxu0 0
    %1859 = vmatpush1.bf16.msra.mxu0 %v1839
    %1860 = vmatprep.subr.bf16.mxu0 0
    %1861 = vmatpush1.bf16.msra.mxu0 %v1840
    %1862 = vmatprep.subr.bf16.mxu0 0
    %1863 = vmatpush1.bf16.msra.mxu0 %v1841
    %1864 = vmatprep.subr.bf16.mxu0 0
    %1865 = vmatpush1.bf16.msra.mxu0 %v1842
    %1866 = vmatprep.subr.bf16.mxu0 0
    %1867 = vmatpush1.bf16.msra.mxu0 %v1843
    %1868 = vmatprep.subr.bf16.mxu0 0
    %1869 = vmatpush1.bf16.msra.mxu0 0
    %1870 = vmatprep.subr.bf16.mxu0 0
    %1871 = vmatpush1.bf16.msra.mxu0 0
    %1872 = vmatprep.subr.bf16.mxu0 0
    %1873 = vmatpush1.bf16.msra.mxu0 0
    %1874 = vmatprep.subr.bf16.mxu0 0
    %1875 = vmatpush1.bf16.msra.mxu0 0
    %1876 = vmatprep.subr.bf16.mxu0 0
    %1877 = vmatpush1.bf16.msra.mxu0 0
    %1878 = vmatprep.subr.bf16.mxu0 0
    %1879 = vmatpush1.bf16.msra.mxu0 0
    %1880 = vmatprep.subr.bf16.mxu0 0
    %1881 = vmatpush1.bf16.msra.mxu0 0
    %1882 = vmatprep.subr.bf16.mxu0 0
    %1883 = vmatpush1.bf16.msra.mxu0 0
    %1884 = vmatprep.mubr.bf16.mxu0 0
    %1885 = vmatmul.mubr.bf16.gmra.mrb[0].mxu0 %v1798
    %v1886 = vpop.f32.mrb[0].mxu0
    %v1887 = vadd.f32 %v1803, %v1886
    %v1888 = vpop.f32.mrb[0].mxu0
    %v1889 = vpop.f32.mrb[0].mxu0
    %v1890 = vadd.f32 %v1803, %v1889
    %v1891 = vpop.f32.mrb[0].mxu0
    %1892 = vmatprep.mubr.bf16.mxu0 0
    %1893 = vmatmul.mubr.bf16.gmra.mrb[0].mxu0 %v1799
    %v1894 = vpop.f32.mrb[0].mxu0
    %v1895 = vadd.f32 %v1803, %v1894
    %v1896 = vpop.f32.mrb[0].mxu0
    %v1897 = vpop.f32.mrb[0].mxu0
    %v1898 = vadd.f32 %v1803, %v1897
    %v1899 = vpop.f32.mrb[0].mxu0
    %1900 = vdwg.mxu0
    %v1901 = vadd.f32 %v467, %v1887
    %v1902 = vadd.f32 %v468, %v1890
    %v1903 = vadd.f32 %v469, %v1895
    %v1904 = vadd.f32 %v470, %v1898
    %1905 = vadd.xlane.f32.xlu0 %v1901
    %v1906 = vpop.xlane.xlu0 %1905
    %1907 = vadd.xlane.f32.xlu0 %v1902
    %v1908 = vpop.xlane.xlu0 %1907
    %1909 = vadd.xlane.f32.xlu0 %v1903
    %v1910 = vpop.xlane.xlu0 %1909
    %1911 = vadd.xlane.f32.xlu0 %v1904
    %v1912 = vpop.xlane.xlu0 %1911
    %v1913 = vmul.f32 %v1906, %v418
    %v1914 = vmul.f32 %v1908, %v418
    %v1915 = vmul.f32 %v1910, %v418
    %v1916 = vmul.f32 %v1912, %v418
    %v1917 = vsub.f32 %v1901, %v1913
    %v1918 = vsub.f32 %v1902, %v1914
    %v1919 = vsub.f32 %v1903, %v1915
    %v1920 = vsub.f32 %v1904, %v1916
    %v1921 = vmul.f32 %v1917, %v1917
    %v1922 = vmul.f32 %v1918, %v1918
    %v1923 = vmul.f32 %v1919, %v1919
    %v1924 = vmul.f32 %v1920, %v1920
    %1925 = vadd.xlane.f32.xlu0 %v1921
    %v1926 = vpop.xlane.xlu0 %1925
    %1927 = vadd.xlane.f32.xlu0 %v1922
    %v1928 = vpop.xlane.xlu0 %1927
    %1929 = vadd.xlane.f32.xlu0 %v1923
    %v1930 = vpop.xlane.xlu0 %1929
    %1931 = vadd.xlane.f32.xlu0 %v1924
    %v1932 = vpop.xlane.xlu0 %1931
    %v1933 = vmul.f32 %v1926, %v418
    %v1934 = vmul.f32 %v1928, %v418
    %v1935 = vmul.f32 %v1930, %v418
    %v1936 = vmul.f32 %v1932, %v418
    %v1937 = vadd.f32 %v1933, 1e-05
    %v1938 = vadd.f32 %v1934, 1e-05
    %v1939 = vadd.f32 %v1935, 1e-05
    %v1940 = vadd.f32 %v1936, 1e-05
    %v1941 = vrsqrt.pop %v1937
    %v1942 = vrsqrt.pop %v1938
    %v1943 = vrsqrt.pop %v1939
    %v1944 = vrsqrt.pop %v1940
    %v1945 = vmul.f32 %v1917, %v1941
    %v1946 = vmul.f32 %v1918, %v1942
    %v1947 = vmul.f32 %v1919, %v1943
    %v1948 = vmul.f32 %v1920, %v1944
    %v1949 = vlaneseq
    %v1950 = vshrl.u32 %v1949, 7
    %v1951 = vsub.s32 4, %v1950
    %v1952 = vrot.slane %v150, %v1951
    %v1953 = vmul.f32 %v1945, %v1952
    %v1954 = vmul.f32 %v1946, %v1952
    %v1955 = vmul.f32 %v1947, %v1952
    %v1956 = vmul.f32 %v1948, %v1952
    %v1957 = vlaneseq
    %v1958 = vshrl.u32 %v1957, 7
    %v1959 = vsub.s32 5, %v1958
    %v1960 = vrot.slane %v150, %v1959
    %v1961 = vadd.f32 %v1953, %v1960
    %v1962 = vadd.f32 %v1954, %v1960
    %v1963 = vadd.f32 %v1955, %v1960
    %v1964 = vadd.f32 %v1956, %v1960
    %v1965 = vpack.c.bf16 %v1962, %v1961
    %v1966 = vpack.c.bf16 %v1964, %v1963
    %v1968 = vlaneseq
    %v1969 = vshrl.u32 %v1968, 7
    %v1970 = vsub.s32 0, %v1969
    %v1971 = vrot.slane %v233, %v1970
    %v1972 = vlaneseq
    %v1973 = vshrl.u32 %v1972, 7
    %v1974 = vsub.s32 1, %v1973
    %v1975 = vrot.slane %v233, %v1974
    %v1976 = vlaneseq
    %v1977 = vshrl.u32 %v1976, 7
    %v1978 = vsub.s32 2, %v1977
    %v1979 = vrot.slane %v233, %v1978
    %v1980 = vlaneseq
    %v1981 = vshrl.u32 %v1980, 7
    %v1982 = vsub.s32 3, %v1981
    %v1983 = vrot.slane %v233, %v1982
    %v2020 = vunpack.c.l.b16 %v201
    %v2021 = vunpack.c.h.b16 %v201
    %v2022 = vunpack.c.l.b16 %v202
    %v2023 = vunpack.c.h.b16 %v202
    %v2024 = vunpack.c.l.b16 %v203
    %v2025 = vunpack.c.h.b16 %v203
    %v2026 = vunpack.c.l.b16 %v204
    %v2027 = vunpack.c.h.b16 %v204
    %v2028 = vunpack.c.l.b16 %v205
    %v2029 = vunpack.c.h.b16 %v205
    %v2030 = vunpack.c.l.b16 %v206
    %v2031 = vunpack.c.h.b16 %v206
    %v2032 = vunpack.c.l.b16 %v207
    %v2033 = vunpack.c.h.b16 %v207
    %v2034 = vunpack.c.l.b16 %v208
    %v2035 = vunpack.c.h.b16 %v208
    %v2036 = vunpack.c.l.b16 %v209
    %v2037 = vunpack.c.h.b16 %v209
    %v2038 = vunpack.c.l.b16 %v210
    %v2039 = vunpack.c.h.b16 %v210
    %v2040 = vunpack.c.l.b16 %v211
    %v2041 = vunpack.c.h.b16 %v211
    %v2042 = vunpack.c.l.b16 %v212
    %v2043 = vunpack.c.h.b16 %v212
    %v2044 = vunpack.c.l.b16 %v213
    %v2045 = vunpack.c.h.b16 %v213
    %v2046 = vunpack.c.l.b16 %v214
    %v2047 = vunpack.c.h.b16 %v214
    %v2048 = vunpack.c.l.b16 %v215
    %v2049 = vunpack.c.h.b16 %v215
    %v2050 = vunpack.c.l.b16 %v216
    %v2051 = vunpack.c.h.b16 %v216
    %v2052 = vunpack.c.l.b16 %v217
    %v2053 = vunpack.c.h.b16 %v217
    %v2054 = vunpack.c.l.b16 %v218
    %v2055 = vunpack.c.h.b16 %v218
    %v2056 = vunpack.c.l.b16 %v219
    %v2057 = vunpack.c.h.b16 %v219
    %v2058 = vunpack.c.l.b16 %v220
    %v2059 = vunpack.c.h.b16 %v220
    %v2060 = vunpack.c.l.b16 %v221
    %v2061 = vunpack.c.h.b16 %v221
    %v2062 = vunpack.c.l.b16 %v222
    %v2063 = vunpack.c.h.b16 %v222
    %v2064 = vunpack.c.l.b16 %v223
    %v2065 = vunpack.c.h.b16 %v223
    %v2066 = vunpack.c.l.b16 %v224
    %v2067 = vunpack.c.h.b16 %v224
    %v2068 = vunpack.c.l.b16 %v225
    %v2069 = vunpack.c.h.b16 %v225
    %v2070 = vunpack.c.l.b16 %v226
    %v2071 = vunpack.c.h.b16 %v226
    %v2072 = vunpack.c.l.b16 %v227
    %v2073 = vunpack.c.h.b16 %v227
    %v2074 = vunpack.c.l.b16 %v228
    %v2075 = vunpack.c.h.b16 %v228
    %v2076 = vunpack.c.l.b16 %v229
    %v2077 = vunpack.c.h.b16 %v229
    %v2078 = vunpack.c.l.b16 %v230
    %v2079 = vunpack.c.h.b16 %v230
    %v2080 = vunpack.c.l.b16 %v231
    %v2081 = vunpack.c.h.b16 %v231
    %v2082 = vunpack.c.l.b16 %v232
    %v2083 = vunpack.c.h.b16 %v232
    %v2084 = vpack.c.b16 %v2024, %v2020
    %v2085 = vpack.c.b16 %v2025, %v2021
    %v2086 = vpack.c.b16 %v2026, %v2022
    %v2087 = vpack.c.b16 %v2027, %v2023
    %v2088 = vpack.c.b16 %v2032, %v2028
    %v2089 = vpack.c.b16 %v2033, %v2029
    %v2090 = vpack.c.b16 %v2034, %v2030
    %v2091 = vpack.c.b16 %v2035, %v2031
    %v2092 = vpack.c.b16 %v2040, %v2036
    %v2093 = vpack.c.b16 %v2041, %v2037
    %v2094 = vpack.c.b16 %v2042, %v2038
    %v2095 = vpack.c.b16 %v2043, %v2039
    %v2096 = vpack.c.b16 %v2048, %v2044
    %v2097 = vpack.c.b16 %v2049, %v2045
    %v2098 = vpack.c.b16 %v2050, %v2046
    %v2099 = vpack.c.b16 %v2051, %v2047
    %v2100 = vpack.c.b16 %v2056, %v2052
    %v2101 = vpack.c.b16 %v2057, %v2053
    %v2102 = vpack.c.b16 %v2058, %v2054
    %v2103 = vpack.c.b16 %v2059, %v2055
    %v2104 = vpack.c.b16 %v2064, %v2060
    %v2105 = vpack.c.b16 %v2065, %v2061
    %v2106 = vpack.c.b16 %v2066, %v2062
    %v2107 = vpack.c.b16 %v2067, %v2063
    %v2108 = vpack.c.b16 %v2072, %v2068
    %v2109 = vpack.c.b16 %v2073, %v2069
    %v2110 = vpack.c.b16 %v2074, %v2070
    %v2111 = vpack.c.b16 %v2075, %v2071
    %v2112 = vpack.c.b16 %v2080, %v2076
    %v2113 = vpack.c.b16 %v2081, %v2077
    %v2114 = vpack.c.b16 %v2082, %v2078
    %v2115 = vpack.c.b16 %v2083, %v2079
    %2148 = vmatprep.subr.bf16.mxu0 %v2085
    %2149 = vmatpush1.bf16.msra.mxu0 %v2084
    %2150 = vmatprep.subr.bf16.mxu0 %v2089
    %2151 = vmatpush1.bf16.msra.mxu0 %v2088
    %2152 = vmatprep.subr.bf16.mxu0 %v2093
    %2153 = vmatpush1.bf16.msra.mxu0 %v2092
    %2154 = vmatprep.subr.bf16.mxu0 %v2097
    %2155 = vmatpush1.bf16.msra.mxu0 %v2096
    %2156 = vmatprep.subr.bf16.mxu0 %v2101
    %2157 = vmatpush1.bf16.msra.mxu0 %v2100
    %2158 = vmatprep.subr.bf16.mxu0 %v2105
    %2159 = vmatpush1.bf16.msra.mxu0 %v2104
    %2160 = vmatprep.subr.bf16.mxu0 %v2109
    %2161 = vmatpush1.bf16.msra.mxu0 %v2108
    %2162 = vmatprep.subr.bf16.mxu0 %v2113
    %2163 = vmatpush1.bf16.msra.mxu0 %v2112
    %2164 = vmatprep.subr.bf16.mxu0 0
    %2165 = vmatpush1.bf16.msra.mxu0 0
    %2166 = vmatprep.subr.bf16.mxu0 0
    %2167 = vmatpush1.bf16.msra.mxu0 0
    %2168 = vmatprep.subr.bf16.mxu0 0
    %2169 = vmatpush1.bf16.msra.mxu0 0
    %2170 = vmatprep.subr.bf16.mxu0 0
    %2171 = vmatpush1.bf16.msra.mxu0 0
    %2172 = vmatprep.subr.bf16.mxu0 0
    %2173 = vmatpush1.bf16.msra.mxu0 0
    %2174 = vmatprep.subr.bf16.mxu0 0
    %2175 = vmatpush1.bf16.msra.mxu0 0
    %2176 = vmatprep.subr.bf16.mxu0 0
    %2177 = vmatpush1.bf16.msra.mxu0 0
    %2178 = vmatprep.subr.bf16.mxu0 0
    %2179 = vmatpush1.bf16.msra.mxu0 0
    %2180 = vmatprep.mubr.bf16.mxu0 0
    %2181 = vmatmul.mubr.bf16.gmra.mrb[0].mxu0 %v1965
    %v2182 = vpop.f32.mrb[0].mxu0
    %v2183 = vadd.f32 %v1971, %v2182
    %v2184 = vpop.f32.mrb[0].mxu0
    %v2185 = vadd.f32 %v1975, %v2184
    %v2186 = vpop.f32.mrb[0].mxu0
    %v2187 = vadd.f32 %v1971, %v2186
    %v2188 = vpop.f32.mrb[0].mxu0
    %v2189 = vadd.f32 %v1975, %v2188
    %2190 = vmatprep.mubr.bf16.mxu0 0
    %2191 = vmatmul.mubr.bf16.gmra.mrb[0].mxu0 %v1966
    %v2192 = vpop.f32.mrb[0].mxu0
    %v2193 = vadd.f32 %v1971, %v2192
    %v2194 = vpop.f32.mrb[0].mxu0
    %v2195 = vadd.f32 %v1975, %v2194
    %v2196 = vpop.f32.mrb[0].mxu0
    %v2197 = vadd.f32 %v1971, %v2196
    %v2198 = vpop.f32.mrb[0].mxu0
    %v2199 = vadd.f32 %v1975, %v2198
    %2200 = vdwg.mxu0
    %2201 = vmatprep.subr.bf16.mxu0 %v2087
    %2202 = vmatpush1.bf16.msra.mxu0 %v2086
    %2203 = vmatprep.subr.bf16.mxu0 %v2091
    %2204 = vmatpush1.bf16.msra.mxu0 %v2090
    %2205 = vmatprep.subr.bf16.mxu0 %v2095
    %2206 = vmatpush1.bf16.msra.mxu0 %v2094
    %2207 = vmatprep.subr.bf16.mxu0 %v2099
    %2208 = vmatpush1.bf16.msra.mxu0 %v2098
    %2209 = vmatprep.subr.bf16.mxu0 %v2103
    %2210 = vmatpush1.bf16.msra.mxu0 %v2102
    %2211 = vmatprep.subr.bf16.mxu0 %v2107
    %2212 = vmatpush1.bf16.msra.mxu0 %v2106
    %2213 = vmatprep.subr.bf16.mxu0 %v2111
    %2214 = vmatpush1.bf16.msra.mxu0 %v2110
    %2215 = vmatprep.subr.bf16.mxu0 %v2115
    %2216 = vmatpush1.bf16.msra.mxu0 %v2114
    %2217 = vmatprep.subr.bf16.mxu0 0
    %2218 = vmatpush1.bf16.msra.mxu0 0
    %2219 = vmatprep.subr.bf16.mxu0 0
    %2220 = vmatpush1.bf16.msra.mxu0 0
    %2221 = vmatprep.subr.bf16.mxu0 0
    %2222 = vmatpush1.bf16.msra.mxu0 0
    %2223 = vmatprep.subr.bf16.mxu0 0
    %2224 = vmatpush1.bf16.msra.mxu0 0
    %2225 = vmatprep.subr.bf16.mxu0 0
    %2226 = vmatpush1.bf16.msra.mxu0 0
    %2227 = vmatprep.subr.bf16.mxu0 0
    %2228 = vmatpush1.bf16.msra.mxu0 0
    %2229 = vmatprep.subr.bf16.mxu0 0
    %2230 = vmatpush1.bf16.msra.mxu0 0
    %2231 = vmatprep.subr.bf16.mxu0 0
    %2232 = vmatpush1.bf16.msra.mxu0 0
    %2233 = vmatprep.mubr.bf16.mxu0 0
    %2234 = vmatmul.mubr.bf16.gmra.mrb[0].mxu0 %v1965
    %v2235 = vpop.f32.mrb[0].mxu0
    %v2236 = vadd.f32 %v1979, %v2235
    %v2237 = vpop.f32.mrb[0].mxu0
    %v2238 = vadd.f32 %v1983, %v2237
    %v2239 = vpop.f32.mrb[0].mxu0
    %v2240 = vadd.f32 %v1979, %v2239
    %v2241 = vpop.f32.mrb[0].mxu0
    %v2242 = vadd.f32 %v1983, %v2241
    %2243 = vmatprep.mubr.bf16.mxu0 0
    %2244 = vmatmul.mubr.bf16.gmra.mrb[0].mxu0 %v1966
    %v2245 = vpop.f32.mrb[0].mxu0
    %v2246 = vadd.f32 %v1979, %v2245
    %v2247 = vpop.f32.mrb[0].mxu0
    %v2248 = vadd.f32 %v1983, %v2247
    %v2249 = vpop.f32.mrb[0].mxu0
    %v2250 = vadd.f32 %v1979, %v2249
    %v2251 = vpop.f32.mrb[0].mxu0
    %v2252 = vadd.f32 %v1983, %v2251
    %2253 = vdwg.mxu0
    %v2254 = vmul.f32 %v2183, %v2183
    %v2255 = vmul.f32 %v2185, %v2185
    %v2256 = vmul.f32 %v2236, %v2236
    %v2257 = vmul.f32 %v2238, %v2238
    %v2258 = vmul.f32 %v2187, %v2187
    %v2259 = vmul.f32 %v2189, %v2189
    %v2260 = vmul.f32 %v2240, %v2240
    %v2261 = vmul.f32 %v2242, %v2242
    %v2262 = vmul.f32 %v2193, %v2193
    %v2263 = vmul.f32 %v2195, %v2195
    %v2264 = vmul.f32 %v2246, %v2246
    %v2265 = vmul.f32 %v2248, %v2248
    %v2266 = vmul.f32 %v2197, %v2197
    %v2267 = vmul.f32 %v2199, %v2199
    %v2268 = vmul.f32 %v2250, %v2250
    %v2269 = vmul.f32 %v2252, %v2252
    %v2270 = vmul.f32 %v2183, %v2254
    %v2271 = vmul.f32 %v2185, %v2255
    %v2272 = vmul.f32 %v2236, %v2256
    %v2273 = vmul.f32 %v2238, %v2257
    %v2274 = vmul.f32 %v2187, %v2258
    %v2275 = vmul.f32 %v2189, %v2259
    %v2276 = vmul.f32 %v2240, %v2260
    %v2277 = vmul.f32 %v2242, %v2261
    %v2278 = vmul.f32 %v2193, %v2262
    %v2279 = vmul.f32 %v2195, %v2263
    %v2280 = vmul.f32 %v2246, %v2264
    %v2281 = vmul.f32 %v2248, %v2265
    %v2282 = vmul.f32 %v2197, %v2266
    %v2283 = vmul.f32 %v2199, %v2267
    %v2284 = vmul.f32 %v2250, %v2268
    %v2285 = vmul.f32 %v2252, %v2269
    %v2286 = vmul.f32 %v2270, 0.044715
    %v2287 = vmul.f32 %v2271, 0.044715
    %v2288 = vmul.f32 %v2272, 0.044715
    %v2289 = vmul.f32 %v2273, 0.044715
    %v2290 = vmul.f32 %v2274, 0.044715
    %v2291 = vmul.f32 %v2275, 0.044715
    %v2292 = vmul.f32 %v2276, 0.044715
    %v2293 = vmul.f32 %v2277, 0.044715
    %v2294 = vmul.f32 %v2278, 0.044715
    %v2295 = vmul.f32 %v2279, 0.044715
    %v2296 = vmul.f32 %v2280, 0.044715
    %v2297 = vmul.f32 %v2281, 0.044715
    %v2298 = vmul.f32 %v2282, 0.044715
    %v2299 = vmul.f32 %v2283, 0.044715
    %v2300 = vmul.f32 %v2284, 0.044715
    %v2301 = vmul.f32 %v2285, 0.044715
    %v2302 = vadd.f32 %v2183, %v2286
    %v2303 = vadd.f32 %v2185, %v2287
    %v2304 = vadd.f32 %v2236, %v2288
    %v2305 = vadd.f32 %v2238, %v2289
    %v2306 = vadd.f32 %v2187, %v2290
    %v2307 = vadd.f32 %v2189, %v2291
    %v2308 = vadd.f32 %v2240, %v2292
    %v2309 = vadd.f32 %v2242, %v2293
    %v2310 = vadd.f32 %v2193, %v2294
    %v2311 = vadd.f32 %v2195, %v2295
    %v2312 = vadd.f32 %v2246, %v2296
    %v2313 = vadd.f32 %v2248, %v2297
    %v2314 = vadd.f32 %v2197, %v2298
    %v2315 = vadd.f32 %v2199, %v2299
    %v2316 = vadd.f32 %v2250, %v2300
    %v2317 = vadd.f32 %v2252, %v2301
    %v2318 = vmul.f32 %v2302, 0.7978846
    %v2319 = vmul.f32 %v2303, 0.7978846
    %v2320 = vmul.f32 %v2304, 0.7978846
    %v2321 = vmul.f32 %v2305, 0.7978846
    %v2322 = vmul.f32 %v2306, 0.7978846
    %v2323 = vmul.f32 %v2307, 0.7978846
    %v2324 = vmul.f32 %v2308, 0.7978846
    %v2325 = vmul.f32 %v2309, 0.7978846
    %v2326 = vmul.f32 %v2310, 0.7978846
    %v2327 = vmul.f32 %v2311, 0.7978846
    %v2328 = vmul.f32 %v2312, 0.7978846
    %v2329 = vmul.f32 %v2313, 0.7978846
    %v2330 = vmul.f32 %v2314, 0.7978846
    %v2331 = vmul.f32 %v2315, 0.7978846
    %v2332 = vmul.f32 %v2316, 0.7978846
    %v2333 = vmul.f32 %v2317, 0.7978846
    %v2334 = vtanh.pop %v2318
    %v2335 = vtanh.pop %v2319
    %v2336 = vtanh.pop %v2320
    %v2337 = vtanh.pop %v2321
    %v2338 = vtanh.pop %v2322
    %v2339 = vtanh.pop %v2323
    %v2340 = vtanh.pop %v2324
    %v2341 = vtanh.pop %v2325
    %v2342 = vtanh.pop %v2326
    %v2343 = vtanh.pop %v2327
    %v2344 = vtanh.pop %v2328
    %v2345 = vtanh.pop %v2329
    %v2346 = vtanh.pop %v2330
    %v2347 = vtanh.pop %v2331
    %v2348 = vtanh.pop %v2332
    %v2349 = vtanh.pop %v2333
    %v2350 = vadd.f32 %v2334, 1.0
    %v2351 = vadd.f32 %v2335, 1.0
    %v2352 = vadd.f32 %v2336, 1.0
    %v2353 = vadd.f32 %v2337, 1.0
    %v2354 = vadd.f32 %v2338, 1.0
    %v2355 = vadd.f32 %v2339, 1.0
    %v2356 = vadd.f32 %v2340, 1.0
    %v2357 = vadd.f32 %v2341, 1.0
    %v2358 = vadd.f32 %v2342, 1.0
    %v2359 = vadd.f32 %v2343, 1.0
    %v2360 = vadd.f32 %v2344, 1.0
    %v2361 = vadd.f32 %v2345, 1.0
    %v2362 = vadd.f32 %v2346, 1.0
    %v2363 = vadd.f32 %v2347, 1.0
    %v2364 = vadd.f32 %v2348, 1.0
    %v2365 = vadd.f32 %v2349, 1.0
    %v2366 = vmul.f32 %v2350, 0.5
    %v2367 = vmul.f32 %v2351, 0.5
    %v2368 = vmul.f32 %v2352, 0.5
    %v2369 = vmul.f32 %v2353, 0.5
    %v2370 = vmul.f32 %v2354, 0.5
    %v2371 = vmul.f32 %v2355, 0.5
    %v2372 = vmul.f32 %v2356, 0.5
    %v2373 = vmul.f32 %v2357, 0.5
    %v2374 = vmul.f32 %v2358, 0.5
    %v2375 = vmul.f32 %v2359, 0.5
    %v2376 = vmul.f32 %v2360, 0.5
    %v2377 = vmul.f32 %v2361, 0.5
    %v2378 = vmul.f32 %v2362, 0.5
    %v2379 = vmul.f32 %v2363, 0.5
    %v2380 = vmul.f32 %v2364, 0.5
    %v2381 = vmul.f32 %v2365, 0.5
    %v2382 = vmul.f32 %v2183, %v2366
    %v2383 = vmul.f32 %v2185, %v2367
    %v2384 = vmul.f32 %v2236, %v2368
    %v2385 = vmul.f32 %v2238, %v2369
    %v2386 = vmul.f32 %v2187, %v2370
    %v2387 = vmul.f32 %v2189, %v2371
    %v2388 = vmul.f32 %v2240, %v2372
    %v2389 = vmul.f32 %v2242, %v2373
    %v2390 = vmul.f32 %v2193, %v2374
    %v2391 = vmul.f32 %v2195, %v2375
    %v2392 = vmul.f32 %v2246, %v2376
    %v2393 = vmul.f32 %v2248, %v2377
    %v2394 = vmul.f32 %v2197, %v2378
    %v2395 = vmul.f32 %v2199, %v2379
    %v2396 = vmul.f32 %v2250, %v2380
    %v2397 = vmul.f32 %v2252, %v2381
    %v2398 = vpack.c.bf16 %v2386, %v2382
    %v2399 = vpack.c.bf16 %v2387, %v2383
    %v2400 = vpack.c.bf16 %v2388, %v2384
    %v2401 = vpack.c.bf16 %v2389, %v2385
    %v2402 = vpack.c.bf16 %v2394, %v2390
    %v2403 = vpack.c.bf16 %v2395, %v2391
    %v2404 = vpack.c.bf16 %v2396, %v2392
    %v2405 = vpack.c.bf16 %v2397, %v2393
    %v2406 = vlaneseq
    %v2407 = vshrl.u32 %v2406, 7
    %v2408 = vsub.s32 3, %v2407
    %v2409 = vrot.slane %v150, %v2408
    %v2474 = vunpack.c.l.b16 %v234
    %v2475 = vunpack.c.l.b16 %v235
    %v2476 = vunpack.c.l.b16 %v236
    %v2477 = vunpack.c.l.b16 %v237
    %v2478 = vunpack.c.l.b16 %v238
    %v2479 = vunpack.c.l.b16 %v239
    %v2480 = vunpack.c.l.b16 %v240
    %v2481 = vunpack.c.l.b16 %v241
    %v2482 = vunpack.c.l.b16 %v242
    %v2483 = vunpack.c.l.b16 %v243
    %v2484 = vunpack.c.l.b16 %v244
    %v2485 = vunpack.c.l.b16 %v245
    %v2486 = vunpack.c.l.b16 %v246
    %v2487 = vunpack.c.l.b16 %v247
    %v2488 = vunpack.c.l.b16 %v248
    %v2489 = vunpack.c.l.b16 %v249
    %v2490 = vunpack.c.l.b16 %v250
    %v2491 = vunpack.c.l.b16 %v251
    %v2492 = vunpack.c.l.b16 %v252
    %v2493 = vunpack.c.l.b16 %v253
    %v2494 = vunpack.c.l.b16 %v254
    %v2495 = vunpack.c.l.b16 %v255
    %v2496 = vunpack.c.l.b16 %v256
    %v2497 = vunpack.c.l.b16 %v257
    %v2498 = vunpack.c.l.b16 %v258
    %v2499 = vunpack.c.l.b16 %v259
    %v2500 = vunpack.c.l.b16 %v260
    %v2501 = vunpack.c.l.b16 %v261
    %v2502 = vunpack.c.l.b16 %v262
    %v2503 = vunpack.c.l.b16 %v263
    %v2504 = vunpack.c.l.b16 %v264
    %v2505 = vunpack.c.l.b16 %v265
    %v2506 = vunpack.c.l.b16 %v266
    %v2507 = vunpack.c.l.b16 %v267
    %v2508 = vunpack.c.l.b16 %v268
    %v2509 = vunpack.c.l.b16 %v269
    %v2510 = vunpack.c.l.b16 %v270
    %v2511 = vunpack.c.l.b16 %v271
    %v2512 = vunpack.c.l.b16 %v272
    %v2513 = vunpack.c.l.b16 %v273
    %v2514 = vunpack.c.l.b16 %v274
    %v2515 = vunpack.c.l.b16 %v275
    %v2516 = vunpack.c.l.b16 %v276
    %v2517 = vunpack.c.l.b16 %v277
    %v2518 = vunpack.c.l.b16 %v278
    %v2519 = vunpack.c.l.b16 %v279
    %v2520 = vunpack.c.l.b16 %v280
    %v2521 = vunpack.c.l.b16 %v281
    %v2522 = vunpack.c.l.b16 %v282
    %v2523 = vunpack.c.l.b16 %v283
    %v2524 = vunpack.c.l.b16 %v284
    %v2525 = vunpack.c.l.b16 %v285
    %v2526 = vunpack.c.l.b16 %v286
    %v2527 = vunpack.c.l.b16 %v287
    %v2528 = vunpack.c.l.b16 %v288
    %v2529 = vunpack.c.l.b16 %v289
    %v2530 = vunpack.c.l.b16 %v290
    %v2531 = vunpack.c.l.b16 %v291
    %v2532 = vunpack.c.l.b16 %v292
    %v2533 = vunpack.c.l.b16 %v293
    %v2534 = vunpack.c.l.b16 %v294
    %v2535 = vunpack.c.l.b16 %v295
    %v2536 = vunpack.c.l.b16 %v296
    %v2537 = vunpack.c.l.b16 %v297
    %v2538 = vpack.c.b16 %v2475, %v2474
    %v2539 = vpack.c.b16 %v2477, %v2476
    %v2540 = vpack.c.b16 %v2479, %v2478
    %v2541 = vpack.c.b16 %v2481, %v2480
    %v2542 = vpack.c.b16 %v2483, %v2482
    %v2543 = vpack.c.b16 %v2485, %v2484
    %v2544 = vpack.c.b16 %v2487, %v2486
    %v2545 = vpack.c.b16 %v2489, %v2488
    %v2546 = vpack.c.b16 %v2491, %v2490
    %v2547 = vpack.c.b16 %v2493, %v2492
    %v2548 = vpack.c.b16 %v2495, %v2494
    %v2549 = vpack.c.b16 %v2497, %v2496
    %v2550 = vpack.c.b16 %v2499, %v2498
    %v2551 = vpack.c.b16 %v2501, %v2500
    %v2552 = vpack.c.b16 %v2503, %v2502
    %v2553 = vpack.c.b16 %v2505, %v2504
    %v2554 = vpack.c.b16 %v2507, %v2506
    %v2555 = vpack.c.b16 %v2509, %v2508
    %v2556 = vpack.c.b16 %v2511, %v2510
    %v2557 = vpack.c.b16 %v2513, %v2512
    %v2558 = vpack.c.b16 %v2515, %v2514
    %v2559 = vpack.c.b16 %v2517, %v2516
    %v2560 = vpack.c.b16 %v2519, %v2518
    %v2561 = vpack.c.b16 %v2521, %v2520
    %v2562 = vpack.c.b16 %v2523, %v2522
    %v2563 = vpack.c.b16 %v2525, %v2524
    %v2564 = vpack.c.b16 %v2527, %v2526
    %v2565 = vpack.c.b16 %v2529, %v2528
    %v2566 = vpack.c.b16 %v2531, %v2530
    %v2567 = vpack.c.b16 %v2533, %v2532
    %v2568 = vpack.c.b16 %v2535, %v2534
    %v2569 = vpack.c.b16 %v2537, %v2536
    %2602 = vmatprep.subr.bf16.mxu0 0
    %2603 = vmatpush1.bf16.msra.mxu0 %v2538
    %2604 = vmatprep.subr.bf16.mxu0 0
    %2605 = vmatpush1.bf16.msra.mxu0 %v2539
    %2606 = vmatprep.subr.bf16.mxu0 0
    %2607 = vmatpush1.bf16.msra.mxu0 %v2540
    %2608 = vmatprep.subr.bf16.mxu0 0
    %2609 = vmatpush1.bf16.msra.mxu0 %v2541
    %2610 = vmatprep.subr.bf16.mxu0 0
    %2611 = vmatpush1.bf16.msra.mxu0 %v2542
    %2612 = vmatprep.subr.bf16.mxu0 0
    %2613 = vmatpush1.bf16.msra.mxu0 %v2543
    %2614 = vmatprep.subr.bf16.mxu0 0
    %2615 = vmatpush1.bf16.msra.mxu0 %v2544
    %2616 = vmatprep.subr.bf16.mxu0 0
    %2617 = vmatpush1.bf16.msra.mxu0 %v2545
    %2618 = vmatprep.subr.bf16.mxu0 0
    %2619 = vmatpush1.bf16.msra.mxu0 %v2546
    %2620 = vmatprep.subr.bf16.mxu0 0
    %2621 = vmatpush1.bf16.msra.mxu0 %v2547
    %2622 = vmatprep.subr.bf16.mxu0 0
    %2623 = vmatpush1.bf16.msra.mxu0 %v2548
    %2624 = vmatprep.subr.bf16.mxu0 0
    %2625 = vmatpush1.bf16.msra.mxu0 %v2549
    %2626 = vmatprep.subr.bf16.mxu0 0
    %2627 = vmatpush1.bf16.msra.mxu0 %v2550
    %2628 = vmatprep.subr.bf16.mxu0 0
    %2629 = vmatpush1.bf16.msra.mxu0 %v2551
    %2630 = vmatprep.subr.bf16.mxu0 0
    %2631 = vmatpush1.bf16.msra.mxu0 %v2552
    %2632 = vmatprep.subr.bf16.mxu0 0
    %2633 = vmatpush1.bf16.msra.mxu0 %v2553
    %2634 = vmatprep.mubr.bf16.mxu0 %v2399
    %2635 = vmatmul.mubr.bf16.gmra.mrb[0].mxu0 %v2398
    %v2636 = vpop.f32.mrb[0].mxu0
    %v2637 = vadd.f32 %v2409, %v2636
    %v2638 = vpop.f32.mrb[0].mxu0
    %v2639 = vpop.f32.mrb[0].mxu0
    %v2640 = vadd.f32 %v2409, %v2639
    %v2641 = vpop.f32.mrb[0].mxu0
    %2642 = vmatprep.mubr.bf16.mxu0 %v2403
    %2643 = vmatmul.mubr.bf16.gmra.mrb[0].mxu0 %v2402
    %v2644 = vpop.f32.mrb[0].mxu0
    %v2645 = vadd.f32 %v2409, %v2644
    %v2646 = vpop.f32.mrb[0].mxu0
    %v2647 = vpop.f32.mrb[0].mxu0
    %v2648 = vadd.f32 %v2409, %v2647
    %v2649 = vpop.f32.mrb[0].mxu0
    %2650 = vdwg.mxu0
    %2651 = vmatprep.subr.bf16.mxu0 0
    %2652 = vmatpush1.bf16.msra.mxu0 %v2554
    %2653 = vmatprep.subr.bf16.mxu0 0
    %2654 = vmatpush1.bf16.msra.mxu0 %v2555
    %2655 = vmatprep.subr.bf16.mxu0 0
    %2656 = vmatpush1.bf16.msra.mxu0 %v2556
    %2657 = vmatprep.subr.bf16.mxu0 0
    %2658 = vmatpush1.bf16.msra.mxu0 %v2557
    %2659 = vmatprep.subr.bf16.mxu0 0
    %2660 = vmatpush1.bf16.msra.mxu0 %v2558
    %2661 = vmatprep.subr.bf16.mxu0 0
    %2662 = vmatpush1.bf16.msra.mxu0 %v2559
    %2663 = vmatprep.subr.bf16.mxu0 0
    %2664 = vmatpush1.bf16.msra.mxu0 %v2560
    %2665 = vmatprep.subr.bf16.mxu0 0
    %2666 = vmatpush1.bf16.msra.mxu0 %v2561
    %2667 = vmatprep.subr.bf16.mxu0 0
    %2668 = vmatpush1.bf16.msra.mxu0 %v2562
    %2669 = vmatprep.subr.bf16.mxu0 0
    %2670 = vmatpush1.bf16.msra.mxu0 %v2563
    %2671 = vmatprep.subr.bf16.mxu0 0
    %2672 = vmatpush1.bf16.msra.mxu0 %v2564
    %2673 = vmatprep.subr.bf16.mxu0 0
    %2674 = vmatpush1.bf16.msra.mxu0 %v2565
    %2675 = vmatprep.subr.bf16.mxu0 0
    %2676 = vmatpush1.bf16.msra.mxu0 %v2566
    %2677 = vmatprep.subr.bf16.mxu0 0
    %2678 = vmatpush1.bf16.msra.mxu0 %v2567
    %2679 = vmatprep.subr.bf16.mxu0 0
    %2680 = vmatpush1.bf16.msra.mxu0 %v2568
    %2681 = vmatprep.subr.bf16.mxu0 0
    %2682 = vmatpush1.bf16.msra.mxu0 %v2569
    %2683 = vmatprep.mubr.bf16.mxu0 %v2401
    %2684 = vmatmul.mubr.bf16.gmra.mrb[0].mxu0 %v2400
    %v2685 = vpop.f32.mrb[0].mxu0
    %v2686 = vadd.f32 %v2637, %v2685
    %v2687 = vpop.f32.mrb[0].mxu0
    %v2688 = vpop.f32.mrb[0].mxu0
    %v2689 = vadd.f32 %v2640, %v2688
    %v2690 = vpop.f32.mrb[0].mxu0
    %2691 = vmatprep.mubr.bf16.mxu0 %v2405
    %2692 = vmatmul.mubr.bf16.gmra.mrb[0].mxu0 %v2404
    %v2693 = vpop.f32.mrb[0].mxu0
    %v2694 = vadd.f32 %v2645, %v2693
    %v2695 = vpop.f32.mrb[0].mxu0
    %v2696 = vpop.f32.mrb[0].mxu0
    %v2697 = vadd.f32 %v2648, %v2696
    %v2698 = vpop.f32.mrb[0].mxu0
    %2699 = vdwg.mxu0
    %v2700 = vadd.f32 %v1961, %v2686
    %v2701 = vadd.f32 %v1962, %v2689
    %v2702 = vadd.f32 %v1963, %v2694
    %v2703 = vadd.f32 %v1964, %v2697
    %2704 = vadd.xlane.f32.xlu0 %v2700
    %v2705 = vpop.xlane.xlu0 %2704
    %2706 = vadd.xlane.f32.xlu0 %v2701
    %v2707 = vpop.xlane.xlu0 %2706
    %2708 = vadd.xlane.f32.xlu0 %v2702
    %v2709 = vpop.xlane.xlu0 %2708
    %2710 = vadd.xlane.f32.xlu0 %v2703
    %v2711 = vpop.xlane.xlu0 %2710
    %v2712 = vmul.f32 %v2705, %v418
    %v2713 = vmul.f32 %v2707, %v418
    %v2714 = vmul.f32 %v2709, %v418
    %v2715 = vmul.f32 %v2711, %v418
    %v2716 = vsub.f32 %v2700, %v2712
    %v2717 = vsub.f32 %v2701, %v2713
    %v2718 = vsub.f32 %v2702, %v2714
    %v2719 = vsub.f32 %v2703, %v2715
    %v2720 = vmul.f32 %v2716, %v2716
    %v2721 = vmul.f32 %v2717, %v2717
    %v2722 = vmul.f32 %v2718, %v2718
    %v2723 = vmul.f32 %v2719, %v2719
    %2724 = vadd.xlane.f32.xlu0 %v2720
    %v2725 = vpop.xlane.xlu0 %2724
    %2726 = vadd.xlane.f32.xlu0 %v2721
    %v2727 = vpop.xlane.xlu0 %2726
    %2728 = vadd.xlane.f32.xlu0 %v2722
    %v2729 = vpop.xlane.xlu0 %2728
    %2730 = vadd.xlane.f32.xlu0 %v2723
    %v2731 = vpop.xlane.xlu0 %2730
    %v2732 = vmul.f32 %v2725, %v418
    %v2733 = vmul.f32 %v2727, %v418
    %v2734 = vmul.f32 %v2729, %v418
    %v2735 = vmul.f32 %v2731, %v418
    %v2736 = vadd.f32 %v2732, 1e-05
    %v2737 = vadd.f32 %v2733, 1e-05
    %v2738 = vadd.f32 %v2734, 1e-05
    %v2739 = vadd.f32 %v2735, 1e-05
    %v2740 = vrsqrt.pop %v2736
    %v2741 = vrsqrt.pop %v2737
    %v2742 = vrsqrt.pop %v2738
    %v2743 = vrsqrt.pop %v2739
    %v2744 = vmul.f32 %v2716, %v2740
    %v2745 = vmul.f32 %v2717, %v2741
    %v2746 = vmul.f32 %v2718, %v2742
    %v2747 = vmul.f32 %v2719, %v2743
    %v2748 = vlaneseq
    %v2749 = vshrl.u32 %v2748, 7
    %v2750 = vsub.s32 6, %v2749
    %v2751 = vrot.slane %v150, %v2750
    %v2752 = vmul.f32 %v2744, %v2751
    %v2753 = vmul.f32 %v2745, %v2751
    %v2754 = vmul.f32 %v2746, %v2751
    %v2755 = vmul.f32 %v2747, %v2751
    %v2756 = vlaneseq
    %v2757 = vshrl.u32 %v2756, 7
    %v2758 = vsub.s32 7, %v2757
    %v2759 = vrot.slane %v150, %v2758
    %v2760 = vadd.f32 %v2752, %v2759
    %v2761 = vadd.f32 %v2753, %v2759
    %v2762 = vadd.f32 %v2754, %v2759
    %v2763 = vadd.f32 %v2755, %v2759
    %v2764 = vpack.c.bf16 %v2761, %v2760
    %v2765 = vpack.c.bf16 %v2763, %v2762
    %2766 = vmatprep.subr.bf16.mxu0 %v576
    %2767 = vmatpush1.bf16.msra.mxu0 %v575
    %2768 = vmatprep.subr.bf16.mxu0 %v579
    %2769 = vmatpush1.bf16.msra.mxu0 %v578
    %2770 = vmatprep.subr.bf16.mxu0 %v582
    %2771 = vmatpush1.bf16.msra.mxu0 %v581
    %2772 = vmatprep.subr.bf16.mxu0 %v585
    %2773 = vmatpush1.bf16.msra.mxu0 %v584
    %2774 = vmatprep.subr.bf16.mxu0 %v588
    %2775 = vmatpush1.bf16.msra.mxu0 %v587
    %2776 = vmatprep.subr.bf16.mxu0 %v591
    %2777 = vmatpush1.bf16.msra.mxu0 %v590
    %2778 = vmatprep.subr.bf16.mxu0 %v594
    %2779 = vmatpush1.bf16.msra.mxu0 %v593
    %2780 = vmatprep.subr.bf16.mxu0 %v597
    %2781 = vmatpush1.bf16.msra.mxu0 %v596
    %2782 = vmatprep.subr.bf16.mxu0 0
    %2783 = vmatpush1.bf16.msra.mxu0 0
    %2784 = vmatprep.subr.bf16.mxu0 0
    %2785 = vmatpush1.bf16.msra.mxu0 0
    %2786 = vmatprep.subr.bf16.mxu0 0
    %2787 = vmatpush1.bf16.msra.mxu0 0
    %2788 = vmatprep.subr.bf16.mxu0 0
    %2789 = vmatpush1.bf16.msra.mxu0 0
    %2790 = vmatprep.subr.bf16.mxu0 0
    %2791 = vmatpush1.bf16.msra.mxu0 0
    %2792 = vmatprep.subr.bf16.mxu0 0
    %2793 = vmatpush1.bf16.msra.mxu0 0
    %2794 = vmatprep.subr.bf16.mxu0 0
    %2795 = vmatpush1.bf16.msra.mxu0 0
    %2796 = vmatprep.subr.bf16.mxu0 0
    %2797 = vmatpush1.bf16.msra.mxu0 0
    %2798 = vmatprep.mubr.bf16.mxu0 0
    %2799 = vmatmul.mubr.bf16.gmra.mrb[0].mxu0 %v2764
    %v2800 = vpop.f32.mrb[0].mxu0
    %v2801 = vadd.f32 %v483, %v2800
    %v2802 = vpop.f32.mrb[0].mxu0
    %v2803 = vadd.f32 %v487, %v2802
    %v2804 = vpop.f32.mrb[0].mxu0
    %v2805 = vadd.f32 %v483, %v2804
    %v2806 = vpop.f32.mrb[0].mxu0
    %v2807 = vadd.f32 %v487, %v2806
    %2808 = vmatprep.mubr.bf16.mxu0 0
    %2809 = vmatmul.mubr.bf16.gmra.mrb[0].mxu0 %v2765
    %v2810 = vpop.f32.mrb[0].mxu0
    %v2811 = vadd.f32 %v483, %v2810
    %v2812 = vpop.f32.mrb[0].mxu0
    %v2813 = vadd.f32 %v487, %v2812
    %v2814 = vpop.f32.mrb[0].mxu0
    %v2815 = vadd.f32 %v483, %v2814
    %v2816 = vpop.f32.mrb[0].mxu0
    %v2817 = vadd.f32 %v487, %v2816
    %2818 = vdwg.mxu0
    %2819 = vmatprep.subr.bf16.mxu0 0
    %2820 = vmatpush1.bf16.msra.mxu0 %v577
    %2821 = vmatprep.subr.bf16.mxu0 0
    %2822 = vmatpush1.bf16.msra.mxu0 %v580
    %2823 = vmatprep.subr.bf16.mxu0 0
    %2824 = vmatpush1.bf16.msra.mxu0 %v583
    %2825 = vmatprep.subr.bf16.mxu0 0
    %2826 = vmatpush1.bf16.msra.mxu0 %v586
    %2827 = vmatprep.subr.bf16.mxu0 0
    %2828 = vmatpush1.bf16.msra.mxu0 %v589
    %2829 = vmatprep.subr.bf16.mxu0 0
    %2830 = vmatpush1.bf16.msra.mxu0 %v592
    %2831 = vmatprep.subr.bf16.mxu0 0
    %2832 = vmatpush1.bf16.msra.mxu0 %v595
    %2833 = vmatprep.subr.bf16.mxu0 0
    %2834 = vmatpush1.bf16.msra.mxu0 %v598
    %2835 = vmatprep.subr.bf16.mxu0 0
    %2836 = vmatpush1.bf16.msra.mxu0 0
    %2837 = vmatprep.subr.bf16.mxu0 0
    %2838 = vmatpush1.bf16.msra.mxu0 0
    %2839 = vmatprep.subr.bf16.mxu0 0
    %2840 = vmatpush1.bf16.msra.mxu0 0
    %2841 = vmatprep.subr.bf16.mxu0 0
    %2842 = vmatpush1.bf16.msra.mxu0 0
    %2843 = vmatprep.subr.bf16.mxu0 0
    %2844 = vmatpush1.bf16.msra.mxu0 0
    %2845 = vmatprep.subr.bf16.mxu0 0
    %2846 = vmatpush1.bf16.msra.mxu0 0
    %2847 = vmatprep.subr.bf16.mxu0 0
    %2848 = vmatpush1.bf16.msra.mxu0 0
    %2849 = vmatprep.subr.bf16.mxu0 0
    %2850 = vmatpush1.bf16.msra.mxu0 0
    %2851 = vmatprep.mubr.bf16.mxu0 0
    %2852 = vmatmul.mubr.bf16.gmra.mrb[0].mxu0 %v2764
    %v2853 = vpop.f32.mrb[0].mxu0
    %v2854 = vadd.f32 %v491, %v2853
    %v2855 = vpop.f32.mrb[0].mxu0
    %v2856 = vpop.f32.mrb[0].mxu0
    %v2857 = vadd.f32 %v491, %v2856
    %v2858 = vpop.f32.mrb[0].mxu0
    %2859 = vmatprep.mubr.bf16.mxu0 0
    %2860 = vmatmul.mubr.bf16.gmra.mrb[0].mxu0 %v2765
    %v2861 = vpop.f32.mrb[0].mxu0
    %v2862 = vadd.f32 %v491, %v2861
    %v2863 = vpop.f32.mrb[0].mxu0
    %v2864 = vpop.f32.mrb[0].mxu0
    %v2865 = vadd.f32 %v491, %v2864
    %v2866 = vpop.f32.mrb[0].mxu0
    %2867 = vdwg.mxu0
    %v2868 = vpack.c.bf16 %v2805, %v2801
    %v2869 = vpack.c.bf16 %v2815, %v2811
    %v2870 = vpack.c.bf16 %v2807, %v2803
    %v2871 = vpack.c.bf16 %v2817, %v2813
    %v2872 = vpack.c.bf16 %v2857, %v2854
    %v2873 = vpack.c.bf16 %v2865, %v2862
    %v2875 = vsel %vm354, %v2868, 0
    %v2878 = vsel %vm354, %v2870, 0
    %2880 = vmatprep.subr.bf16.mxu0 0
    %2881 = vmatpush1.bf16.xpose.msra.mxu0 %v2878
    %2882 = vmatprep.subr.bf16.mxu0 0
    %2883 = vmatpush1.bf16.xpose.msra.mxu0 0
    %2884 = vmatprep.subr.bf16.mxu0 0
    %2885 = vmatpush1.bf16.xpose.msra.mxu0 0
    %2886 = vmatprep.subr.bf16.mxu0 0
    %2887 = vmatpush1.bf16.xpose.msra.mxu0 0
    %2888 = vmatprep.subr.bf16.mxu0 0
    %2889 = vmatpush1.bf16.xpose.msra.mxu0 0
    %2890 = vmatprep.subr.bf16.mxu0 0
    %2891 = vmatpush1.bf16.xpose.msra.mxu0 0
    %2892 = vmatprep.subr.bf16.mxu0 0
    %2893 = vmatpush1.bf16.xpose.msra.mxu0 0
    %2894 = vmatprep.subr.bf16.mxu0 0
    %2895 = vmatpush1.bf16.xpose.msra.mxu0 0
    %2896 = vmatprep.subr.bf16.mxu0 0
    %2897 = vmatpush1.bf16.xpose.msra.mxu0 0
    %2898 = vmatprep.subr.bf16.mxu0 0
    %2899 = vmatpush1.bf16.xpose.msra.mxu0 0
    %2900 = vmatprep.subr.bf16.mxu0 0
    %2901 = vmatpush1.bf16.xpose.msra.mxu0 0
    %2902 = vmatprep.subr.bf16.mxu0 0
    %2903 = vmatpush1.bf16.xpose.msra.mxu0 0
    %2904 = vmatprep.subr.bf16.mxu0 0
    %2905 = vmatpush1.bf16.xpose.msra.mxu0 0
    %2906 = vmatprep.subr.bf16.mxu0 0
    %2907 = vmatpush1.bf16.xpose.msra.mxu0 0
    %2908 = vmatprep.subr.bf16.mxu0 0
    %2909 = vmatpush1.bf16.xpose.msra.mxu0 0
    %2910 = vmatprep.subr.bf16.mxu0 0
    %2911 = vmatpush1.bf16.xpose.msra.mxu0 0
    %2912 = vmatprep.mubr.bf16.mxu0 0
    %2913 = vmatmul.mubr.bf16.gmra.mrb[0].mxu0 %v2875
    %v2914 = vpop.f32.mrb[0].mxu0
    %v2915 = vadd.f32 0.0, %v2914
    %v2916 = vpop.f32.mrb[0].mxu0
    %v2917 = vpop.f32.mrb[0].mxu0
    %v2918 = vadd.f32 0.0, %v2917
    %v2919 = vpop.f32.mrb[0].mxu0
    %2920 = vdwg.mxu0
    %v2922 = vsel %vm354, %v2869, 0
    %v2925 = vsel %vm354, %v2871, 0
    %2927 = vmatprep.subr.bf16.mxu0 0
    %2928 = vmatpush1.bf16.xpose.msra.mxu0 %v2925
    %2929 = vmatprep.subr.bf16.mxu0 0
    %2930 = vmatpush1.bf16.xpose.msra.mxu0 0
    %2931 = vmatprep.subr.bf16.mxu0 0
    %2932 = vmatpush1.bf16.xpose.msra.mxu0 0
    %2933 = vmatprep.subr.bf16.mxu0 0
    %2934 = vmatpush1.bf16.xpose.msra.mxu0 0
    %2935 = vmatprep.subr.bf16.mxu0 0
    %2936 = vmatpush1.bf16.xpose.msra.mxu0 0
    %2937 = vmatprep.subr.bf16.mxu0 0
    %2938 = vmatpush1.bf16.xpose.msra.mxu0 0
    %2939 = vmatprep.subr.bf16.mxu0 0
    %2940 = vmatpush1.bf16.xpose.msra.mxu0 0
    %2941 = vmatprep.subr.bf16.mxu0 0
    %2942 = vmatpush1.bf16.xpose.msra.mxu0 0
    %2943 = vmatprep.subr.bf16.mxu0 0
    %2944 = vmatpush1.bf16.xpose.msra.mxu0 0
    %2945 = vmatprep.subr.bf16.mxu0 0
    %2946 = vmatpush1.bf16.xpose.msra.mxu0 0
    %2947 = vmatprep.subr.bf16.mxu0 0
    %2948 = vmatpush1.bf16.xpose.msra.mxu0 0
    %2949 = vmatprep.subr.bf16.mxu0 0
    %2950 = vmatpush1.bf16.xpose.msra.mxu0 0
    %2951 = vmatprep.subr.bf16.mxu0 0
    %2952 = vmatpush1.bf16.xpose.msra.mxu0 0
    %2953 = vmatprep.subr.bf16.mxu0 0
    %2954 = vmatpush1.bf16.xpose.msra.mxu0 0
    %2955 = vmatprep.subr.bf16.mxu0 0
    %2956 = vmatpush1.bf16.xpose.msra.mxu0 0
    %2957 = vmatprep.subr.bf16.mxu0 0
    %2958 = vmatpush1.bf16.xpose.msra.mxu0 0
    %2959 = vmatprep.mubr.bf16.mxu0 0
    %2960 = vmatmul.mubr.bf16.gmra.mrb[0].mxu0 %v2922
    %v2961 = vpop.f32.mrb[0].mxu0
    %v2962 = vadd.f32 0.0, %v2961
    %v2963 = vpop.f32.mrb[0].mxu0
    %v2964 = vpop.f32.mrb[0].mxu0
    %v2965 = vadd.f32 0.0, %v2964
    %v2966 = vpop.f32.mrb[0].mxu0
    %2967 = vdwg.mxu0
    %v2968 = vmul.f32 %v2915, 0.17677669
    %v2969 = vmul.f32 %v2918, 0.17677669
    %v2970 = vmul.f32 %v2962, 0.17677669
    %v2971 = vmul.f32 %v2965, 0.17677669
    %v2972 = vadd.f32 %v2968, %v834
    %v2973 = vadd.f32 %v2969, %v834
    %v2974 = vadd.f32 %v2970, %v838
    %v2975 = vadd.f32 %v2971, %v838
    %v2976 = vsel %vm845, %v2972, -inf
    %2977 = vmax.xlane.f32.xlu0 %v2976
    %v2978 = vpop.xlane.xlu0 %2977
    %v2979 = vsel %vm845, %v2973, -inf
    %2980 = vmax.xlane.f32.xlu0 %v2979
    %v2981 = vpop.xlane.xlu0 %2980
    %v2982 = vsel %vm845, %v2974, -inf
    %2983 = vmax.xlane.f32.xlu0 %v2982
    %v2984 = vpop.xlane.xlu0 %2983
    %v2985 = vsel %vm845, %v2975, -inf
    %2986 = vmax.xlane.f32.xlu0 %v2985
    %v2987 = vpop.xlane.xlu0 %2986
    %v2988 = vsub.f32 %v2972, %v2978
    %v2989 = vsub.f32 %v2973, %v2981
    %v2990 = vsub.f32 %v2974, %v2984
    %v2991 = vsub.f32 %v2975, %v2987
    %v2992 = vmul.f32 %v2988, 1.442695
    %v2993 = vpow.pop %v2992
    %v2994 = vmul.f32 %v2989, 1.442695
    %v2995 = vpow.pop %v2994
    %v2996 = vmul.f32 %v2990, 1.442695
    %v2997 = vpow.pop %v2996
    %v2998 = vmul.f32 %v2991, 1.442695
    %v2999 = vpow.pop %v2998
    %v3000 = vsel %vm845, %v2993, 0.0
    %3001 = vadd.xlane.f32.xlu0 %v3000
    %v3002 = vpop.xlane.xlu0 %3001
    %v3003 = vsel %vm845, %v2995, 0.0
    %3004 = vadd.xlane.f32.xlu0 %v3003
    %v3005 = vpop.xlane.xlu0 %3004
    %v3006 = vsel %vm845, %v2997, 0.0
    %3007 = vadd.xlane.f32.xlu0 %v3006
    %v3008 = vpop.xlane.xlu0 %3007
    %v3009 = vsel %vm845, %v2999, 0.0
    %3010 = vadd.xlane.f32.xlu0 %v3009
    %v3011 = vpop.xlane.xlu0 %3010
    %v3012 = vrcp.pop %v3002
    %v3013 = vrcp.pop %v3005
    %v3014 = vrcp.pop %v3008
    %v3015 = vrcp.pop %v3011
    %v3016 = vmul.f32 %v2993, %v3012
    %v3017 = vmul.f32 %v2995, %v3013
    %v3018 = vmul.f32 %v2997, %v3014
    %v3019 = vmul.f32 %v2999, %v3015
    %v3020 = vpack.c.bf16 %v3017, %v3016
    %v3021 = vpack.c.bf16 %v3019, %v3018
    %v3023 = vsel %vm845, %v3020, 0
    %3025 = vmatprep.subr.bf16.mxu0 0
    %3026 = vmatpush1.bf16.msra.mxu0 %v2872
    %3027 = vmatprep.subr.bf16.mxu0 0
    %3028 = vmatpush1.bf16.msra.mxu0 0
    %3029 = vmatprep.subr.bf16.mxu0 0
    %3030 = vmatpush1.bf16.msra.mxu0 0
    %3031 = vmatprep.subr.bf16.mxu0 0
    %3032 = vmatpush1.bf16.msra.mxu0 0
    %3033 = vmatprep.subr.bf16.mxu0 0
    %3034 = vmatpush1.bf16.msra.mxu0 0
    %3035 = vmatprep.subr.bf16.mxu0 0
    %3036 = vmatpush1.bf16.msra.mxu0 0
    %3037 = vmatprep.subr.bf16.mxu0 0
    %3038 = vmatpush1.bf16.msra.mxu0 0
    %3039 = vmatprep.subr.bf16.mxu0 0
    %3040 = vmatpush1.bf16.msra.mxu0 0
    %3041 = vmatprep.subr.bf16.mxu0 0
    %3042 = vmatpush1.bf16.msra.mxu0 0
    %3043 = vmatprep.subr.bf16.mxu0 0
    %3044 = vmatpush1.bf16.msra.mxu0 0
    %3045 = vmatprep.subr.bf16.mxu0 0
    %3046 = vmatpush1.bf16.msra.mxu0 0
    %3047 = vmatprep.subr.bf16.mxu0 0
    %3048 = vmatpush1.bf16.msra.mxu0 0
    %3049 = vmatprep.subr.bf16.mxu0 0
    %3050 = vmatpush1.bf16.msra.mxu0 0
    %3051 = vmatprep.subr.bf16.mxu0 0
    %3052 = vmatpush1.bf16.msra.mxu0 0
    %3053 = vmatprep.subr.bf16.mxu0 0
    %3054 = vmatpush1.bf16.msra.mxu0 0
    %3055 = vmatprep.subr.bf16.mxu0 0
    %3056 = vmatpush1.bf16.msra.mxu0 0
    %3057 = vmatprep.mubr.bf16.mxu0 0
    %3058 = vmatmul.mubr.bf16.gmra.mrb[0].mxu0 %v3023
    %v3059 = vpop.f32.mrb[0].mxu0
    %v3060 = vadd.f32 0.0, %v3059
    %v3061 = vpop.f32.mrb[0].mxu0
    %v3062 = vpop.f32.mrb[0].mxu0
    %v3063 = vadd.f32 0.0, %v3062
    %v3064 = vpop.f32.mrb[0].mxu0
    %3065 = vdwg.mxu0
    %v3067 = vsel %vm845, %v3021, 0
    %3069 = vmatprep.subr.bf16.mxu0 0
    %3070 = vmatpush1.bf16.msra.mxu0 %v2873
    %3071 = vmatprep.subr.bf16.mxu0 0
    %3072 = vmatpush1.bf16.msra.mxu0 0
    %3073 = vmatprep.subr.bf16.mxu0 0
    %3074 = vmatpush1.bf16.msra.mxu0 0
    %3075 = vmatprep.subr.bf16.mxu0 0
    %3076 = vmatpush1.bf16.msra.mxu0 0
    %3077 = vmatprep.subr.bf16.mxu0 0
    %3078 = vmatpush1.bf16.msra.mxu0 0
    %3079 = vmatprep.subr.bf16.mxu0 0
    %3080 = vmatpush1.bf16.msra.mxu0 0
    %3081 = vmatprep.subr.bf16.mxu0 0
    %3082 = vmatpush1.bf16.msra.mxu0 0
    %3083 = vmatprep.subr.bf16.mxu0 0
    %3084 = vmatpush1.bf16.msra.mxu0 0
    %3085 = vmatprep.subr.bf16.mxu0 0
    %3086 = vmatpush1.bf16.msra.mxu0 0
    %3087 = vmatprep.subr.bf16.mxu0 0
    %3088 = vmatpush1.bf16.msra.mxu0 0
    %3089 = vmatprep.subr.bf16.mxu0 0
    %3090 = vmatpush1.bf16.msra.mxu0 0
    %3091 = vmatprep.subr.bf16.mxu0 0
    %3092 = vmatpush1.bf16.msra.mxu0 0
    %3093 = vmatprep.subr.bf16.mxu0 0
    %3094 = vmatpush1.bf16.msra.mxu0 0
    %3095 = vmatprep.subr.bf16.mxu0 0
    %3096 = vmatpush1.bf16.msra.mxu0 0
    %3097 = vmatprep.subr.bf16.mxu0 0
    %3098 = vmatpush1.bf16.msra.mxu0 0
    %3099 = vmatprep.subr.bf16.mxu0 0
    %3100 = vmatpush1.bf16.msra.mxu0 0
    %3101 = vmatprep.mubr.bf16.mxu0 0
    %3102 = vmatmul.mubr.bf16.gmra.mrb[0].mxu0 %v3067
    %v3103 = vpop.f32.mrb[0].mxu0
    %v3104 = vadd.f32 0.0, %v3103
    %v3105 = vpop.f32.mrb[0].mxu0
    %v3106 = vpop.f32.mrb[0].mxu0
    %v3107 = vadd.f32 0.0, %v3106
    %v3108 = vpop.f32.mrb[0].mxu0
    %3109 = vdwg.mxu0
    %3111 = vrot.lane.b32.xlu0 %v2868, 96
    %v3112 = vpop.permute.xlu0 %3111
    %3114 = vrot.lane.b32.xlu0 %v2870, 96
    %v3115 = vpop.permute.xlu0 %3114
    %v3117 = vsel %vm354, %v3112, 0
    %v3120 = vsel %vm354, %v3115, 0
    %3122 = vmatprep.subr.bf16.mxu0 0
    %3123 = vmatpush1.bf16.xpose.msra.mxu0 %v3120
    %3124 = vmatprep.subr.bf16.mxu0 0
    %3125 = vmatpush1.bf16.xpose.msra.mxu0 0
    %3126 = vmatprep.subr.bf16.mxu0 0
    %3127 = vmatpush1.bf16.xpose.msra.mxu0 0
    %3128 = vmatprep.subr.bf16.mxu0 0
    %3129 = vmatpush1.bf16.xpose.msra.mxu0 0
    %3130 = vmatprep.subr.bf16.mxu0 0
    %3131 = vmatpush1.bf16.xpose.msra.mxu0 0
    %3132 = vmatprep.subr.bf16.mxu0 0
    %3133 = vmatpush1.bf16.xpose.msra.mxu0 0
    %3134 = vmatprep.subr.bf16.mxu0 0
    %3135 = vmatpush1.bf16.xpose.msra.mxu0 0
    %3136 = vmatprep.subr.bf16.mxu0 0
    %3137 = vmatpush1.bf16.xpose.msra.mxu0 0
    %3138 = vmatprep.subr.bf16.mxu0 0
    %3139 = vmatpush1.bf16.xpose.msra.mxu0 0
    %3140 = vmatprep.subr.bf16.mxu0 0
    %3141 = vmatpush1.bf16.xpose.msra.mxu0 0
    %3142 = vmatprep.subr.bf16.mxu0 0
    %3143 = vmatpush1.bf16.xpose.msra.mxu0 0
    %3144 = vmatprep.subr.bf16.mxu0 0
    %3145 = vmatpush1.bf16.xpose.msra.mxu0 0
    %3146 = vmatprep.subr.bf16.mxu0 0
    %3147 = vmatpush1.bf16.xpose.msra.mxu0 0
    %3148 = vmatprep.subr.bf16.mxu0 0
    %3149 = vmatpush1.bf16.xpose.msra.mxu0 0
    %3150 = vmatprep.subr.bf16.mxu0 0
    %3151 = vmatpush1.bf16.xpose.msra.mxu0 0
    %3152 = vmatprep.subr.bf16.mxu0 0
    %3153 = vmatpush1.bf16.xpose.msra.mxu0 0
    %3154 = vmatprep.mubr.bf16.mxu0 0
    %3155 = vmatmul.mubr.bf16.gmra.mrb[0].mxu0 %v3117
    %v3156 = vpop.f32.mrb[0].mxu0
    %v3157 = vadd.f32 0.0, %v3156
    %v3158 = vpop.f32.mrb[0].mxu0
    %v3159 = vpop.f32.mrb[0].mxu0
    %v3160 = vadd.f32 0.0, %v3159
    %v3161 = vpop.f32.mrb[0].mxu0
    %3162 = vdwg.mxu0
    %3164 = vrot.lane.b32.xlu0 %v2869, 96
    %v3165 = vpop.permute.xlu0 %3164
    %3167 = vrot.lane.b32.xlu0 %v2871, 96
    %v3168 = vpop.permute.xlu0 %3167
    %v3170 = vsel %vm354, %v3165, 0
    %v3173 = vsel %vm354, %v3168, 0
    %3175 = vmatprep.subr.bf16.mxu0 0
    %3176 = vmatpush1.bf16.xpose.msra.mxu0 %v3173
    %3177 = vmatprep.subr.bf16.mxu0 0
    %3178 = vmatpush1.bf16.xpose.msra.mxu0 0
    %3179 = vmatprep.subr.bf16.mxu0 0
    %3180 = vmatpush1.bf16.xpose.msra.mxu0 0
    %3181 = vmatprep.subr.bf16.mxu0 0
    %3182 = vmatpush1.bf16.xpose.msra.mxu0 0
    %3183 = vmatprep.subr.bf16.mxu0 0
    %3184 = vmatpush1.bf16.xpose.msra.mxu0 0
    %3185 = vmatprep.subr.bf16.mxu0 0
    %3186 = vmatpush1.bf16.xpose.msra.mxu0 0
    %3187 = vmatprep.subr.bf16.mxu0 0
    %3188 = vmatpush1.bf16.xpose.msra.mxu0 0
    %3189 = vmatprep.subr.bf16.mxu0 0
    %3190 = vmatpush1.bf16.xpose.msra.mxu0 0
    %3191 = vmatprep.subr.bf16.mxu0 0
    %3192 = vmatpush1.bf16.xpose.msra.mxu0 0
    %3193 = vmatprep.subr.bf16.mxu0 0
    %3194 = vmatpush1.bf16.xpose.msra.mxu0 0
    %3195 = vmatprep.subr.bf16.mxu0 0
    %3196 = vmatpush1.bf16.xpose.msra.mxu0 0
    %3197 = vmatprep.subr.bf16.mxu0 0
    %3198 = vmatpush1.bf16.xpose.msra.mxu0 0
    %3199 = vmatprep.subr.bf16.mxu0 0
    %3200 = vmatpush1.bf16.xpose.msra.mxu0 0
    %3201 = vmatprep.subr.bf16.mxu0 0
    %3202 = vmatpush1.bf16.xpose.msra.mxu0 0
    %3203 = vmatprep.subr.bf16.mxu0 0
    %3204 = vmatpush1.bf16.xpose.msra.mxu0 0
    %3205 = vmatprep.subr.bf16.mxu0 0
    %3206 = vmatpush1.bf16.xpose.msra.mxu0 0
    %3207 = vmatprep.mubr.bf16.mxu0 0
    %3208 = vmatmul.mubr.bf16.gmra.mrb[0].mxu0 %v3170
    %v3209 = vpop.f32.mrb[0].mxu0
    %v3210 = vadd.f32 0.0, %v3209
    %v3211 = vpop.f32.mrb[0].mxu0
    %v3212 = vpop.f32.mrb[0].mxu0
    %v3213 = vadd.f32 0.0, %v3212
    %v3214 = vpop.f32.mrb[0].mxu0
    %3215 = vdwg.mxu0
    %v3216 = vmul.f32 %v3157, 0.17677669
    %v3217 = vmul.f32 %v3160, 0.17677669
    %v3218 = vmul.f32 %v3210, 0.17677669
    %v3219 = vmul.f32 %v3213, 0.17677669
    %v3220 = vadd.f32 %v3216, %v834
    %v3221 = vadd.f32 %v3217, %v834
    %v3222 = vadd.f32 %v3218, %v838
    %v3223 = vadd.f32 %v3219, %v838
    %v3224 = vsel %vm845, %v3220, -inf
    %3225 = vmax.xlane.f32.xlu0 %v3224
    %v3226 = vpop.xlane.xlu0 %3225
    %v3227 = vsel %vm845, %v3221, -inf
    %3228 = vmax.xlane.f32.xlu0 %v3227
    %v3229 = vpop.xlane.xlu0 %3228
    %v3230 = vsel %vm845, %v3222, -inf
    %3231 = vmax.xlane.f32.xlu0 %v3230
    %v3232 = vpop.xlane.xlu0 %3231
    %v3233 = vsel %vm845, %v3223, -inf
    %3234 = vmax.xlane.f32.xlu0 %v3233
    %v3235 = vpop.xlane.xlu0 %3234
    %v3236 = vsub.f32 %v3220, %v3226
    %v3237 = vsub.f32 %v3221, %v3229
    %v3238 = vsub.f32 %v3222, %v3232
    %v3239 = vsub.f32 %v3223, %v3235
    %v3240 = vmul.f32 %v3236, 1.442695
    %v3241 = vpow.pop %v3240
    %v3242 = vmul.f32 %v3237, 1.442695
    %v3243 = vpow.pop %v3242
    %v3244 = vmul.f32 %v3238, 1.442695
    %v3245 = vpow.pop %v3244
    %v3246 = vmul.f32 %v3239, 1.442695
    %v3247 = vpow.pop %v3246
    %v3248 = vsel %vm845, %v3241, 0.0
    %3249 = vadd.xlane.f32.xlu0 %v3248
    %v3250 = vpop.xlane.xlu0 %3249
    %v3251 = vsel %vm845, %v3243, 0.0
    %3252 = vadd.xlane.f32.xlu0 %v3251
    %v3253 = vpop.xlane.xlu0 %3252
    %v3254 = vsel %vm845, %v3245, 0.0
    %3255 = vadd.xlane.f32.xlu0 %v3254
    %v3256 = vpop.xlane.xlu0 %3255
    %v3257 = vsel %vm845, %v3247, 0.0
    %3258 = vadd.xlane.f32.xlu0 %v3257
    %v3259 = vpop.xlane.xlu0 %3258
    %v3260 = vrcp.pop %v3250
    %v3261 = vrcp.pop %v3253
    %v3262 = vrcp.pop %v3256
    %v3263 = vrcp.pop %v3259
    %v3264 = vmul.f32 %v3241, %v3260
    %v3265 = vmul.f32 %v3243, %v3261
    %v3266 = vmul.f32 %v3245, %v3262
    %v3267 = vmul.f32 %v3247, %v3263
    %v3268 = vpack.c.bf16 %v3265, %v3264
    %v3269 = vpack.c.bf16 %v3267, %v3266
    %3271 = vrot.lane.b32.xlu0 %v2872, 96
    %v3272 = vpop.permute.xlu0 %3271
    %v3275 = vsel %vm845, %v3268, 0
    %3277 = vmatprep.subr.bf16.mxu0 0
    %3278 = vmatpush1.bf16.msra.mxu0 %v3272
    %3279 = vmatprep.subr.bf16.mxu0 0
    %3280 = vmatpush1.bf16.msra.mxu0 0
    %3281 = vmatprep.subr.bf16.mxu0 0
    %3282 = vmatpush1.bf16.msra.mxu0 0
    %3283 = vmatprep.subr.bf16.mxu0 0
    %3284 = vmatpush1.bf16.msra.mxu0 0
    %3285 = vmatprep.subr.bf16.mxu0 0
    %3286 = vmatpush1.bf16.msra.mxu0 0
    %3287 = vmatprep.subr.bf16.mxu0 0
    %3288 = vmatpush1.bf16.msra.mxu0 0
    %3289 = vmatprep.subr.bf16.mxu0 0
    %3290 = vmatpush1.bf16.msra.mxu0 0
    %3291 = vmatprep.subr.bf16.mxu0 0
    %3292 = vmatpush1.bf16.msra.mxu0 0
    %3293 = vmatprep.subr.bf16.mxu0 0
    %3294 = vmatpush1.bf16.msra.mxu0 0
    %3295 = vmatprep.subr.bf16.mxu0 0
    %3296 = vmatpush1.bf16.msra.mxu0 0
    %3297 = vmatprep.subr.bf16.mxu0 0
    %3298 = vmatpush1.bf16.msra.mxu0 0
    %3299 = vmatprep.subr.bf16.mxu0 0
    %3300 = vmatpush1.bf16.msra.mxu0 0
    %3301 = vmatprep.subr.bf16.mxu0 0
    %3302 = vmatpush1.bf16.msra.mxu0 0
    %3303 = vmatprep.subr.bf16.mxu0 0
    %3304 = vmatpush1.bf16.msra.mxu0 0
    %3305 = vmatprep.subr.bf16.mxu0 0
    %3306 = vmatpush1.bf16.msra.mxu0 0
    %3307 = vmatprep.subr.bf16.mxu0 0
    %3308 = vmatpush1.bf16.msra.mxu0 0
    %3309 = vmatprep.mubr.bf16.mxu0 0
    %3310 = vmatmul.mubr.bf16.gmra.mrb[0].mxu0 %v3275
    %v3311 = vpop.f32.mrb[0].mxu0
    %v3312 = vadd.f32 0.0, %v3311
    %v3313 = vpop.f32.mrb[0].mxu0
    %v3314 = vpop.f32.mrb[0].mxu0
    %v3315 = vadd.f32 0.0, %v3314
    %v3316 = vpop.f32.mrb[0].mxu0
    %3317 = vdwg.mxu0
    %3319 = vrot.lane.b32.xlu0 %v2873, 96
    %v3320 = vpop.permute.xlu0 %3319
    %v3323 = vsel %vm845, %v3269, 0
    %3325 = vmatprep.subr.bf16.mxu0 0
    %3326 = vmatpush1.bf16.msra.mxu0 %v3320
    %3327 = vmatprep.subr.bf16.mxu0 0
    %3328 = vmatpush1.bf16.msra.mxu0 0
    %3329 = vmatprep.subr.bf16.mxu0 0
    %3330 = vmatpush1.bf16.msra.mxu0 0
    %3331 = vmatprep.subr.bf16.mxu0 0
    %3332 = vmatpush1.bf16.msra.mxu0 0
    %3333 = vmatprep.subr.bf16.mxu0 0
    %3334 = vmatpush1.bf16.msra.mxu0 0
    %3335 = vmatprep.subr.bf16.mxu0 0
    %3336 = vmatpush1.bf16.msra.mxu0 0
    %3337 = vmatprep.subr.bf16.mxu0 0
    %3338 = vmatpush1.bf16.msra.mxu0 0
    %3339 = vmatprep.subr.bf16.mxu0 0
    %3340 = vmatpush1.bf16.msra.mxu0 0
    %3341 = vmatprep.subr.bf16.mxu0 0
    %3342 = vmatpush1.bf16.msra.mxu0 0
    %3343 = vmatprep.subr.bf16.mxu0 0
    %3344 = vmatpush1.bf16.msra.mxu0 0
    %3345 = vmatprep.subr.bf16.mxu0 0
    %3346 = vmatpush1.bf16.msra.mxu0 0
    %3347 = vmatprep.subr.bf16.mxu0 0
    %3348 = vmatpush1.bf16.msra.mxu0 0
    %3349 = vmatprep.subr.bf16.mxu0 0
    %3350 = vmatpush1.bf16.msra.mxu0 0
    %3351 = vmatprep.subr.bf16.mxu0 0
    %3352 = vmatpush1.bf16.msra.mxu0 0
    %3353 = vmatprep.subr.bf16.mxu0 0
    %3354 = vmatpush1.bf16.msra.mxu0 0
    %3355 = vmatprep.subr.bf16.mxu0 0
    %3356 = vmatpush1.bf16.msra.mxu0 0
    %3357 = vmatprep.mubr.bf16.mxu0 0
    %3358 = vmatmul.mubr.bf16.gmra.mrb[0].mxu0 %v3323
    %v3359 = vpop.f32.mrb[0].mxu0
    %v3360 = vadd.f32 0.0, %v3359
    %v3361 = vpop.f32.mrb[0].mxu0
    %v3362 = vpop.f32.mrb[0].mxu0
    %v3363 = vadd.f32 0.0, %v3362
    %v3364 = vpop.f32.mrb[0].mxu0
    %3365 = vdwg.mxu0
    %3366 = vrot.lane.b32.xlu0 %v2868, 64
    %v3367 = vpop.permute.xlu0 %3366
    %3368 = vrot.lane.b32.xlu0 %v2870, 64
    %v3369 = vpop.permute.xlu0 %3368
    %v3371 = vsel %vm354, %v3367, 0
    %v3374 = vsel %vm354, %v3369, 0
    %3376 = vmatprep.subr.bf16.mxu0 0
    %3377 = vmatpush1.bf16.xpose.msra.mxu0 %v3374
    %3378 = vmatprep.subr.bf16.mxu0 0
    %3379 = vmatpush1.bf16.xpose.msra.mxu0 0
    %3380 = vmatprep.subr.bf16.mxu0 0
    %3381 = vmatpush1.bf16.xpose.msra.mxu0 0
    %3382 = vmatprep.subr.bf16.mxu0 0
    %3383 = vmatpush1.bf16.xpose.msra.mxu0 0
    %3384 = vmatprep.subr.bf16.mxu0 0
    %3385 = vmatpush1.bf16.xpose.msra.mxu0 0
    %3386 = vmatprep.subr.bf16.mxu0 0
    %3387 = vmatpush1.bf16.xpose.msra.mxu0 0
    %3388 = vmatprep.subr.bf16.mxu0 0
    %3389 = vmatpush1.bf16.xpose.msra.mxu0 0
    %3390 = vmatprep.subr.bf16.mxu0 0
    %3391 = vmatpush1.bf16.xpose.msra.mxu0 0
    %3392 = vmatprep.subr.bf16.mxu0 0
    %3393 = vmatpush1.bf16.xpose.msra.mxu0 0
    %3394 = vmatprep.subr.bf16.mxu0 0
    %3395 = vmatpush1.bf16.xpose.msra.mxu0 0
    %3396 = vmatprep.subr.bf16.mxu0 0
    %3397 = vmatpush1.bf16.xpose.msra.mxu0 0
    %3398 = vmatprep.subr.bf16.mxu0 0
    %3399 = vmatpush1.bf16.xpose.msra.mxu0 0
    %3400 = vmatprep.subr.bf16.mxu0 0
    %3401 = vmatpush1.bf16.xpose.msra.mxu0 0
    %3402 = vmatprep.subr.bf16.mxu0 0
    %3403 = vmatpush1.bf16.xpose.msra.mxu0 0
    %3404 = vmatprep.subr.bf16.mxu0 0
    %3405 = vmatpush1.bf16.xpose.msra.mxu0 0
    %3406 = vmatprep.subr.bf16.mxu0 0
    %3407 = vmatpush1.bf16.xpose.msra.mxu0 0
    %3408 = vmatprep.mubr.bf16.mxu0 0
    %3409 = vmatmul.mubr.bf16.gmra.mrb[0].mxu0 %v3371
    %v3410 = vpop.f32.mrb[0].mxu0
    %v3411 = vadd.f32 0.0, %v3410
    %v3412 = vpop.f32.mrb[0].mxu0
    %v3413 = vpop.f32.mrb[0].mxu0
    %v3414 = vadd.f32 0.0, %v3413
    %v3415 = vpop.f32.mrb[0].mxu0
    %3416 = vdwg.mxu0
    %3417 = vrot.lane.b32.xlu0 %v2869, 64
    %v3418 = vpop.permute.xlu0 %3417
    %3419 = vrot.lane.b32.xlu0 %v2871, 64
    %v3420 = vpop.permute.xlu0 %3419
    %v3422 = vsel %vm354, %v3418, 0
    %v3425 = vsel %vm354, %v3420, 0
    %3427 = vmatprep.subr.bf16.mxu0 0
    %3428 = vmatpush1.bf16.xpose.msra.mxu0 %v3425
    %3429 = vmatprep.subr.bf16.mxu0 0
    %3430 = vmatpush1.bf16.xpose.msra.mxu0 0
    %3431 = vmatprep.subr.bf16.mxu0 0
    %3432 = vmatpush1.bf16.xpose.msra.mxu0 0
    %3433 = vmatprep.subr.bf16.mxu0 0
    %3434 = vmatpush1.bf16.xpose.msra.mxu0 0
    %3435 = vmatprep.subr.bf16.mxu0 0
    %3436 = vmatpush1.bf16.xpose.msra.mxu0 0
    %3437 = vmatprep.subr.bf16.mxu0 0
    %3438 = vmatpush1.bf16.xpose.msra.mxu0 0
    %3439 = vmatprep.subr.bf16.mxu0 0
    %3440 = vmatpush1.bf16.xpose.msra.mxu0 0
    %3441 = vmatprep.subr.bf16.mxu0 0
    %3442 = vmatpush1.bf16.xpose.msra.mxu0 0
    %3443 = vmatprep.subr.bf16.mxu0 0
    %3444 = vmatpush1.bf16.xpose.msra.mxu0 0
    %3445 = vmatprep.subr.bf16.mxu0 0
    %3446 = vmatpush1.bf16.xpose.msra.mxu0 0
    %3447 = vmatprep.subr.bf16.mxu0 0
    %3448 = vmatpush1.bf16.xpose.msra.mxu0 0
    %3449 = vmatprep.subr.bf16.mxu0 0
    %3450 = vmatpush1.bf16.xpose.msra.mxu0 0
    %3451 = vmatprep.subr.bf16.mxu0 0
    %3452 = vmatpush1.bf16.xpose.msra.mxu0 0
    %3453 = vmatprep.subr.bf16.mxu0 0
    %3454 = vmatpush1.bf16.xpose.msra.mxu0 0
    %3455 = vmatprep.subr.bf16.mxu0 0
    %3456 = vmatpush1.bf16.xpose.msra.mxu0 0
    %3457 = vmatprep.subr.bf16.mxu0 0
    %3458 = vmatpush1.bf16.xpose.msra.mxu0 0
    %3459 = vmatprep.mubr.bf16.mxu0 0
    %3460 = vmatmul.mubr.bf16.gmra.mrb[0].mxu0 %v3422
    %v3461 = vpop.f32.mrb[0].mxu0
    %v3462 = vadd.f32 0.0, %v3461
    %v3463 = vpop.f32.mrb[0].mxu0
    %v3464 = vpop.f32.mrb[0].mxu0
    %v3465 = vadd.f32 0.0, %v3464
    %v3466 = vpop.f32.mrb[0].mxu0
    %3467 = vdwg.mxu0
    %v3468 = vmul.f32 %v3411, 0.17677669
    %v3469 = vmul.f32 %v3414, 0.17677669
    %v3470 = vmul.f32 %v3462, 0.17677669
    %v3471 = vmul.f32 %v3465, 0.17677669
    %v3472 = vadd.f32 %v3468, %v834
    %v3473 = vadd.f32 %v3469, %v834
    %v3474 = vadd.f32 %v3470, %v838
    %v3475 = vadd.f32 %v3471, %v838
    %v3476 = vsel %vm845, %v3472, -inf
    %3477 = vmax.xlane.f32.xlu0 %v3476
    %v3478 = vpop.xlane.xlu0 %3477
    %v3479 = vsel %vm845, %v3473, -inf
    %3480 = vmax.xlane.f32.xlu0 %v3479
    %v3481 = vpop.xlane.xlu0 %3480
    %v3482 = vsel %vm845, %v3474, -inf
    %3483 = vmax.xlane.f32.xlu0 %v3482
    %v3484 = vpop.xlane.xlu0 %3483
    %v3485 = vsel %vm845, %v3475, -inf
    %3486 = vmax.xlane.f32.xlu0 %v3485
    %v3487 = vpop.xlane.xlu0 %3486
    %v3488 = vsub.f32 %v3472, %v3478
    %v3489 = vsub.f32 %v3473, %v3481
    %v3490 = vsub.f32 %v3474, %v3484
    %v3491 = vsub.f32 %v3475, %v3487
    %v3492 = vmul.f32 %v3488, 1.442695
    %v3493 = vpow.pop %v3492
    %v3494 = vmul.f32 %v3489, 1.442695
    %v3495 = vpow.pop %v3494
    %v3496 = vmul.f32 %v3490, 1.442695
    %v3497 = vpow.pop %v3496
    %v3498 = vmul.f32 %v3491, 1.442695
    %v3499 = vpow.pop %v3498
    %v3500 = vsel %vm845, %v3493, 0.0
    %3501 = vadd.xlane.f32.xlu0 %v3500
    %v3502 = vpop.xlane.xlu0 %3501
    %v3503 = vsel %vm845, %v3495, 0.0
    %3504 = vadd.xlane.f32.xlu0 %v3503
    %v3505 = vpop.xlane.xlu0 %3504
    %v3506 = vsel %vm845, %v3497, 0.0
    %3507 = vadd.xlane.f32.xlu0 %v3506
    %v3508 = vpop.xlane.xlu0 %3507
    %v3509 = vsel %vm845, %v3499, 0.0
    %3510 = vadd.xlane.f32.xlu0 %v3509
    %v3511 = vpop.xlane.xlu0 %3510
    %v3512 = vrcp.pop %v3502
    %v3513 = vrcp.pop %v3505
    %v3514 = vrcp.pop %v3508
    %v3515 = vrcp.pop %v3511
    %v3516 = vmul.f32 %v3493, %v3512
    %v3517 = vmul.f32 %v3495, %v3513
    %v3518 = vmul.f32 %v3497, %v3514
    %v3519 = vmul.f32 %v3499, %v3515
    %v3520 = vpack.c.bf16 %v3517, %v3516
    %v3521 = vpack.c.bf16 %v3519, %v3518
    %3522 = vrot.lane.b32.xlu0 %v2872, 64
    %v3523 = vpop.permute.xlu0 %3522
    %v3526 = vsel %vm845, %v3520, 0
    %3528 = vmatprep.subr.bf16.mxu0 0
    %3529 = vmatpush1.bf16.msra.mxu0 %v3523
    %3530 = vmatprep.subr.bf16.mxu0 0
    %3531 = vmatpush1.bf16.msra.mxu0 0
    %3532 = vmatprep.subr.bf16.mxu0 0
    %3533 = vmatpush1.bf16.msra.mxu0 0
    %3534 = vmatprep.subr.bf16.mxu0 0
    %3535 = vmatpush1.bf16.msra.mxu0 0
    %3536 = vmatprep.subr.bf16.mxu0 0
    %3537 = vmatpush1.bf16.msra.mxu0 0
    %3538 = vmatprep.subr.bf16.mxu0 0
    %3539 = vmatpush1.bf16.msra.mxu0 0
    %3540 = vmatprep.subr.bf16.mxu0 0
    %3541 = vmatpush1.bf16.msra.mxu0 0
    %3542 = vmatprep.subr.bf16.mxu0 0
    %3543 = vmatpush1.bf16.msra.mxu0 0
    %3544 = vmatprep.subr.bf16.mxu0 0
    %3545 = vmatpush1.bf16.msra.mxu0 0
    %3546 = vmatprep.subr.bf16.mxu0 0
    %3547 = vmatpush1.bf16.msra.mxu0 0
    %3548 = vmatprep.subr.bf16.mxu0 0
    %3549 = vmatpush1.bf16.msra.mxu0 0
    %3550 = vmatprep.subr.bf16.mxu0 0
    %3551 = vmatpush1.bf16.msra.mxu0 0
    %3552 = vmatprep.subr.bf16.mxu0 0
    %3553 = vmatpush1.bf16.msra.mxu0 0
    %3554 = vmatprep.subr.bf16.mxu0 0
    %3555 = vmatpush1.bf16.msra.mxu0 0
    %3556 = vmatprep.subr.bf16.mxu0 0
    %3557 = vmatpush1.bf16.msra.mxu0 0
    %3558 = vmatprep.subr.bf16.mxu0 0
    %3559 = vmatpush1.bf16.msra.mxu0 0
    %3560 = vmatprep.mubr.bf16.mxu0 0
    %3561 = vmatmul.mubr.bf16.gmra.mrb[0].mxu0 %v3526
    %v3562 = vpop.f32.mrb[0].mxu0
    %v3563 = vadd.f32 0.0, %v3562
    %v3564 = vpop.f32.mrb[0].mxu0
    %v3565 = vpop.f32.mrb[0].mxu0
    %v3566 = vadd.f32 0.0, %v3565
    %v3567 = vpop.f32.mrb[0].mxu0
    %3568 = vdwg.mxu0
    %3569 = vrot.lane.b32.xlu0 %v2873, 64
    %v3570 = vpop.permute.xlu0 %3569
    %v3573 = vsel %vm845, %v3521, 0
    %3575 = vmatprep.subr.bf16.mxu0 0
    %3576 = vmatpush1.bf16.msra.mxu0 %v3570
    %3577 = vmatprep.subr.bf16.mxu0 0
    %3578 = vmatpush1.bf16.msra.mxu0 0
    %3579 = vmatprep.subr.bf16.mxu0 0
    %3580 = vmatpush1.bf16.msra.mxu0 0
    %3581 = vmatprep.subr.bf16.mxu0 0
    %3582 = vmatpush1.bf16.msra.mxu0 0
    %3583 = vmatprep.subr.bf16.mxu0 0
    %3584 = vmatpush1.bf16.msra.mxu0 0
    %3585 = vmatprep.subr.bf16.mxu0 0
    %3586 = vmatpush1.bf16.msra.mxu0 0
    %3587 = vmatprep.subr.bf16.mxu0 0
    %3588 = vmatpush1.bf16.msra.mxu0 0
    %3589 = vmatprep.subr.bf16.mxu0 0
    %3590 = vmatpush1.bf16.msra.mxu0 0
    %3591 = vmatprep.subr.bf16.mxu0 0
    %3592 = vmatpush1.bf16.msra.mxu0 0
    %3593 = vmatprep.subr.bf16.mxu0 0
    %3594 = vmatpush1.bf16.msra.mxu0 0
    %3595 = vmatprep.subr.bf16.mxu0 0
    %3596 = vmatpush1.bf16.msra.mxu0 0
    %3597 = vmatprep.subr.bf16.mxu0 0
    %3598 = vmatpush1.bf16.msra.mxu0 0
    %3599 = vmatprep.subr.bf16.mxu0 0
    %3600 = vmatpush1.bf16.msra.mxu0 0
    %3601 = vmatprep.subr.bf16.mxu0 0
    %3602 = vmatpush1.bf16.msra.mxu0 0
    %3603 = vmatprep.subr.bf16.mxu0 0
    %3604 = vmatpush1.bf16.msra.mxu0 0
    %3605 = vmatprep.subr.bf16.mxu0 0
    %3606 = vmatpush1.bf16.msra.mxu0 0
    %3607 = vmatprep.mubr.bf16.mxu0 0
    %3608 = vmatmul.mubr.bf16.gmra.mrb[0].mxu0 %v3573
    %v3609 = vpop.f32.mrb[0].mxu0
    %v3610 = vadd.f32 0.0, %v3609
    %v3611 = vpop.f32.mrb[0].mxu0
    %v3612 = vpop.f32.mrb[0].mxu0
    %v3613 = vadd.f32 0.0, %v3612
    %v3614 = vpop.f32.mrb[0].mxu0
    %3615 = vdwg.mxu0
    %3616 = vrot.lane.b32.xlu0 %v2868, 32
    %v3617 = vpop.permute.xlu0 %3616
    %3618 = vrot.lane.b32.xlu0 %v2870, 32
    %v3619 = vpop.permute.xlu0 %3618
    %v3621 = vsel %vm354, %v3617, 0
    %v3624 = vsel %vm354, %v3619, 0
    %3626 = vmatprep.subr.bf16.mxu0 0
    %3627 = vmatpush1.bf16.xpose.msra.mxu0 %v3624
    %3628 = vmatprep.subr.bf16.mxu0 0
    %3629 = vmatpush1.bf16.xpose.msra.mxu0 0
    %3630 = vmatprep.subr.bf16.mxu0 0
    %3631 = vmatpush1.bf16.xpose.msra.mxu0 0
    %3632 = vmatprep.subr.bf16.mxu0 0
    %3633 = vmatpush1.bf16.xpose.msra.mxu0 0
    %3634 = vmatprep.subr.bf16.mxu0 0
    %3635 = vmatpush1.bf16.xpose.msra.mxu0 0
    %3636 = vmatprep.subr.bf16.mxu0 0
    %3637 = vmatpush1.bf16.xpose.msra.mxu0 0
    %3638 = vmatprep.subr.bf16.mxu0 0
    %3639 = vmatpush1.bf16.xpose.msra.mxu0 0
    %3640 = vmatprep.subr.bf16.mxu0 0
    %3641 = vmatpush1.bf16.xpose.msra.mxu0 0
    %3642 = vmatprep.subr.bf16.mxu0 0
    %3643 = vmatpush1.bf16.xpose.msra.mxu0 0
    %3644 = vmatprep.subr.bf16.mxu0 0
    %3645 = vmatpush1.bf16.xpose.msra.mxu0 0
    %3646 = vmatprep.subr.bf16.mxu0 0
    %3647 = vmatpush1.bf16.xpose.msra.mxu0 0
    %3648 = vmatprep.subr.bf16.mxu0 0
    %3649 = vmatpush1.bf16.xpose.msra.mxu0 0
    %3650 = vmatprep.subr.bf16.mxu0 0
    %3651 = vmatpush1.bf16.xpose.msra.mxu0 0
    %3652 = vmatprep.subr.bf16.mxu0 0
    %3653 = vmatpush1.bf16.xpose.msra.mxu0 0
    %3654 = vmatprep.subr.bf16.mxu0 0
    %3655 = vmatpush1.bf16.xpose.msra.mxu0 0
    %3656 = vmatprep.subr.bf16.mxu0 0
    %3657 = vmatpush1.bf16.xpose.msra.mxu0 0
    %3658 = vmatprep.mubr.bf16.mxu0 0
    %3659 = vmatmul.mubr.bf16.gmra.mrb[0].mxu0 %v3621
    %v3660 = vpop.f32.mrb[0].mxu0
    %v3661 = vadd.f32 0.0, %v3660
    %v3662 = vpop.f32.mrb[0].mxu0
    %v3663 = vpop.f32.mrb[0].mxu0
    %v3664 = vadd.f32 0.0, %v3663
    %v3665 = vpop.f32.mrb[0].mxu0
    %3666 = vdwg.mxu0
    %3667 = vrot.lane.b32.xlu0 %v2869, 32
    %v3668 = vpop.permute.xlu0 %3667
    %3669 = vrot.lane.b32.xlu0 %v2871, 32
    %v3670 = vpop.permute.xlu0 %3669
    %v3672 = vsel %vm354, %v3668, 0
    %v3675 = vsel %vm354, %v3670, 0
    %3677 = vmatprep.subr.bf16.mxu0 0
    %3678 = vmatpush1.bf16.xpose.msra.mxu0 %v3675
    %3679 = vmatprep.subr.bf16.mxu0 0
    %3680 = vmatpush1.bf16.xpose.msra.mxu0 0
    %3681 = vmatprep.subr.bf16.mxu0 0
    %3682 = vmatpush1.bf16.xpose.msra.mxu0 0
    %3683 = vmatprep.subr.bf16.mxu0 0
    %3684 = vmatpush1.bf16.xpose.msra.mxu0 0
    %3685 = vmatprep.subr.bf16.mxu0 0
    %3686 = vmatpush1.bf16.xpose.msra.mxu0 0
    %3687 = vmatprep.subr.bf16.mxu0 0
    %3688 = vmatpush1.bf16.xpose.msra.mxu0 0
    %3689 = vmatprep.subr.bf16.mxu0 0
    %3690 = vmatpush1.bf16.xpose.msra.mxu0 0
    %3691 = vmatprep.subr.bf16.mxu0 0
    %3692 = vmatpush1.bf16.xpose.msra.mxu0 0
    %3693 = vmatprep.subr.bf16.mxu0 0
    %3694 = vmatpush1.bf16.xpose.msra.mxu0 0
    %3695 = vmatprep.subr.bf16.mxu0 0
    %3696 = vmatpush1.bf16.xpose.msra.mxu0 0
    %3697 = vmatprep.subr.bf16.mxu0 0
    %3698 = vmatpush1.bf16.xpose.msra.mxu0 0
    %3699 = vmatprep.subr.bf16.mxu0 0
    %3700 = vmatpush1.bf16.xpose.msra.mxu0 0
    %3701 = vmatprep.subr.bf16.mxu0 0
    %3702 = vmatpush1.bf16.xpose.msra.mxu0 0
    %3703 = vmatprep.subr.bf16.mxu0 0
    %3704 = vmatpush1.bf16.xpose.msra.mxu0 0
    %3705 = vmatprep.subr.bf16.mxu0 0
    %3706 = vmatpush1.bf16.xpose.msra.mxu0 0
    %3707 = vmatprep.subr.bf16.mxu0 0
    %3708 = vmatpush1.bf16.xpose.msra.mxu0 0
    %3709 = vmatprep.mubr.bf16.mxu0 0
    %3710 = vmatmul.mubr.bf16.gmra.mrb[0].mxu0 %v3672
    %v3711 = vpop.f32.mrb[0].mxu0
    %v3712 = vadd.f32 0.0, %v3711
    %v3713 = vpop.f32.mrb[0].mxu0
    %v3714 = vpop.f32.mrb[0].mxu0
    %v3715 = vadd.f32 0.0, %v3714
    %v3716 = vpop.f32.mrb[0].mxu0
    %3717 = vdwg.mxu0
    %v3718 = vmul.f32 %v3661, 0.17677669
    %v3719 = vmul.f32 %v3664, 0.17677669
    %v3720 = vmul.f32 %v3712, 0.17677669
    %v3721 = vmul.f32 %v3715, 0.17677669
    %v3722 = vadd.f32 %v3718, %v834
    %v3723 = vadd.f32 %v3719, %v834
    %v3724 = vadd.f32 %v3720, %v838
    %v3725 = vadd.f32 %v3721, %v838
    %v3726 = vsel %vm845, %v3722, -inf
    %3727 = vmax.xlane.f32.xlu0 %v3726
    %v3728 = vpop.xlane.xlu0 %3727
    %v3729 = vsel %vm845, %v3723, -inf
    %3730 = vmax.xlane.f32.xlu0 %v3729
    %v3731 = vpop.xlane.xlu0 %3730
    %v3732 = vsel %vm845, %v3724, -inf
    %3733 = vmax.xlane.f32.xlu0 %v3732
    %v3734 = vpop.xlane.xlu0 %3733
    %v3735 = vsel %vm845, %v3725, -inf
    %3736 = vmax.xlane.f32.xlu0 %v3735
    %v3737 = vpop.xlane.xlu0 %3736
    %v3738 = vsub.f32 %v3722, %v3728
    %v3739 = vsub.f32 %v3723, %v3731
    %v3740 = vsub.f32 %v3724, %v3734
    %v3741 = vsub.f32 %v3725, %v3737
    %v3742 = vmul.f32 %v3738, 1.442695
    %v3743 = vpow.pop %v3742
    %v3744 = vmul.f32 %v3739, 1.442695
    %v3745 = vpow.pop %v3744
    %v3746 = vmul.f32 %v3740, 1.442695
    %v3747 = vpow.pop %v3746
    %v3748 = vmul.f32 %v3741, 1.442695
    %v3749 = vpow.pop %v3748
    %v3750 = vsel %vm845, %v3743, 0.0
    %3751 = vadd.xlane.f32.xlu0 %v3750
    %v3752 = vpop.xlane.xlu0 %3751
    %v3753 = vsel %vm845, %v3745, 0.0
    %3754 = vadd.xlane.f32.xlu0 %v3753
    %v3755 = vpop.xlane.xlu0 %3754
    %v3756 = vsel %vm845, %v3747, 0.0
    %3757 = vadd.xlane.f32.xlu0 %v3756
    %v3758 = vpop.xlane.xlu0 %3757
    %v3759 = vsel %vm845, %v3749, 0.0
    %3760 = vadd.xlane.f32.xlu0 %v3759
    %v3761 = vpop.xlane.xlu0 %3760
    %v3762 = vrcp.pop %v3752
    %v3763 = vrcp.pop %v3755
    %v3764 = vrcp.pop %v3758
    %v3765 = vrcp.pop %v3761
    %v3766 = vmul.f32 %v3743, %v3762
    %v3767 = vmul.f32 %v3745, %v3763
    %v3768 = vmul.f32 %v3747, %v3764
    %v3769 = vmul.f32 %v3749, %v3765
    %v3770 = vpack.c.bf16 %v3767, %v3766
    %v3771 = vpack.c.bf16 %v3769, %v3768
    %3772 = vrot.lane.b32.xlu0 %v2872, 32
    %v3773 = vpop.permute.xlu0 %3772
    %v3776 = vsel %vm845, %v3770, 0
    %3778 = vmatprep.subr.bf16.mxu0 0
    %3779 = vmatpush1.bf16.msra.mxu0 %v3773
    %3780 = vmatprep.subr.bf16.mxu0 0
    %3781 = vmatpush1.bf16.msra.mxu0 0
    %3782 = vmatprep.subr.bf16.mxu0 0
    %3783 = vmatpush1.bf16.msra.mxu0 0
    %3784 = vmatprep.subr.bf16.mxu0 0
    %3785 = vmatpush1.bf16.msra.mxu0 0
    %3786 = vmatprep.subr.bf16.mxu0 0
    %3787 = vmatpush1.bf16.msra.mxu0 0
    %3788 = vmatprep.subr.bf16.mxu0 0
    %3789 = vmatpush1.bf16.msra.mxu0 0
    %3790 = vmatprep.subr.bf16.mxu0 0
    %3791 = vmatpush1.bf16.msra.mxu0 0
    %3792 = vmatprep.subr.bf16.mxu0 0
    %3793 = vmatpush1.bf16.msra.mxu0 0
    %3794 = vmatprep.subr.bf16.mxu0 0
    %3795 = vmatpush1.bf16.msra.mxu0 0
    %3796 = vmatprep.subr.bf16.mxu0 0
    %3797 = vmatpush1.bf16.msra.mxu0 0
    %3798 = vmatprep.subr.bf16.mxu0 0
    %3799 = vmatpush1.bf16.msra.mxu0 0
    %3800 = vmatprep.subr.bf16.mxu0 0
    %3801 = vmatpush1.bf16.msra.mxu0 0
    %3802 = vmatprep.subr.bf16.mxu0 0
    %3803 = vmatpush1.bf16.msra.mxu0 0
    %3804 = vmatprep.subr.bf16.mxu0 0
    %3805 = vmatpush1.bf16.msra.mxu0 0
    %3806 = vmatprep.subr.bf16.mxu0 0
    %3807 = vmatpush1.bf16.msra.mxu0 0
    %3808 = vmatprep.subr.bf16.mxu0 0
    %3809 = vmatpush1.bf16.msra.mxu0 0
    %3810 = vmatprep.mubr.bf16.mxu0 0
    %3811 = vmatmul.mubr.bf16.gmra.mrb[0].mxu0 %v3776
    %v3812 = vpop.f32.mrb[0].mxu0
    %v3813 = vadd.f32 0.0, %v3812
    %v3814 = vpop.f32.mrb[0].mxu0
    %v3815 = vpop.f32.mrb[0].mxu0
    %v3816 = vadd.f32 0.0, %v3815
    %v3817 = vpop.f32.mrb[0].mxu0
    %3818 = vdwg.mxu0
    %3819 = vrot.lane.b32.xlu0 %v2873, 32
    %v3820 = vpop.permute.xlu0 %3819
    %v3823 = vsel %vm845, %v3771, 0
    %3825 = vmatprep.subr.bf16.mxu0 0
    %3826 = vmatpush1.bf16.msra.mxu0 %v3820
    %3827 = vmatprep.subr.bf16.mxu0 0
    %3828 = vmatpush1.bf16.msra.mxu0 0
    %3829 = vmatprep.subr.bf16.mxu0 0
    %3830 = vmatpush1.bf16.msra.mxu0 0
    %3831 = vmatprep.subr.bf16.mxu0 0
    %3832 = vmatpush1.bf16.msra.mxu0 0
    %3833 = vmatprep.subr.bf16.mxu0 0
    %3834 = vmatpush1.bf16.msra.mxu0 0
    %3835 = vmatprep.subr.bf16.mxu0 0
    %3836 = vmatpush1.bf16.msra.mxu0 0
    %3837 = vmatprep.subr.bf16.mxu0 0
    %3838 = vmatpush1.bf16.msra.mxu0 0
    %3839 = vmatprep.subr.bf16.mxu0 0
    %3840 = vmatpush1.bf16.msra.mxu0 0
    %3841 = vmatprep.subr.bf16.mxu0 0
    %3842 = vmatpush1.bf16.msra.mxu0 0
    %3843 = vmatprep.subr.bf16.mxu0 0
    %3844 = vmatpush1.bf16.msra.mxu0 0
    %3845 = vmatprep.subr.bf16.mxu0 0
    %3846 = vmatpush1.bf16.msra.mxu0 0
    %3847 = vmatprep.subr.bf16.mxu0 0
    %3848 = vmatpush1.bf16.msra.mxu0 0
    %3849 = vmatprep.subr.bf16.mxu0 0
    %3850 = vmatpush1.bf16.msra.mxu0 0
    %3851 = vmatprep.subr.bf16.mxu0 0
    %3852 = vmatpush1.bf16.msra.mxu0 0
    %3853 = vmatprep.subr.bf16.mxu0 0
    %3854 = vmatpush1.bf16.msra.mxu0 0
    %3855 = vmatprep.subr.bf16.mxu0 0
    %3856 = vmatpush1.bf16.msra.mxu0 0
    %3857 = vmatprep.mubr.bf16.mxu0 0
    %3858 = vmatmul.mubr.bf16.gmra.mrb[0].mxu0 %v3823
    %v3859 = vpop.f32.mrb[0].mxu0
    %v3860 = vadd.f32 0.0, %v3859
    %v3861 = vpop.f32.mrb[0].mxu0
    %v3862 = vpop.f32.mrb[0].mxu0
    %v3863 = vadd.f32 0.0, %v3862
    %v3864 = vpop.f32.mrb[0].mxu0
    %3865 = vdwg.mxu0
    %3870 = vrot.lane.b32.xlu0 %v3312, 32
    %v3871 = vpop.permute.xlu0 %3870
    %3872 = vrot.lane.b32.xlu0 %v3315, 32
    %v3873 = vpop.permute.xlu0 %3872
    %3874 = vrot.lane.b32.xlu0 %v3360, 32
    %v3875 = vpop.permute.xlu0 %3874
    %3876 = vrot.lane.b32.xlu0 %v3363, 32
    %v3877 = vpop.permute.xlu0 %3876
    %3886 = vrot.lane.b32.xlu0 %v3563, 64
    %v3887 = vpop.permute.xlu0 %3886
    %3888 = vrot.lane.b32.xlu0 %v3566, 64
    %v3889 = vpop.permute.xlu0 %3888
    %3890 = vrot.lane.b32.xlu0 %v3610, 64
    %v3891 = vpop.permute.xlu0 %3890
    %3892 = vrot.lane.b32.xlu0 %v3613, 64
    %v3893 = vpop.permute.xlu0 %3892
    %3902 = vrot.lane.b32.xlu0 %v3813, 96
    %v3903 = vpop.permute.xlu0 %3902
    %3904 = vrot.lane.b32.xlu0 %v3816, 96
    %v3905 = vpop.permute.xlu0 %3904
    %3906 = vrot.lane.b32.xlu0 %v3860, 96
    %v3907 = vpop.permute.xlu0 %3906
    %3908 = vrot.lane.b32.xlu0 %v3863, 96
    %v3909 = vpop.permute.xlu0 %3908
    %v3914 = vsel %vm354, %v3060, %v3871
    %v3915 = vsel %vm354, %v3063, %v3873
    %v3916 = vsel %vm354, %v3104, %v3875
    %v3917 = vsel %vm354, %v3107, %v3877
    %v3918 = vsel %vm1788, %v3914, %v3887
    %v3919 = vsel %vm1788, %v3915, %v3889
    %v3920 = vsel %vm1788, %v3916, %v3891
    %v3921 = vsel %vm1788, %v3917, %v3893
    %v3922 = vsel %vm1793, %v3918, %v3903
    %v3923 = vsel %vm1793, %v3919, %v3905
    %v3924 = vsel %vm1793, %v3920, %v3907
    %v3925 = vsel %vm1793, %v3921, %v3909
    %v3926 = vpack.c.bf16 %v3923, %v3922
    %v3927 = vpack.c.bf16 %v3925, %v3924
    %3928 = vmatprep.subr.bf16.mxu0 0
    %3929 = vmatpush1.bf16.msra.mxu0 %v1836
    %3930 = vmatprep.subr.bf16.mxu0 0
    %3931 = vmatpush1.bf16.msra.mxu0 %v1837
    %3932 = vmatprep.subr.bf16.mxu0 0
    %3933 = vmatpush1.bf16.msra.mxu0 %v1838
    %3934 = vmatprep.subr.bf16.mxu0 0
    %3935 = vmatpush1.bf16.msra.mxu0 %v1839
    %3936 = vmatprep.subr.bf16.mxu0 0
    %3937 = vmatpush1.bf16.msra.mxu0 %v1840
    %3938 = vmatprep.subr.bf16.mxu0 0
    %3939 = vmatpush1.bf16.msra.mxu0 %v1841
    %3940 = vmatprep.subr.bf16.mxu0 0
    %3941 = vmatpush1.bf16.msra.mxu0 %v1842
    %3942 = vmatprep.subr.bf16.mxu0 0
    %3943 = vmatpush1.bf16.msra.mxu0 %v1843
    %3944 = vmatprep.subr.bf16.mxu0 0
    %3945 = vmatpush1.bf16.msra.mxu0 0
    %3946 = vmatprep.subr.bf16.mxu0 0
    %3947 = vmatpush1.bf16.msra.mxu0 0
    %3948 = vmatprep.subr.bf16.mxu0 0
    %3949 = vmatpush1.bf16.msra.mxu0 0
    %3950 = vmatprep.subr.bf16.mxu0 0
    %3951 = vmatpush1.bf16.msra.mxu0 0
    %3952 = vmatprep.subr.bf16.mxu0 0
    %3953 = vmatpush1.bf16.msra.mxu0 0
    %3954 = vmatprep.subr.bf16.mxu0 0
    %3955 = vmatpush1.bf16.msra.mxu0 0
    %3956 = vmatprep.subr.bf16.mxu0 0
    %3957 = vmatpush1.bf16.msra.mxu0 0
    %3958 = vmatprep.subr.bf16.mxu0 0
    %3959 = vmatpush1.bf16.msra.mxu0 0
    %3960 = vmatprep.mubr.bf16.mxu0 0
    %3961 = vmatmul.mubr.bf16.gmra.mrb[0].mxu0 %v3926
    %v3962 = vpop.f32.mrb[0].mxu0
    %v3963 = vadd.f32 %v1803, %v3962
    %v3964 = vpop.f32.mrb[0].mxu0
    %v3965 = vpop.f32.mrb[0].mxu0
    %v3966 = vadd.f32 %v1803, %v3965
    %v3967 = vpop.f32.mrb[0].mxu0
    %3968 = vmatprep.mubr.bf16.mxu0 0
    %3969 = vmatmul.mubr.bf16.gmra.mrb[0].mxu0 %v3927
    %v3970 = vpop.f32.mrb[0].mxu0
    %v3971 = vadd.f32 %v1803, %v3970
    %v3972 = vpop.f32.mrb[0].mxu0
    %v3973 = vpop.f32.mrb[0].mxu0
    %v3974 = vadd.f32 %v1803, %v3973
    %v3975 = vpop.f32.mrb[0].mxu0
    %3976 = vdwg.mxu0
    %v3977 = vadd.f32 %v2760, %v3963
    %v3978 = vadd.f32 %v2761, %v3966
    %v3979 = vadd.f32 %v2762, %v3971
    %v3980 = vadd.f32 %v2763, %v3974
    %3981 = vadd.xlane.f32.xlu0 %v3977
    %v3982 = vpop.xlane.xlu0 %3981
    %3983 = vadd.xlane.f32.xlu0 %v3978
    %v3984 = vpop.xlane.xlu0 %3983
    %3985 = vadd.xlane.f32.xlu0 %v3979
    %v3986 = vpop.xlane.xlu0 %3985
    %3987 = vadd.xlane.f32.xlu0 %v3980
    %v3988 = vpop.xlane.xlu0 %3987
    %v3989 = vmul.f32 %v3982, %v418
    %v3990 = vmul.f32 %v3984, %v418
    %v3991 = vmul.f32 %v3986, %v418
    %v3992 = vmul.f32 %v3988, %v418
    %v3993 = vsub.f32 %v3977, %v3989
    %v3994 = vsub.f32 %v3978, %v3990
    %v3995 = vsub.f32 %v3979, %v3991
    %v3996 = vsub.f32 %v3980, %v3992
    %v3997 = vmul.f32 %v3993, %v3993
    %v3998 = vmul.f32 %v3994, %v3994
    %v3999 = vmul.f32 %v3995, %v3995
    %v4000 = vmul.f32 %v3996, %v3996
    %4001 = vadd.xlane.f32.xlu0 %v3997
    %v4002 = vpop.xlane.xlu0 %4001
    %4003 = vadd.xlane.f32.xlu0 %v3998
    %v4004 = vpop.xlane.xlu0 %4003
    %4005 = vadd.xlane.f32.xlu0 %v3999
    %v4006 = vpop.xlane.xlu0 %4005
    %4007 = vadd.xlane.f32.xlu0 %v4000
    %v4008 = vpop.xlane.xlu0 %4007
    %v4009 = vmul.f32 %v4002, %v418
    %v4010 = vmul.f32 %v4004, %v418
    %v4011 = vmul.f32 %v4006, %v418
    %v4012 = vmul.f32 %v4008, %v418
    %v4013 = vadd.f32 %v4009, 1e-05
    %v4014 = vadd.f32 %v4010, 1e-05
    %v4015 = vadd.f32 %v4011, 1e-05
    %v4016 = vadd.f32 %v4012, 1e-05
    %v4017 = vrsqrt.pop %v4013
    %v4018 = vrsqrt.pop %v4014
    %v4019 = vrsqrt.pop %v4015
    %v4020 = vrsqrt.pop %v4016
    %v4021 = vmul.f32 %v3993, %v4017
    %v4022 = vmul.f32 %v3994, %v4018
    %v4023 = vmul.f32 %v3995, %v4019
    %v4024 = vmul.f32 %v3996, %v4020
    %v4025 = vmul.f32 %v4021, %v1952
    %v4026 = vmul.f32 %v4022, %v1952
    %v4027 = vmul.f32 %v4023, %v1952
    %v4028 = vmul.f32 %v4024, %v1952
    %v4029 = vadd.f32 %v4025, %v1960
    %v4030 = vadd.f32 %v4026, %v1960
    %v4031 = vadd.f32 %v4027, %v1960
    %v4032 = vadd.f32 %v4028, %v1960
    %v4033 = vpack.c.bf16 %v4030, %v4029
    %v4034 = vpack.c.bf16 %v4032, %v4031
    %4035 = vmatprep.subr.bf16.mxu0 %v2085
    %4036 = vmatpush1.bf16.msra.mxu0 %v2084
    %4037 = vmatprep.subr.bf16.mxu0 %v2089
    %4038 = vmatpush1.bf16.msra.mxu0 %v2088
    %4039 = vmatprep.subr.bf16.mxu0 %v2093
    %4040 = vmatpush1.bf16.msra.mxu0 %v2092
    %4041 = vmatprep.subr.bf16.mxu0 %v2097
    %4042 = vmatpush1.bf16.msra.mxu0 %v2096
    %4043 = vmatprep.subr.bf16.mxu0 %v2101
    %4044 = vmatpush1.bf16.msra.mxu0 %v2100
    %4045 = vmatprep.subr.bf16.mxu0 %v2105
    %4046 = vmatpush1.bf16.msra.mxu0 %v2104
    %4047 = vmatprep.subr.bf16.mxu0 %v2109
    %4048 = vmatpush1.bf16.msra.mxu0 %v2108
    %4049 = vmatprep.subr.bf16.mxu0 %v2113
    %4050 = vmatpush1.bf16.msra.mxu0 %v2112
    %4051 = vmatprep.subr.bf16.mxu0 0
    %4052 = vmatpush1.bf16.msra.mxu0 0
    %4053 = vmatprep.subr.bf16.mxu0 0
    %4054 = vmatpush1.bf16.msra.mxu0 0
    %4055 = vmatprep.subr.bf16.mxu0 0
    %4056 = vmatpush1.bf16.msra.mxu0 0
    %4057 = vmatprep.subr.bf16.mxu0 0
    %4058 = vmatpush1.bf16.msra.mxu0 0
    %4059 = vmatprep.subr.bf16.mxu0 0
    %4060 = vmatpush1.bf16.msra.mxu0 0
    %4061 = vmatprep.subr.bf16.mxu0 0
    %4062 = vmatpush1.bf16.msra.mxu0 0
    %4063 = vmatprep.subr.bf16.mxu0 0
    %4064 = vmatpush1.bf16.msra.mxu0 0
    %4065 = vmatprep.subr.bf16.mxu0 0
    %4066 = vmatpush1.bf16.msra.mxu0 0
    %4067 = vmatprep.mubr.bf16.mxu0 0
    %4068 = vmatmul.mubr.bf16.gmra.mrb[0].mxu0 %v4033
    %v4069 = vpop.f32.mrb[0].mxu0
    %v4070 = vadd.f32 %v1971, %v4069
    %v4071 = vpop.f32.mrb[0].mxu0
    %v4072 = vadd.f32 %v1975, %v4071
    %v4073 = vpop.f32.mrb[0].mxu0
    %v4074 = vadd.f32 %v1971, %v4073
    %v4075 = vpop.f32.mrb[0].mxu0
    %v4076 = vadd.f32 %v1975, %v4075
    %4077 = vmatprep.mubr.bf16.mxu0 0
    %4078 = vmatmul.mubr.bf16.gmra.mrb[0].mxu0 %v4034
    %v4079 = vpop.f32.mrb[0].mxu0
    %v4080 = vadd.f32 %v1971, %v4079
    %v4081 = vpop.f32.mrb[0].mxu0
    %v4082 = vadd.f32 %v1975, %v4081
    %v4083 = vpop.f32.mrb[0].mxu0
    %v4084 = vadd.f32 %v1971, %v4083
    %v4085 = vpop.f32.mrb[0].mxu0
    %v4086 = vadd.f32 %v1975, %v4085
    %4087 = vdwg.mxu0
    %4088 = vmatprep.subr.bf16.mxu0 %v2087
    %4089 = vmatpush1.bf16.msra.mxu0 %v2086
    %4090 = vmatprep.subr.bf16.mxu0 %v2091
    %4091 = vmatpush1.bf16.msra.mxu0 %v2090
    %4092 = vmatprep.subr.bf16.mxu0 %v2095
    %4093 = vmatpush1.bf16.msra.mxu0 %v2094
    %4094 = vmatprep.subr.bf16.mxu0 %v2099
    %4095 = vmatpush1.bf16.msra.mxu0 %v2098
    %4096 = vmatprep.subr.bf16.mxu0 %v2103
    %4097 = vmatpush1.bf16.msra.mxu0 %v2102
    %4098 = vmatprep.subr.bf16.mxu0 %v2107
    %4099 = vmatpush1.bf16.msra.mxu0 %v2106
    %4100 = vmatprep.subr.bf16.mxu0 %v2111
    %4101 = vmatpush1.bf16.msra.mxu0 %v2110
    %4102 = vmatprep.subr.bf16.mxu0 %v2115
    %4103 = vmatpush1.bf16.msra.mxu0 %v2114
    %4104 = vmatprep.subr.bf16.mxu0 0
    %4105 = vmatpush1.bf16.msra.mxu0 0
    %4106 = vmatprep.subr.bf16.mxu0 0
    %4107 = vmatpush1.bf16.msra.mxu0 0
    %4108 = vmatprep.subr.bf16.mxu0 0
    %4109 = vmatpush1.bf16.msra.mxu0 0
    %4110 = vmatprep.subr.bf16.mxu0 0
    %4111 = vmatpush1.bf16.msra.mxu0 0
    %4112 = vmatprep.subr.bf16.mxu0 0
    %4113 = vmatpush1.bf16.msra.mxu0 0
    %4114 = vmatprep.subr.bf16.mxu0 0
    %4115 = vmatpush1.bf16.msra.mxu0 0
    %4116 = vmatprep.subr.bf16.mxu0 0
    %4117 = vmatpush1.bf16.msra.mxu0 0
    %4118 = vmatprep.subr.bf16.mxu0 0
    %4119 = vmatpush1.bf16.msra.mxu0 0
    %4120 = vmatprep.mubr.bf16.mxu0 0
    %4121 = vmatmul.mubr.bf16.gmra.mrb[0].mxu0 %v4033
    %v4122 = vpop.f32.mrb[0].mxu0
    %v4123 = vadd.f32 %v1979, %v4122
    %v4124 = vpop.f32.mrb[0].mxu0
    %v4125 = vadd.f32 %v1983, %v4124
    %v4126 = vpop.f32.mrb[0].mxu0
    %v4127 = vadd.f32 %v1979, %v4126
    %v4128 = vpop.f32.mrb[0].mxu0
    %v4129 = vadd.f32 %v1983, %v4128
    %4130 = vmatprep.mubr.bf16.mxu0 0
    %4131 = vmatmul.mubr.bf16.gmra.mrb[0].mxu0 %v4034
    %v4132 = vpop.f32.mrb[0].mxu0
    %v4133 = vadd.f32 %v1979, %v4132
    %v4134 = vpop.f32.mrb[0].mxu0
    %v4135 = vadd.f32 %v1983, %v4134
    %v4136 = vpop.f32.mrb[0].mxu0
    %v4137 = vadd.f32 %v1979, %v4136
    %v4138 = vpop.f32.mrb[0].mxu0
    %v4139 = vadd.f32 %v1983, %v4138
    %4140 = vdwg.mxu0
    %v4141 = vmul.f32 %v4070, %v4070
    %v4142 = vmul.f32 %v4072, %v4072
    %v4143 = vmul.f32 %v4123, %v4123
    %v4144 = vmul.f32 %v4125, %v4125
    %v4145 = vmul.f32 %v4074, %v4074
    %v4146 = vmul.f32 %v4076, %v4076
    %v4147 = vmul.f32 %v4127, %v4127
    %v4148 = vmul.f32 %v4129, %v4129
    %v4149 = vmul.f32 %v4080, %v4080
    %v4150 = vmul.f32 %v4082, %v4082
    %v4151 = vmul.f32 %v4133, %v4133
    %v4152 = vmul.f32 %v4135, %v4135
    %v4153 = vmul.f32 %v4084, %v4084
    %v4154 = vmul.f32 %v4086, %v4086
    %v4155 = vmul.f32 %v4137, %v4137
    %v4156 = vmul.f32 %v4139, %v4139
    %v4157 = vmul.f32 %v4070, %v4141
    %v4158 = vmul.f32 %v4072, %v4142
    %v4159 = vmul.f32 %v4123, %v4143
    %v4160 = vmul.f32 %v4125, %v4144
    %v4161 = vmul.f32 %v4074, %v4145
    %v4162 = vmul.f32 %v4076, %v4146
    %v4163 = vmul.f32 %v4127, %v4147
    %v4164 = vmul.f32 %v4129, %v4148
    %v4165 = vmul.f32 %v4080, %v4149
    %v4166 = vmul.f32 %v4082, %v4150
    %v4167 = vmul.f32 %v4133, %v4151
    %v4168 = vmul.f32 %v4135, %v4152
    %v4169 = vmul.f32 %v4084, %v4153
    %v4170 = vmul.f32 %v4086, %v4154
    %v4171 = vmul.f32 %v4137, %v4155
    %v4172 = vmul.f32 %v4139, %v4156
    %v4173 = vmul.f32 %v4157, 0.044715
    %v4174 = vmul.f32 %v4158, 0.044715
    %v4175 = vmul.f32 %v4159, 0.044715
    %v4176 = vmul.f32 %v4160, 0.044715
    %v4177 = vmul.f32 %v4161, 0.044715
    %v4178 = vmul.f32 %v4162, 0.044715
    %v4179 = vmul.f32 %v4163, 0.044715
    %v4180 = vmul.f32 %v4164, 0.044715
    %v4181 = vmul.f32 %v4165, 0.044715
    %v4182 = vmul.f32 %v4166, 0.044715
    %v4183 = vmul.f32 %v4167, 0.044715
    %v4184 = vmul.f32 %v4168, 0.044715
    %v4185 = vmul.f32 %v4169, 0.044715
    %v4186 = vmul.f32 %v4170, 0.044715
    %v4187 = vmul.f32 %v4171, 0.044715
    %v4188 = vmul.f32 %v4172, 0.044715
    %v4189 = vadd.f32 %v4070, %v4173
    %v4190 = vadd.f32 %v4072, %v4174
    %v4191 = vadd.f32 %v4123, %v4175
    %v4192 = vadd.f32 %v4125, %v4176
    %v4193 = vadd.f32 %v4074, %v4177
    %v4194 = vadd.f32 %v4076, %v4178
    %v4195 = vadd.f32 %v4127, %v4179
    %v4196 = vadd.f32 %v4129, %v4180
    %v4197 = vadd.f32 %v4080, %v4181
    %v4198 = vadd.f32 %v4082, %v4182
    %v4199 = vadd.f32 %v4133, %v4183
    %v4200 = vadd.f32 %v4135, %v4184
    %v4201 = vadd.f32 %v4084, %v4185
    %v4202 = vadd.f32 %v4086, %v4186
    %v4203 = vadd.f32 %v4137, %v4187
    %v4204 = vadd.f32 %v4139, %v4188
    %v4205 = vmul.f32 %v4189, 0.7978846
    %v4206 = vmul.f32 %v4190, 0.7978846
    %v4207 = vmul.f32 %v4191, 0.7978846
    %v4208 = vmul.f32 %v4192, 0.7978846
    %v4209 = vmul.f32 %v4193, 0.7978846
    %v4210 = vmul.f32 %v4194, 0.7978846
    %v4211 = vmul.f32 %v4195, 0.7978846
    %v4212 = vmul.f32 %v4196, 0.7978846
    %v4213 = vmul.f32 %v4197, 0.7978846
    %v4214 = vmul.f32 %v4198, 0.7978846
    %v4215 = vmul.f32 %v4199, 0.7978846
    %v4216 = vmul.f32 %v4200, 0.7978846
    %v4217 = vmul.f32 %v4201, 0.7978846
    %v4218 = vmul.f32 %v4202, 0.7978846
    %v4219 = vmul.f32 %v4203, 0.7978846
    %v4220 = vmul.f32 %v4204, 0.7978846
    %v4221 = vtanh.pop %v4205
    %v4222 = vtanh.pop %v4206
    %v4223 = vtanh.pop %v4207
    %v4224 = vtanh.pop %v4208
    %v4225 = vtanh.pop %v4209
    %v4226 = vtanh.pop %v4210
    %v4227 = vtanh.pop %v4211
    %v4228 = vtanh.pop %v4212
    %v4229 = vtanh.pop %v4213
    %v4230 = vtanh.pop %v4214
    %v4231 = vtanh.pop %v4215
    %v4232 = vtanh.pop %v4216
    %v4233 = vtanh.pop %v4217
    %v4234 = vtanh.pop %v4218
    %v4235 = vtanh.pop %v4219
    %v4236 = vtanh.pop %v4220
    %v4237 = vadd.f32 %v4221, 1.0
    %v4238 = vadd.f32 %v4222, 1.0
    %v4239 = vadd.f32 %v4223, 1.0
    %v4240 = vadd.f32 %v4224, 1.0
    %v4241 = vadd.f32 %v4225, 1.0
    %v4242 = vadd.f32 %v4226, 1.0
    %v4243 = vadd.f32 %v4227, 1.0
    %v4244 = vadd.f32 %v4228, 1.0
    %v4245 = vadd.f32 %v4229, 1.0
    %v4246 = vadd.f32 %v4230, 1.0
    %v4247 = vadd.f32 %v4231, 1.0
    %v4248 = vadd.f32 %v4232, 1.0
    %v4249 = vadd.f32 %v4233, 1.0
    %v4250 = vadd.f32 %v4234, 1.0
    %v4251 = vadd.f32 %v4235, 1.0
    %v4252 = vadd.f32 %v4236, 1.0
    %v4253 = vmul.f32 %v4237, 0.5
    %v4254 = vmul.f32 %v4238, 0.5
    %v4255 = vmul.f32 %v4239, 0.5
    %v4256 = vmul.f32 %v4240, 0.5
    %v4257 = vmul.f32 %v4241, 0.5
    %v4258 = vmul.f32 %v4242, 0.5
    %v4259 = vmul.f32 %v4243, 0.5
    %v4260 = vmul.f32 %v4244, 0.5
    %v4261 = vmul.f32 %v4245, 0.5
    %v4262 = vmul.f32 %v4246, 0.5
    %v4263 = vmul.f32 %v4247, 0.5
    %v4264 = vmul.f32 %v4248, 0.5
    %v4265 = vmul.f32 %v4249, 0.5
    %v4266 = vmul.f32 %v4250, 0.5
    %v4267 = vmul.f32 %v4251, 0.5
    %v4268 = vmul.f32 %v4252, 0.5
    %v4269 = vmul.f32 %v4070, %v4253
    %v4270 = vmul.f32 %v4072, %v4254
    %v4271 = vmul.f32 %v4123, %v4255
    %v4272 = vmul.f32 %v4125, %v4256
    %v4273 = vmul.f32 %v4074, %v4257
    %v4274 = vmul.f32 %v4076, %v4258
    %v4275 = vmul.f32 %v4127, %v4259
    %v4276 = vmul.f32 %v4129, %v4260
    %v4277 = vmul.f32 %v4080, %v4261
    %v4278 = vmul.f32 %v4082, %v4262
    %v4279 = vmul.f32 %v4133, %v4263
    %v4280 = vmul.f32 %v4135, %v4264
    %v4281 = vmul.f32 %v4084, %v4265
    %v4282 = vmul.f32 %v4086, %v4266
    %v4283 = vmul.f32 %v4137, %v4267
    %v4284 = vmul.f32 %v4139, %v4268
    %v4285 = vpack.c.bf16 %v4273, %v4269
    %v4286 = vpack.c.bf16 %v4274, %v4270
    %v4287 = vpack.c.bf16 %v4275, %v4271
    %v4288 = vpack.c.bf16 %v4276, %v4272
    %v4289 = vpack.c.bf16 %v4281, %v4277
    %v4290 = vpack.c.bf16 %v4282, %v4278
    %v4291 = vpack.c.bf16 %v4283, %v4279
    %v4292 = vpack.c.bf16 %v4284, %v4280
    %4293 = vmatprep.subr.bf16.mxu0 0
    %4294 = vmatpush1.bf16.msra.mxu0 %v2538
    %4295 = vmatprep.subr.bf16.mxu0 0
    %4296 = vmatpush1.bf16.msra.mxu0 %v2539
    %4297 = vmatprep.subr.bf16.mxu0 0
    %4298 = vmatpush1.bf16.msra.mxu0 %v2540
    %4299 = vmatprep.subr.bf16.mxu0 0
    %4300 = vmatpush1.bf16.msra.mxu0 %v2541
    %4301 = vmatprep.subr.bf16.mxu0 0
    %4302 = vmatpush1.bf16.msra.mxu0 %v2542
    %4303 = vmatprep.subr.bf16.mxu0 0
    %4304 = vmatpush1.bf16.msra.mxu0 %v2543
    %4305 = vmatprep.subr.bf16.mxu0 0
    %4306 = vmatpush1.bf16.msra.mxu0 %v2544
    %4307 = vmatprep.subr.bf16.mxu0 0
    %4308 = vmatpush1.bf16.msra.mxu0 %v2545
    %4309 = vmatprep.subr.bf16.mxu0 0
    %4310 = vmatpush1.bf16.msra.mxu0 %v2546
    %4311 = vmatprep.subr.bf16.mxu0 0
    %4312 = vmatpush1.bf16.msra.mxu0 %v2547
    %4313 = vmatprep.subr.bf16.mxu0 0
    %4314 = vmatpush1.bf16.msra.mxu0 %v2548
    %4315 = vmatprep.subr.bf16.mxu0 0
    %4316 = vmatpush1.bf16.msra.mxu0 %v2549
    %4317 = vmatprep.subr.bf16.mxu0 0
    %4318 = vmatpush1.bf16.msra.mxu0 %v2550
    %4319 = vmatprep.subr.bf16.mxu0 0
    %4320 = vmatpush1.bf16.msra.mxu0 %v2551
    %4321 = vmatprep.subr.bf16.mxu0 0
    %4322 = vmatpush1.bf16.msra.mxu0 %v2552
    %4323 = vmatprep.subr.bf16.mxu0 0
    %4324 = vmatpush1.bf16.msra.mxu0 %v2553
    %4325 = vmatprep.mubr.bf16.mxu0 %v4286
    %4326 = vmatmul.mubr.bf16.gmra.mrb[0].mxu0 %v4285
    %v4327 = vpop.f32.mrb[0].mxu0
    %v4328 = vadd.f32 %v2409, %v4327
    %v4329 = vpop.f32.mrb[0].mxu0
    %v4330 = vpop.f32.mrb[0].mxu0
    %v4331 = vpop.f32.mrb[0].mxu0
    %4332 = vmatprep.mubr.bf16.mxu0 %v4290
    %4333 = vmatmul.mubr.bf16.gmra.mrb[0].mxu0 %v4289
    %v4334 = vpop.f32.mrb[0].mxu0
    %v4335 = vadd.f32 %v2409, %v4334
    %v4336 = vpop.f32.mrb[0].mxu0
    %v4337 = vpop.f32.mrb[0].mxu0
    %v4338 = vpop.f32.mrb[0].mxu0
    %4339 = vdwg.mxu0
    %4340 = vmatprep.subr.bf16.mxu0 0
    %4341 = vmatpush1.bf16.msra.mxu0 %v2554
    %4342 = vmatprep.subr.bf16.mxu0 0
    %4343 = vmatpush1.bf16.msra.mxu0 %v2555
    %4344 = vmatprep.subr.bf16.mxu0 0
    %4345 = vmatpush1.bf16.msra.mxu0 %v2556
    %4346 = vmatprep.subr.bf16.mxu0 0
    %4347 = vmatpush1.bf16.msra.mxu0 %v2557
    %4348 = vmatprep.subr.bf16.mxu0 0
    %4349 = vmatpush1.bf16.msra.mxu0 %v2558
    %4350 = vmatprep.subr.bf16.mxu0 0
    %4351 = vmatpush1.bf16.msra.mxu0 %v2559
    %4352 = vmatprep.subr.bf16.mxu0 0
    %4353 = vmatpush1.bf16.msra.mxu0 %v2560
    %4354 = vmatprep.subr.bf16.mxu0 0
    %4355 = vmatpush1.bf16.msra.mxu0 %v2561
    %4356 = vmatprep.subr.bf16.mxu0 0
    %4357 = vmatpush1.bf16.msra.mxu0 %v2562
    %4358 = vmatprep.subr.bf16.mxu0 0
    %4359 = vmatpush1.bf16.msra.mxu0 %v2563
    %4360 = vmatprep.subr.bf16.mxu0 0
    %4361 = vmatpush1.bf16.msra.mxu0 %v2564
    %4362 = vmatprep.subr.bf16.mxu0 0
    %4363 = vmatpush1.bf16.msra.mxu0 %v2565
    %4364 = vmatprep.subr.bf16.mxu0 0
    %4365 = vmatpush1.bf16.msra.mxu0 %v2566
    %4366 = vmatprep.subr.bf16.mxu0 0
    %4367 = vmatpush1.bf16.msra.mxu0 %v2567
    %4368 = vmatprep.subr.bf16.mxu0 0
    %4369 = vmatpush1.bf16.msra.mxu0 %v2568
    %4370 = vmatprep.subr.bf16.mxu0 0
    %4371 = vmatpush1.bf16.msra.mxu0 %v2569
    %4372 = vmatprep.mubr.bf16.mxu0 %v4288
    %4373 = vmatmul.mubr.bf16.gmra.mrb[0].mxu0 %v4287
    %v4374 = vpop.f32.mrb[0].mxu0
    %v4375 = vadd.f32 %v4328, %v4374
    %v4376 = vpop.f32.mrb[0].mxu0
    %v4377 = vpop.f32.mrb[0].mxu0
    %v4378 = vpop.f32.mrb[0].mxu0
    %4379 = vmatprep.mubr.bf16.mxu0 %v4292
    %4380 = vmatmul.mubr.bf16.gmra.mrb[0].mxu0 %v4291
    %v4381 = vpop.f32.mrb[0].mxu0
    %v4382 = vadd.f32 %v4335, %v4381
    %v4383 = vpop.f32.mrb[0].mxu0
    %v4384 = vpop.f32.mrb[0].mxu0
    %v4385 = vpop.f32.mrb[0].mxu0
    %4386 = vdwg.mxu0
    %v4387 = vadd.f32 %v4029, %v4375
    %v4388 = vadd.f32 %v4031, %v4382
    %4389 = vadd.xlane.f32.xlu0 %v4387
    %v4390 = vpop.xlane.xlu0 %4389
    %4391 = vadd.xlane.f32.xlu0 %v4388
    %v4392 = vpop.xlane.xlu0 %4391
    %v4393 = vmul.f32 %v4390, %v418
    %v4394 = vmul.f32 %v4392, %v418
    %v4395 = vsub.f32 %v4387, %v4393
    %v4396 = vsub.f32 %v4388, %v4394
    %v4397 = vmul.f32 %v4395, %v4395
    %v4398 = vmul.f32 %v4396, %v4396
    %4399 = vadd.xlane.f32.xlu0 %v4397
    %v4400 = vpop.xlane.xlu0 %4399
    %4401 = vadd.xlane.f32.xlu0 %v4398
    %v4402 = vpop.xlane.xlu0 %4401
    %v4403 = vmul.f32 %v4400, %v418
    %v4404 = vmul.f32 %v4402, %v418
    %v4405 = vadd.f32 %v4403, 1e-05
    %v4406 = vadd.f32 %v4404, 1e-05
    %v4407 = vrsqrt.pop %v4405
    %v4408 = vrsqrt.pop %v4406
    %v4409 = vmul.f32 %v4395, %v4407
    %v4410 = vmul.f32 %v4396, %v4408
    %v4411 = vmul.f32 %v4409, %v2751
    %v4412 = vmul.f32 %v4410, %v2751
    %v4413 = vadd.f32 %v4411, %v2759
    %v4414 = vadd.f32 %v4412, %v2759
    %v4415 = vpack.c.bf16 %v4413, %v4413
    %v4416 = vld [vmem:[%s10] sm:$0xf]
    %v4417 = vld [vmem:[%s10 + $0x4] sm:$0xf]
    %v4418 = vld [vmem:[%s10 + $0x8] sm:$0xf]
    %v4419 = vld [vmem:[%s10 + $0xc] sm:$0xf]
    %v4420 = vld [vmem:[%s10 + $0x10] sm:$0xf]
    %v4421 = vld [vmem:[%s10 + $0x14] sm:$0xf]
    %v4422 = vld [vmem:[%s10 + $0x18] sm:$0xf]
    %v4423 = vld [vmem:[%s10 + $0x1c] sm:$0xf]
    %v4424 = vld [vmem:[%s10 + $0x20] sm:$0xf]
    %v4425 = vld [vmem:[%s10 + $0x24] sm:$0xf]
    %v4426 = vld [vmem:[%s10 + $0x28] sm:$0xf]
    %v4427 = vld [vmem:[%s10 + $0x2c] sm:$0xf]
    %v4428 = vld [vmem:[%s10 + $0x30] sm:$0xf]
    %v4429 = vld [vmem:[%s10 + $0x34] sm:$0xf]
    %v4430 = vld [vmem:[%s10 + $0x38] sm:$0xf]
    %v4431 = vld [vmem:[%s10 + $0x3c] sm:$0xf]
    %v4448 = vunpack.c.l.b16 %v4416
    %v4449 = vunpack.c.l.b16 %v4417
    %v4450 = vunpack.c.l.b16 %v4418
    %v4451 = vunpack.c.l.b16 %v4419
    %v4452 = vunpack.c.l.b16 %v4420
    %v4453 = vunpack.c.l.b16 %v4421
    %v4454 = vunpack.c.l.b16 %v4422
    %v4455 = vunpack.c.l.b16 %v4423
    %v4456 = vunpack.c.l.b16 %v4424
    %v4457 = vunpack.c.l.b16 %v4425
    %v4458 = vunpack.c.l.b16 %v4426
    %v4459 = vunpack.c.l.b16 %v4427
    %v4460 = vunpack.c.l.b16 %v4428
    %v4461 = vunpack.c.l.b16 %v4429
    %v4462 = vunpack.c.l.b16 %v4430
    %v4463 = vunpack.c.l.b16 %v4431
    %v4464 = vpack.c.b16 %v4449, %v4448
    %v4465 = vpack.c.b16 %v4451, %v4450
    %v4466 = vpack.c.b16 %v4453, %v4452
    %v4467 = vpack.c.b16 %v4455, %v4454
    %v4468 = vpack.c.b16 %v4457, %v4456
    %v4469 = vpack.c.b16 %v4459, %v4458
    %v4470 = vpack.c.b16 %v4461, %v4460
    %v4471 = vpack.c.b16 %v4463, %v4462
    %4480 = vmatprep.subr.bf16.mxu0 0
    %4481 = vmatpush1.bf16.msra.mxu0 %v4464
    %4482 = vmatprep.subr.bf16.mxu0 0
    %4483 = vmatpush1.bf16.msra.mxu0 %v4465
    %4484 = vmatprep.subr.bf16.mxu0 0
    %4485 = vmatpush1.bf16.msra.mxu0 %v4466
    %4486 = vmatprep.subr.bf16.mxu0 0
    %4487 = vmatpush1.bf16.msra.mxu0 %v4467
    %4488 = vmatprep.subr.bf16.mxu0 0
    %4489 = vmatpush1.bf16.msra.mxu0 %v4468
    %4490 = vmatprep.subr.bf16.mxu0 0
    %4491 = vmatpush1.bf16.msra.mxu0 %v4469
    %4492 = vmatprep.subr.bf16.mxu0 0
    %4493 = vmatpush1.bf16.msra.mxu0 %v4470
    %4494 = vmatprep.subr.bf16.mxu0 0
    %4495 = vmatpush1.bf16.msra.mxu0 %v4471
    %4496 = vmatprep.subr.bf16.mxu0 0
    %4497 = vmatpush1.bf16.msra.mxu0 0
    %4498 = vmatprep.subr.bf16.mxu0 0
    %4499 = vmatpush1.bf16.msra.mxu0 0
    %4500 = vmatprep.subr.bf16.mxu0 0
    %4501 = vmatpush1.bf16.msra.mxu0 0
    %4502 = vmatprep.subr.bf16.mxu0 0
    %4503 = vmatpush1.bf16.msra.mxu0 0
    %4504 = vmatprep.subr.bf16.mxu0 0
    %4505 = vmatpush1.bf16.msra.mxu0 0
    %4506 = vmatprep.subr.bf16.mxu0 0
    %4507 = vmatpush1.bf16.msra.mxu0 0
    %4508 = vmatprep.subr.bf16.mxu0 0
    %4509 = vmatpush1.bf16.msra.mxu0 0
    %4510 = vmatprep.subr.bf16.mxu0 0
    %4511 = vmatpush1.bf16.msra.mxu0 0
    %4512 = vmatprep.mubr.bf16.mxu0 0
    %4513 = vmatmul.mubr.bf16.gmra.mrb[0].mxu0 %v4415
    %v4514 = vpop.f32.mrb[0].mxu0
    %v4515 = vadd.f32 %v151, %v4514
    %v4516 = vpop.f32.mrb[0].mxu0
    %v4517 = vpop.f32.mrb[0].mxu0
    %v4518 = vpop.f32.mrb[0].mxu0
    %4519 = vdwg.mxu0
    %v4520 = vtanh.pop %v4515
    %4521 = vst [vmem:[#allocation16] sm:$0x1] %v4520
    %v4522 = vpack.c.bf16 %v4414, %v4414
    %v4523 = vld [vmem:[%s10] sm:$0xf]
    %v4524 = vld [vmem:[%s10 + $0x4] sm:$0xf]
    %v4525 = vld [vmem:[%s10 + $0x8] sm:$0xf]
    %v4526 = vld [vmem:[%s10 + $0xc] sm:$0xf]
    %v4527 = vld [vmem:[%s10 + $0x10] sm:$0xf]
    %v4528 = vld [vmem:[%s10 + $0x14] sm:$0xf]
    %v4529 = vld [vmem:[%s10 + $0x18] sm:$0xf]
    %v4530 = vld [vmem:[%s10 + $0x1c] sm:$0xf]
    %v4531 = vld [vmem:[%s10 + $0x20] sm:$0xf]
    %v4532 = vld [vmem:[%s10 + $0x24] sm:$0xf]
    %v4533 = vld [vmem:[%s10 + $0x28] sm:$0xf]
    %v4534 = vld [vmem:[%s10 + $0x2c] sm:$0xf]
    %v4535 = vld [vmem:[%s10 + $0x30] sm:$0xf]
    %v4536 = vld [vmem:[%s10 + $0x34] sm:$0xf]
    %v4537 = vld [vmem:[%s10 + $0x38] sm:$0xf]
    %v4538 = vld [vmem:[%s10 + $0x3c] sm:$0xf]
    %v4555 = vunpack.c.l.b16 %v4523
    %v4556 = vunpack.c.l.b16 %v4524
    %v4557 = vunpack.c.l.b16 %v4525
    %v4558 = vunpack.c.l.b16 %v4526
    %v4559 = vunpack.c.l.b16 %v4527
    %v4560 = vunpack.c.l.b16 %v4528
    %v4561 = vunpack.c.l.b16 %v4529
    %v4562 = vunpack.c.l.b16 %v4530
    %v4563 = vunpack.c.l.b16 %v4531
    %v4564 = vunpack.c.l.b16 %v4532
    %v4565 = vunpack.c.l.b16 %v4533
    %v4566 = vunpack.c.l.b16 %v4534
    %v4567 = vunpack.c.l.b16 %v4535
    %v4568 = vunpack.c.l.b16 %v4536
    %v4569 = vunpack.c.l.b16 %v4537
    %v4570 = vunpack.c.l.b16 %v4538
    %v4571 = vpack.c.b16 %v4556, %v4555
    %v4572 = vpack.c.b16 %v4558, %v4557
    %v4573 = vpack.c.b16 %v4560, %v4559
    %v4574 = vpack.c.b16 %v4562, %v4561
    %v4575 = vpack.c.b16 %v4564, %v4563
    %v4576 = vpack.c.b16 %v4566, %v4565
    %v4577 = vpack.c.b16 %v4568, %v4567
    %v4578 = vpack.c.b16 %v4570, %v4569
    %4587 = vmatprep.subr.bf16.mxu0 0
    %4588 = vmatpush1.bf16.msra.mxu0 %v4571
    %4589 = vmatprep.subr.bf16.mxu0 0
    %4590 = vmatpush1.bf16.msra.mxu0 %v4572
    %4591 = vmatprep.subr.bf16.mxu0 0
    %4592 = vmatpush1.bf16.msra.mxu0 %v4573
    %4593 = vmatprep.subr.bf16.mxu0 0
    %4594 = vmatpush1.bf16.msra.mxu0 %v4574
    %4595 = vmatprep.subr.bf16.mxu0 0
    %4596 = vmatpush1.bf16.msra.mxu0 %v4575
    %4597 = vmatprep.subr.bf16.mxu0 0
    %4598 = vmatpush1.bf16.msra.mxu0 %v4576
    %4599 = vmatprep.subr.bf16.mxu0 0
    %4600 = vmatpush1.bf16.msra.mxu0 %v4577
    %4601 = vmatprep.subr.bf16.mxu0 0
    %4602 = vmatpush1.bf16.msra.mxu0 %v4578
    %4603 = vmatprep.subr.bf16.mxu0 0
    %4604 = vmatpush1.bf16.msra.mxu0 0
    %4605 = vmatprep.subr.bf16.mxu0 0
    %4606 = vmatpush1.bf16.msra.mxu0 0
    %4607 = vmatprep.subr.bf16.mxu0 0
    %4608 = vmatpush1.bf16.msra.mxu0 0
    %4609 = vmatprep.subr.bf16.mxu0 0
    %4610 = vmatpush1.bf16.msra.mxu0 0
    %4611 = vmatprep.subr.bf16.mxu0 0
    %4612 = vmatpush1.bf16.msra.mxu0 0
    %4613 = vmatprep.subr.bf16.mxu0 0
    %4614 = vmatpush1.bf16.msra.mxu0 0
    %4615 = vmatprep.subr.bf16.mxu0 0
    %4616 = vmatpush1.bf16.msra.mxu0 0
    %4617 = vmatprep.subr.bf16.mxu0 0
    %4618 = vmatpush1.bf16.msra.mxu0 0
    %4619 = vmatprep.mubr.bf16.mxu0 0
    %4620 = vmatmul.mubr.bf16.gmra.mrb[0].mxu0 %v4522
    %v4621 = vpop.f32.mrb[0].mxu0
    %v4622 = vadd.f32 %v151, %v4621
    %v4623 = vpop.f32.mrb[0].mxu0
    %v4624 = vpop.f32.mrb[0].mxu0
    %v4625 = vpop.f32.mrb[0].mxu0
    %4626 = vdwg.mxu0
    %v4627 = vtanh.pop %v4622
    %s4628 = scalar_lea.vmem [#allocation16], 1
    %4629 = vst [vmem:[%s4628] sm:$0x1] %v4627
    // Predicated region
    $region82: #{tpu_custom_call.1} parent=1 // pred_check
      _
    $region83: #{tpu_custom_call.1} parent=1 // pred_check_branch
      %4631 = sbr.rel (0) target = $region85
    $region84: #{tpu_custom_call.1} parent=1 // pred_region
      %s4633 = ssub.s32 32, 32
      %4634 = vsyncadd [#allocation4], %s4633
      %s4635 = sshll.u32 [#allocation16], 4
      %s4636 = int_to_ptr.vmem [resolvable:$true] %s4635
      %4641 = dma.vmem_to_hbm [thread:$0]  %s4636, 32, %s12, [#allocation4], 16, 16, 1
    $region85: #{tpu_custom_call.1} parent=1 // pred_fallthru
      _
    // Predicated region
    $region86: #{tpu_custom_call.1} parent=1 // pred_check
      _
    $region87: #{tpu_custom_call.1} parent=1 // pred_check_branch
      %4643 = sbr.rel (0) target = $region89
    $region88: #{tpu_custom_call.1} parent=1 // pred_region
      %4644 = dma.done [#allocation4], 32
    $region89: #{tpu_custom_call.1} parent=1 // pred_fallthru
      _
    %4645 = vsyncpa [#allocation3], 1
    %4646 = vsyncpa [#allocation6], 1
    %4647 = vsyncpa [#allocation9], 1
    %4648 = vsyncpa [#allocation12], 1
    %4649 = vsyncpa [#allocation15], 1
    %4650 = vsyncpa [#allocation4], 1

</llo_original>
